<compile_context>
chip_gen: v7x
topology: tpu7x:2x2x1
jax: 0.10.0
libtpu: 0.0.40
codegen_flags: <defaults>
</compile_context>

<pallas_src>
import math
import functools

import jax
import jax.numpy as jnp
from jax.experimental import pallas as pl
from jax.experimental.pallas import tpu as pltpu


def _encoder_layer_kernel(
    x_ref, bias_ref,
    wqkv_ref, bqkv_ref, wc_ref,
    w1_ref, b1_ref, w2_ref, small_ref,
    out_ref,
    ctx_scratch,
    *, heads: int, d_k: int, q_tile: int,
):
    """One grid step == (one batch element, one query tile)."""
    f32, bf16 = jnp.float32, jnp.bfloat16
    S = x_ref.shape[1]
    D = heads * d_k

    # Query-tile offset for this grid step (grid = (batch, q_tiles)).
    q0 = pl.multiple_of(pl.program_id(1) * q_tile, q_tile)

    x_seq = x_ref[0]                                 # (S, D)  f32 full sequence (K/V)
    x_tile = x_ref[0, pl.ds(q0, q_tile), :]          # (TQ, D) f32 this step's queries
    bias = bias_ref[0].astype(f32)                   # (1, S) or (TQ, S) additive mask bias

    small = small_ref[...]                           # (4, D): gamma, beta, bc, b2
    gamma, beta = small[0:1, :], small[1:2, :]
    bc, b2 = small[2:3, :], small[3:4, :]

    def layernorm(v):                                # f32 math (v5e: no bf16 VPU/EUP)
        mu = jnp.mean(v, axis=-1, keepdims=True)
        var = jnp.mean(jnp.square(v - mu), axis=-1, keepdims=True)
        return (v - mu) * jax.lax.rsqrt(var + 1e-5) * gamma + beta

    # ---- fused Q/K/V projection: two full-width MXU matmuls -----------------
    wqkv = wqkv_ref[...]                             # (D, 3D) bf16
    bqkv = bqkv_ref[...]                             # (1, 3D) f32
    q2d = jnp.dot(x_tile.astype(bf16), wqkv[:, :D],
                  preferred_element_type=f32) + bqkv[:, :D]           # (TQ, D)
    kv2d = jnp.dot(x_seq.astype(bf16), wqkv[:, D:],
                   preferred_element_type=f32) + bqkv[:, D:]          # (S, 2D)
    k2d, v2d = kv2d[:, :D], kv2d[:, D:]

    def split_heads(a):                              # (N, H*dk) -> (H, N, dk) bf16
        a = a.astype(bf16)
        return jnp.stack([a[:, h * d_k:(h + 1) * d_k] for h in range(heads)], axis=0)

    qh, kh, vh = split_heads(q2d), split_heads(k2d), split_heads(v2d)

    # ---- attention (batched over the leading head axis) ---------------------
    scores = jnp.einsum("hqd,hkd->hqk", qh, kh,
                        preferred_element_type=f32) * (1.0 / math.sqrt(d_k))
    scores = scores + bias[None, :, :]               # masked_fill as additive bias
    scores = scores - jnp.max(scores, axis=-1, keepdims=True)
    p = jnp.exp(scores)
    p = p * pl.reciprocal(jnp.sum(p, axis=-1, keepdims=True), approx=True)
    ctx = jnp.einsum("hqk,hkd->hqd", p.astype(bf16), vh,
                     preferred_element_type=f32)                      # (H, TQ, dk)

    # Reassemble heads lane-dense in VMEM scratch, then ONE full-width output
    # projection (no (H, S, D) f32 partials, no head-sum).
    for h in range(heads):
        ctx_scratch[:, h * d_k:(h + 1) * d_k] = ctx[h]
    interacted = jnp.dot(ctx_scratch[...].astype(bf16), wc_ref[...],
                         preferred_element_type=f32) + bc             # (TQ, D)

    y = layernorm(interacted + x_tile)               # residual + LayerNorm

    # ---- feed-forward --------------------------------------------------------
    h1 = jnp.dot(y.astype(bf16), w1_ref[...],
                 preferred_element_type=f32) + b1_ref[...]            # (TQ, M)
    h1 = jnp.maximum(h1, 0.0)                        # ReLU
    ff = jnp.dot(h1.astype(bf16), w2_ref[...],
                 preferred_element_type=f32) + b2                     # (TQ, D)

    out_ref[0] = layernorm(ff + y)                   # residual + LayerNorm


def encoder_layer(x, mask, params, *, heads: int):
    """mask: (B, S) key-padding mask (1=keep) or (B, S, S) full mask."""
    B, S, D = x.shape
    assert D % heads == 0
    d_k = D // heads
    M = params["w1"].shape[1]
    bf16, f32 = jnp.bfloat16, jnp.float32

    # Query-tile size: at real S this bounds per-step VMEM and gives the
    # software pipeline enough steps to hide DMA; at toy S it is the full seq.
    TQ = S if S <= 128 else 128
    assert S % TQ == 0, "seq length must be a multiple of the query tile"
    NQ = S // TQ

    # Fused / packed parameters (prepared once in the wrapper, plain XLA).
    wqkv = jnp.concatenate([params["wq"], params["wk"], params["wv"]], axis=1).astype(bf16)
    bqkv = jnp.concatenate([params["bq"], params["bk"], params["bv"]], axis=1).astype(f32)
    wc = params["wc"].astype(bf16)
    w1, w2 = params["w1"].astype(bf16), params["w2"].astype(bf16)
    b1 = params["b1"].astype(f32)
    small = jnp.concatenate(
        [params["gamma"], params["beta"], params["bc"], params["b2"]], axis=0
    ).astype(f32)                                                      # (4, D)

    # Attention mask -> bf16 additive bias.  Key-padding masks stay (B, 1, S).
    if mask.ndim == 2:
        bias = jnp.where(mask == 0, -1e9, 0.0).astype(bf16)[:, None, :]   # (B, 1, S)
        bias_shape = (1, 1, S)
        bias_index = lambda b, q: (b, 0, 0)
    else:
        bias = jnp.where(mask == 0, -1e9, 0.0).astype(bf16)               # (B, S, S)
        bias_shape = (1, TQ, S)
        bias_index = lambda b, q: (b, q, 0)

    kernel = functools.partial(_encoder_layer_kernel, heads=heads, d_k=d_k, q_tile=TQ)

    def run(single_buffer_weights: bool):
        if single_buffer_weights and hasattr(pl, "Buffered"):
            # Grid-invariant weights: single-buffered (no point double-buffering).
            const = lambda shape: pl.BlockSpec(
                shape, lambda b, q: (0,) * len(shape), pipeline_mode=pl.Buffered(1))
        else:
            const = lambda shape: pl.BlockSpec(shape, lambda b, q: (0,) * len(shape))

        call = pl.pallas_call(
            kernel,
            out_shape=jax.ShapeDtypeStruct((B, S, D), jnp.float32),
            grid_spec=pltpu.PrefetchScalarGridSpec(
                num_scalar_prefetch=0,
                grid=(B, NQ),
                in_specs=[
                    pl.BlockSpec((1, S, D), lambda b, q: (b, 0, 0)),   # x (full seq)
                    pl.BlockSpec(bias_shape, bias_index),              # attn bias (bf16)
                    const((D, 3 * D)),                                 # fused Wqkv
                    const((1, 3 * D)),                                 # fused bqkv
                    const((D, D)),                                     # Wc
                    const((D, M)),                                     # W1
                    const((1, M)),                                     # b1
                    const((M, D)),                                     # W2
                    const((4, D)),                                     # gamma/beta/bc/b2
                ],
                out_specs=pl.BlockSpec((1, TQ, D), lambda b, q: (b, q, 0)),
                scratch_shapes=[pltpu.VMEM((TQ, D), jnp.float32)],     # ctx reassembly
            ),
            compiler_params=pltpu.CompilerParams(
                dimension_semantics=("parallel", "parallel"),
                # Re-budget per generation at real sizes (64 MiB physical on v7x).
                vmem_limit_bytes=32 * 1024 * 1024,
            ),
        )
        return call(x.astype(f32), bias, wqkv, bqkv, wc, w1, b1, w2, small)

    try:
        return jax.block_until_ready(run(True))
    except Exception:
        # TODO(synk): pl.Buffered(1) single-buffering not supported by this
        # jax/libtpu build; fall back to default double-buffered weight blocks.
        return jax.block_until_ready(run(False))


def _reference(x, mask, params, *, heads: int):
    """Pure-JAX mirror of the PyTorch forward (dropout = identity), using the
    same bf16-operand / f32-accumulation matmuls as the kernel so the
    comparison isolates kernel bugs rather than dtype rounding."""
    B, S, D = x.shape
    d_k = D // heads
    bf16, f32 = jnp.bfloat16, jnp.float32

    def ln(v):
        mu = jnp.mean(v, axis=-1, keepdims=True)
        var = jnp.mean((v - mu) ** 2, axis=-1, keepdims=True)
        return (v - mu) * jax.lax.rsqrt(var + 1e-5) * params["gamma"][0] + params["beta"][0]

    def mm(a, b):
        return jnp.einsum("...ij,jk->...ik", a.astype(bf16), b.astype(bf16),
                          preferred_element_type=f32)

    q = mm(x, params["wq"]) + params["bq"][0]
    k = mm(x, params["wk"]) + params["bk"][0]
    v = mm(x, params["wv"]) + params["bv"][0]
    q = q.reshape(B, S, heads, d_k).transpose(0, 2, 1, 3)
    k = k.reshape(B, S, heads, d_k).transpose(0, 2, 1, 3)
    v = v.reshape(B, S, heads, d_k).transpose(0, 2, 1, 3)

    scores = jnp.einsum("bhqd,bhkd->bhqk", q.astype(bf16), k.astype(bf16),
                        preferred_element_type=f32) / math.sqrt(d_k)
    scores = jnp.where(mask[:, None, :, :] == 0, -1e9, scores)   # torch masked_fill
    w = jax.nn.softmax(scores, axis=-1)
    ctx = jnp.einsum("bhqk,bhkd->bhqd", w.astype(bf16), v.astype(bf16),
                     preferred_element_type=f32)
    ctx = ctx.transpose(0, 2, 1, 3).reshape(B, S, D)
    interacted = mm(ctx, params["wc"]) + params["bc"][0]
    y = ln(interacted + x)
    h1 = jax.nn.relu(mm(y, params["w1"]) + params["b1"][0])
    ff = mm(h1, params["w2"]) + params["b2"][0]
    return ln(ff + y)


if __name__ == "__main__":
    B, S, D, H = 2, 8, 32, 4
    MIDDLE = 2048  # FeedForward default middle_dim

    key = jax.random.PRNGKey(0)
    keys = jax.random.split(key, 16)

    def w(k, shape, scale=0.05):
        return (scale * jax.random.normal(k, shape)).astype(jnp.float32)

    params = {
        # Linear weights stored as (in, out); equivalent to PyTorch's x @ W.T + b.
        "wq": w(keys[0], (D, D)), "bq": w(keys[1], (1, D)),
        "wk": w(keys[2], (D, D)), "bk": w(keys[3], (1, D)),
        "wv": w(keys[4], (D, D)), "bv": w(keys[5], (1, D)),
        "wc": w(keys[6], (D, D)), "bc": w(keys[7], (1, D)),
        "gamma": (1.0 + 0.1 * jax.random.normal(keys[8], (1, D))).astype(jnp.float32),
        "beta": w(keys[9], (1, D)),
        "w1": w(keys[10], (D, MIDDLE)), "b1": w(keys[11], (1, MIDDLE)),
        "w2": w(keys[12], (MIDDLE, D)), "b2": w(keys[13], (1, D)),
    }

    x = jax.random.normal(keys[14], (B, S, D)).astype(jnp.float32)

    # Key-padding mask: 1 = attend, 0 = masked (mask the last 2 keys of batch 1).
    pad_mask = jnp.ones((B, S), jnp.float32).at[1, -2:].set(0.0)
    full_mask = jnp.broadcast_to(pad_mask[:, None, :], (B, S, S))

    ref = _reference(x, full_mask, params, heads=H)

    # 1) key-padding (B, S) mask path — (B, 1, S) bias DMA.
    out = jax.block_until_ready(encoder_layer(x, pad_mask, params, heads=H))
    assert out.shape == (B, S, D) and out.dtype == jnp.float32
    err = float(jnp.max(jnp.abs(out - ref)))
    assert err < 1e-2, f"key-padding path mismatch vs reference (max abs err {err})"

    # 2) dense (B, S, S) mask path — general masked_fill semantics.
    out2 = jax.block_until_ready(encoder_layer(x, full_mask, params, heads=H))
    err2 = float(jnp.max(jnp.abs(out2 - ref)))
    assert err2 < 1e-2, f"dense-mask path mismatch vs reference (max abs err {err2})"

    print("KERNEL_OK")
</pallas_src>

<mosaic_0001>
module attributes {stable_mosaic.version = 11 : i64} {
  func.func @_encoder_layer_kernel(%arg0: i32, %arg1: i32, %arg2: memref<1x8x32xf32, #tpu.memory_space<vmem>>, %arg3: memref<1x1x8xbf16, #tpu.memory_space<vmem>>, %arg4: memref<32x96xbf16, #tpu.memory_space<vmem>>, %arg5: memref<1x96xf32, #tpu.memory_space<vmem>>, %arg6: memref<32x32xbf16, #tpu.memory_space<vmem>>, %arg7: memref<32x2048xbf16, #tpu.memory_space<vmem>>, %arg8: memref<1x2048xf32, #tpu.memory_space<vmem>>, %arg9: memref<2048x32xbf16, #tpu.memory_space<vmem>>, %arg10: memref<4x32xf32, #tpu.memory_space<vmem>>, %arg11: memref<1x8x32xf32, #tpu.memory_space<vmem>>, %arg12: memref<8x32xf32, #tpu.memory_space<vmem>>) attributes {dimension_semantics = [#tpu.dimension_semantics<parallel>, #tpu.dimension_semantics<parallel>], iteration_bounds = array<i64: 2, 1>, scalar_prefetch = 0 : i64, scratch_operands = 1 : i64, tpu.core_type = #tpu.core_type<tc>, window_params = [{transform_indices = @transform_0, window_bounds = array<i64: 1, 8, 32>}, {transform_indices = @transform_1, window_bounds = array<i64: 1, 1, 8>}, {pipeline_mode = #tpu.pipeline_mode<synchronous>, transform_indices = @transform_2, window_bounds = array<i64: 32, 96>}, {pipeline_mode = #tpu.pipeline_mode<synchronous>, transform_indices = @transform_3, window_bounds = array<i64: 1, 96>}, {pipeline_mode = #tpu.pipeline_mode<synchronous>, transform_indices = @transform_4, window_bounds = array<i64: 32, 32>}, {pipeline_mode = #tpu.pipeline_mode<synchronous>, transform_indices = @transform_5, window_bounds = array<i64: 32, 2048>}, {pipeline_mode = #tpu.pipeline_mode<synchronous>, transform_indices = @transform_6, window_bounds = array<i64: 1, 2048>}, {pipeline_mode = #tpu.pipeline_mode<synchronous>, transform_indices = @transform_7, window_bounds = array<i64: 2048, 32>}, {pipeline_mode = #tpu.pipeline_mode<synchronous>, transform_indices = @transform_8, window_bounds = array<i64: 4, 32>}, {transform_indices = @transform_9, window_bounds = array<i64: 1, 8, 32>}]} {
    %c8_i32 = arith.constant 8 : i32
    %0 = arith.muli %arg1, %c8_i32 : i32
    %1 = tpu.assume_multiple %0, 8 : i32
    %c0 = arith.constant 0 : index
    %c0_0 = arith.constant 0 : index
    %c0_1 = arith.constant 0 : index
    %2 = vector.load %arg2[%c0, %c0_0, %c0_1] : memref<1x8x32xf32, #tpu.memory_space<vmem>>, vector<1x8x32xf32>
    %3 = vector.shape_cast %2 : vector<1x8x32xf32> to vector<8x32xf32>
    %c0_2 = arith.constant 0 : index
    %4 = arith.index_cast %1 : i32 to index
    %c0_3 = arith.constant 0 : index
    %5 = vector.load %arg2[%c0_2, %4, %c0_3] : memref<1x8x32xf32, #tpu.memory_space<vmem>>, vector<1x8x32xf32>
    %6 = vector.shape_cast %5 : vector<1x8x32xf32> to vector<8x32xf32>
    %c0_4 = arith.constant 0 : index
    %c0_5 = arith.constant 0 : index
    %c0_6 = arith.constant 0 : index
    %7 = vector.load %arg3[%c0_4, %c0_5, %c0_6] : memref<1x1x8xbf16, #tpu.memory_space<vmem>>, vector<1x1x8xbf16>
    %8 = vector.shape_cast %7 : vector<1x1x8xbf16> to vector<1x8xbf16>
    %9 = arith.extf %8 : vector<1x8xbf16> to vector<1x8xf32>
    %c0_7 = arith.constant 0 : index
    %c0_8 = arith.constant 0 : index
    %10 = vector.load %arg10[%c0_7, %c0_8] : memref<4x32xf32, #tpu.memory_space<vmem>>, vector<4x32xf32>
    %11 = vector.extract_strided_slice %10 {offsets = [0, 0], sizes = [1, 32], strides = [1, 1]} : vector<4x32xf32> to vector<1x32xf32>
    %12 = vector.extract_strided_slice %10 {offsets = [1, 0], sizes = [1, 32], strides = [1, 1]} : vector<4x32xf32> to vector<1x32xf32>
    %13 = vector.extract_strided_slice %10 {offsets = [2, 0], sizes = [1, 32], strides = [1, 1]} : vector<4x32xf32> to vector<1x32xf32>
    %14 = vector.extract_strided_slice %10 {offsets = [3, 0], sizes = [1, 32], strides = [1, 1]} : vector<4x32xf32> to vector<1x32xf32>
    %c0_9 = arith.constant 0 : index
    %c0_10 = arith.constant 0 : index
    %15 = vector.load %arg4[%c0_9, %c0_10] : memref<32x96xbf16, #tpu.memory_space<vmem>>, vector<32x96xbf16>
    %c0_11 = arith.constant 0 : index
    %c0_12 = arith.constant 0 : index
    %16 = vector.load %arg5[%c0_11, %c0_12] : memref<1x96xf32, #tpu.memory_space<vmem>>, vector<1x96xf32>
    %17 = arith.truncf %6 : vector<8x32xf32> to vector<8x32xbf16>
    %18 = vector.extract_strided_slice %15 {offsets = [0, 0], sizes = [32, 32], strides = [1, 1]} : vector<32x96xbf16> to vector<32x32xbf16>
    %cst = arith.constant dense<0.000000e+00> : vector<8x32xf32>
    %19 = tpu.matmul %17, %18, %cst {dimension_numbers = #tpu.dot_dimension_numbers<[1], [0], [0], [1], [0, 0, 1, 1], [], []>} : vector<8x32xbf16>, vector<32x32xbf16>, vector<8x32xf32> -> vector<8x32xf32>
    %20 = vector.extract_strided_slice %16 {offsets = [0, 0], sizes = [1, 32], strides = [1, 1]} : vector<1x96xf32> to vector<1x32xf32>
    %21 = vector.broadcast %20 : vector<1x32xf32> to vector<8x32xf32>
    %22 = arith.addf %19, %21 : vector<8x32xf32>
    %23 = arith.truncf %3 : vector<8x32xf32> to vector<8x32xbf16>
    %24 = vector.extract_strided_slice %15 {offsets = [0, 32], sizes = [32, 64], strides = [1, 1]} : vector<32x96xbf16> to vector<32x64xbf16>
    %cst_13 = arith.constant dense<0.000000e+00> : vector<8x64xf32>
    %25 = tpu.matmul %23, %24, %cst_13 {dimension_numbers = #tpu.dot_dimension_numbers<[1], [0], [0], [1], [0, 0, 1, 1], [], []>} : vector<8x32xbf16>, vector<32x64xbf16>, vector<8x64xf32> -> vector<8x64xf32>
    %26 = vector.extract_strided_slice %16 {offsets = [0, 32], sizes = [1, 64], strides = [1, 1]} : vector<1x96xf32> to vector<1x64xf32>
    %27 = vector.broadcast %26 : vector<1x64xf32> to vector<8x64xf32>
    %28 = arith.addf %25, %27 : vector<8x64xf32>
    %29 = vector.extract_strided_slice %28 {offsets = [0, 0], sizes = [8, 32], strides = [1, 1]} : vector<8x64xf32> to vector<8x32xf32>
    %30 = vector.extract_strided_slice %28 {offsets = [0, 32], sizes = [8, 32], strides = [1, 1]} : vector<8x64xf32> to vector<8x32xf32>
    %31 = arith.truncf %22 : vector<8x32xf32> to vector<8x32xbf16>
    %32 = vector.extract_strided_slice %31 {offsets = [0, 0], sizes = [8, 8], strides = [1, 1]} : vector<8x32xbf16> to vector<8x8xbf16>
    %33 = vector.extract_strided_slice %31 {offsets = [0, 8], sizes = [8, 8], strides = [1, 1]} : vector<8x32xbf16> to vector<8x8xbf16>
    %34 = vector.extract_strided_slice %31 {offsets = [0, 16], sizes = [8, 8], strides = [1, 1]} : vector<8x32xbf16> to vector<8x8xbf16>
    %35 = vector.extract_strided_slice %31 {offsets = [0, 24], sizes = [8, 8], strides = [1, 1]} : vector<8x32xbf16> to vector<8x8xbf16>
    %36 = vector.shape_cast %32 : vector<8x8xbf16> to vector<1x8x8xbf16>
    %37 = vector.shape_cast %33 : vector<8x8xbf16> to vector<1x8x8xbf16>
    %38 = vector.shape_cast %34 : vector<8x8xbf16> to vector<1x8x8xbf16>
    %39 = vector.shape_cast %35 : vector<8x8xbf16> to vector<1x8x8xbf16>
    %40 = tpu.concatenate %36, %37, %38, %39 in 0 : vector<1x8x8xbf16>, vector<1x8x8xbf16>, vector<1x8x8xbf16>, vector<1x8x8xbf16> -> vector<4x8x8xbf16>
    %41 = arith.truncf %29 : vector<8x32xf32> to vector<8x32xbf16>
    %42 = vector.extract_strided_slice %41 {offsets = [0, 0], sizes = [8, 8], strides = [1, 1]} : vector<8x32xbf16> to vector<8x8xbf16>
    %43 = vector.extract_strided_slice %41 {offsets = [0, 8], sizes = [8, 8], strides = [1, 1]} : vector<8x32xbf16> to vector<8x8xbf16>
    %44 = vector.extract_strided_slice %41 {offsets = [0, 16], sizes = [8, 8], strides = [1, 1]} : vector<8x32xbf16> to vector<8x8xbf16>
    %45 = vector.extract_strided_slice %41 {offsets = [0, 24], sizes = [8, 8], strides = [1, 1]} : vector<8x32xbf16> to vector<8x8xbf16>
    %46 = vector.shape_cast %42 : vector<8x8xbf16> to vector<1x8x8xbf16>
    %47 = vector.shape_cast %43 : vector<8x8xbf16> to vector<1x8x8xbf16>
    %48 = vector.shape_cast %44 : vector<8x8xbf16> to vector<1x8x8xbf16>
    %49 = vector.shape_cast %45 : vector<8x8xbf16> to vector<1x8x8xbf16>
    %50 = tpu.concatenate %46, %47, %48, %49 in 0 : vector<1x8x8xbf16>, vector<1x8x8xbf16>, vector<1x8x8xbf16>, vector<1x8x8xbf16> -> vector<4x8x8xbf16>
    %51 = arith.truncf %30 : vector<8x32xf32> to vector<8x32xbf16>
    %52 = vector.extract_strided_slice %51 {offsets = [0, 0], sizes = [8, 8], strides = [1, 1]} : vector<8x32xbf16> to vector<8x8xbf16>
    %53 = vector.extract_strided_slice %51 {offsets = [0, 8], sizes = [8, 8], strides = [1, 1]} : vector<8x32xbf16> to vector<8x8xbf16>
    %54 = vector.extract_strided_slice %51 {offsets = [0, 16], sizes = [8, 8], strides = [1, 1]} : vector<8x32xbf16> to vector<8x8xbf16>
    %55 = vector.extract_strided_slice %51 {offsets = [0, 24], sizes = [8, 8], strides = [1, 1]} : vector<8x32xbf16> to vector<8x8xbf16>
    %56 = vector.shape_cast %52 : vector<8x8xbf16> to vector<1x8x8xbf16>
    %57 = vector.shape_cast %53 : vector<8x8xbf16> to vector<1x8x8xbf16>
    %58 = vector.shape_cast %54 : vector<8x8xbf16> to vector<1x8x8xbf16>
    %59 = vector.shape_cast %55 : vector<8x8xbf16> to vector<1x8x8xbf16>
    %60 = tpu.concatenate %56, %57, %58, %59 in 0 : vector<1x8x8xbf16>, vector<1x8x8xbf16>, vector<1x8x8xbf16>, vector<1x8x8xbf16> -> vector<4x8x8xbf16>
    "tpu.trace_start"() <{level = 10 : i32, message = "hqd,hkd->hqk"}> : () -> ()
    %cst_14 = arith.constant dense<0.000000e+00> : vector<4x8x8xf32>
    %61 = tpu.matmul %40, %50, %cst_14 {dimension_numbers = #tpu.dot_dimension_numbers<[2], [2], [1], [1], [0, 0, 0, 1, 1, 1], [0], [0]>} : vector<4x8x8xbf16>, vector<4x8x8xbf16>, vector<4x8x8xf32> -> vector<4x8x8xf32>
    "tpu.trace_stop"() : () -> ()
    %cst_15 = arith.constant 0.353553385 : f32
    %62 = vector.broadcast %cst_15 : f32 to vector<4x8x8xf32>
    %63 = arith.mulf %61, %62 : vector<4x8x8xf32>
    %64 = vector.shape_cast %9 : vector<1x8xf32> to vector<1x1x8xf32>
    %65 = vector.broadcast %64 : vector<1x1x8xf32> to vector<4x8x8xf32>
    %66 = arith.addf %63, %65 : vector<4x8x8xf32>
    %cst_16 = arith.constant dense<0xFF800000> : vector<4x8xf32>
    %67 = vector.multi_reduction <maximumf>, %66, %cst_16 [2] : vector<4x8x8xf32> to vector<4x8xf32>
    %68 = vector.shape_cast %67 : vector<4x8xf32> to vector<4x8x1xf32>
    %69 = vector.broadcast %68 : vector<4x8x1xf32> to vector<4x8x8xf32>
    %70 = arith.subf %66, %69 : vector<4x8x8xf32>
    %71 = math.exp %70 : vector<4x8x8xf32>
    %cst_17 = arith.constant dense<0.000000e+00> : vector<4x8xf32>
    %72 = vector.multi_reduction <add>, %71, %cst_17 [2] : vector<4x8x8xf32> to vector<4x8xf32>
    %73 = vector.shape_cast %72 : vector<4x8xf32> to vector<4x8x1xf32>
    %74 = tpu.reciprocal %73 {approx = true} : vector<4x8x1xf32> -> vector<4x8x1xf32>
    %75 = vector.broadcast %74 : vector<4x8x1xf32> to vector<4x8x8xf32>
    %76 = arith.mulf %71, %75 : vector<4x8x8xf32>
    %77 = arith.truncf %76 : vector<4x8x8xf32> to vector<4x8x8xbf16>
    "tpu.trace_start"() <{level = 10 : i32, message = "hqk,hkd->hqd"}> : () -> ()
    %cst_18 = arith.constant dense<0.000000e+00> : vector<4x8x8xf32>
    %78 = tpu.matmul %77, %60, %cst_18 {dimension_numbers = #tpu.dot_dimension_numbers<[2], [1], [1], [2], [0, 0, 0, 1, 1, 2], [0], [0]>} : vector<4x8x8xbf16>, vector<4x8x8xbf16>, vector<4x8x8xf32> -> vector<4x8x8xf32>
    "tpu.trace_stop"() : () -> ()
    %79 = vector.extract_strided_slice %78 {offsets = [0, 0, 0], sizes = [1, 8, 8], strides = [1, 1, 1]} : vector<4x8x8xf32> to vector<1x8x8xf32>
    %80 = vector.shape_cast %79 : vector<1x8x8xf32> to vector<8x8xf32>
    %c0_19 = arith.constant 0 : index
    %c0_20 = arith.constant 0 : index
    %81 = vector.load %arg12[%c0_19, %c0_20] : memref<8x32xf32, #tpu.memory_space<vmem>>, vector<8x8xf32>
    tpu.vector_store %arg12[%c0_19, %c0_20], %80 {strides = array<i32>} : memref<8x32xf32, #tpu.memory_space<vmem>>, vector<8x8xf32>,
    %82 = vector.extract_strided_slice %78 {offsets = [1, 0, 0], sizes = [1, 8, 8], strides = [1, 1, 1]} : vector<4x8x8xf32> to vector<1x8x8xf32>
    %83 = vector.shape_cast %82 : vector<1x8x8xf32> to vector<8x8xf32>
    %c0_21 = arith.constant 0 : index
    %c8 = arith.constant 8 : index
    %84 = vector.load %arg12[%c0_21, %c8] : memref<8x32xf32, #tpu.memory_space<vmem>>, vector<8x8xf32>
    tpu.vector_store %arg12[%c0_21, %c8], %83 {strides = array<i32>} : memref<8x32xf32, #tpu.memory_space<vmem>>, vector<8x8xf32>,
    %85 = vector.extract_strided_slice %78 {offsets = [2, 0, 0], sizes = [1, 8, 8], strides = [1, 1, 1]} : vector<4x8x8xf32> to vector<1x8x8xf32>
    %86 = vector.shape_cast %85 : vector<1x8x8xf32> to vector<8x8xf32>
    %c0_22 = arith.constant 0 : index
    %c16 = arith.constant 16 : index
    %87 = vector.load %arg12[%c0_22, %c16] : memref<8x32xf32, #tpu.memory_space<vmem>>, vector<8x8xf32>
    tpu.vector_store %arg12[%c0_22, %c16], %86 {strides = array<i32>} : memref<8x32xf32, #tpu.memory_space<vmem>>, vector<8x8xf32>,
    %88 = vector.extract_strided_slice %78 {offsets = [3, 0, 0], sizes = [1, 8, 8], strides = [1, 1, 1]} : vector<4x8x8xf32> to vector<1x8x8xf32>
    %89 = vector.shape_cast %88 : vector<1x8x8xf32> to vector<8x8xf32>
    %c0_23 = arith.constant 0 : index
    %c24 = arith.constant 24 : index
    %90 = vector.load %arg12[%c0_23, %c24] : memref<8x32xf32, #tpu.memory_space<vmem>>, vector<8x8xf32>
    tpu.vector_store %arg12[%c0_23, %c24], %89 {strides = array<i32>} : memref<8x32xf32, #tpu.memory_space<vmem>>, vector<8x8xf32>,
    %c0_24 = arith.constant 0 : index
    %c0_25 = arith.constant 0 : index
    %91 = vector.load %arg12[%c0_24, %c0_25] : memref<8x32xf32, #tpu.memory_space<vmem>>, vector<8x32xf32>
    %92 = arith.truncf %91 : vector<8x32xf32> to vector<8x32xbf16>
    %c0_26 = arith.constant 0 : index
    %c0_27 = arith.constant 0 : index
    %93 = vector.load %arg6[%c0_26, %c0_27] : memref<32x32xbf16, #tpu.memory_space<vmem>>, vector<32x32xbf16>
    %cst_28 = arith.constant dense<0.000000e+00> : vector<8x32xf32>
    %94 = tpu.matmul %92, %93, %cst_28 {dimension_numbers = #tpu.dot_dimension_numbers<[1], [0], [0], [1], [0, 0, 1, 1], [], []>} : vector<8x32xbf16>, vector<32x32xbf16>, vector<8x32xf32> -> vector<8x32xf32>
    %95 = vector.broadcast %13 : vector<1x32xf32> to vector<8x32xf32>
    %96 = arith.addf %94, %95 : vector<8x32xf32>
    %97 = arith.addf %96, %6 : vector<8x32xf32>
    %cst_29 = arith.constant dense<0.000000e+00> : vector<8xf32>
    %98 = vector.multi_reduction <add>, %97, %cst_29 [1] : vector<8x32xf32> to vector<8xf32>
    %99 = vector.shape_cast %98 : vector<8xf32> to vector<8x1xf32>
    %cst_30 = arith.constant 3.200000e+01 : f32
    %100 = vector.broadcast %cst_30 : f32 to vector<8x1xf32>
    %101 = arith.divf %99, %100 : vector<8x1xf32>
    %102 = vector.broadcast %101 : vector<8x1xf32> to vector<8x32xf32>
    %103 = arith.subf %97, %102 : vector<8x32xf32>
    %104 = arith.mulf %103, %103 : vector<8x32xf32>
    %cst_31 = arith.constant dense<0.000000e+00> : vector<8xf32>
    %105 = vector.multi_reduction <add>, %104, %cst_31 [1] : vector<8x32xf32> to vector<8xf32>
    %106 = vector.shape_cast %105 : vector<8xf32> to vector<8x1xf32>
    %cst_32 = arith.constant 3.200000e+01 : f32
    %107 = vector.broadcast %cst_32 : f32 to vector<8x1xf32>
    %108 = arith.divf %106, %107 : vector<8x1xf32>
    %109 = vector.broadcast %101 : vector<8x1xf32> to vector<8x32xf32>
    %110 = arith.subf %97, %109 : vector<8x32xf32>
    %cst_33 = arith.constant 9.99999974E-6 : f32
    %111 = vector.broadcast %cst_33 : f32 to vector<8x1xf32>
    %112 = arith.addf %108, %111 : vector<8x1xf32>
    %113 = math.rsqrt %112 : vector<8x1xf32>
    %114 = vector.broadcast %113 : vector<8x1xf32> to vector<8x32xf32>
    %115 = arith.mulf %110, %114 : vector<8x32xf32>
    %116 = vector.broadcast %11 : vector<1x32xf32> to vector<8x32xf32>
    %117 = arith.mulf %115, %116 : vector<8x32xf32>
    %118 = vector.broadcast %12 : vector<1x32xf32> to vector<8x32xf32>
    %119 = arith.addf %117, %118 : vector<8x32xf32>
    %120 = arith.truncf %119 : vector<8x32xf32> to vector<8x32xbf16>
    %c0_34 = arith.constant 0 : index
    %c0_35 = arith.constant 0 : index
    %121 = vector.load %arg7[%c0_34, %c0_35] : memref<32x2048xbf16, #tpu.memory_space<vmem>>, vector<32x2048xbf16>
    %cst_36 = arith.constant dense<0.000000e+00> : vector<8x2048xf32>
    %122 = tpu.matmul %120, %121, %cst_36 {dimension_numbers = #tpu.dot_dimension_numbers<[1], [0], [0], [1], [0, 0, 1, 1], [], []>} : vector<8x32xbf16>, vector<32x2048xbf16>, vector<8x2048xf32> -> vector<8x2048xf32>
    %c0_37 = arith.constant 0 : index
    %c0_38 = arith.constant 0 : index
    %123 = vector.load %arg8[%c0_37, %c0_38] : memref<1x2048xf32, #tpu.memory_space<vmem>>, vector<1x2048xf32>
    %124 = vector.broadcast %123 : vector<1x2048xf32> to vector<8x2048xf32>
    %125 = arith.addf %122, %124 : vector<8x2048xf32>
    %cst_39 = arith.constant 0.000000e+00 : f32
    %126 = vector.broadcast %cst_39 : f32 to vector<8x2048xf32>
    %127 = arith.maximumf %125, %126 : vector<8x2048xf32>
    %128 = arith.truncf %127 : vector<8x2048xf32> to vector<8x2048xbf16>
    %c0_40 = arith.constant 0 : index
    %c0_41 = arith.constant 0 : index
    %129 = vector.load %arg9[%c0_40, %c0_41] : memref<2048x32xbf16, #tpu.memory_space<vmem>>, vector<2048x32xbf16>
    %cst_42 = arith.constant dense<0.000000e+00> : vector<8x32xf32>
    %130 = tpu.matmul %128, %129, %cst_42 {dimension_numbers = #tpu.dot_dimension_numbers<[1], [0], [0], [1], [0, 0, 1, 1], [], []>} : vector<8x2048xbf16>, vector<2048x32xbf16>, vector<8x32xf32> -> vector<8x32xf32>
    %131 = vector.broadcast %14 : vector<1x32xf32> to vector<8x32xf32>
    %132 = arith.addf %130, %131 : vector<8x32xf32>
    %133 = arith.addf %132, %119 : vector<8x32xf32>
    %cst_43 = arith.constant dense<0.000000e+00> : vector<8xf32>
    %134 = vector.multi_reduction <add>, %133, %cst_43 [1] : vector<8x32xf32> to vector<8xf32>
    %135 = vector.shape_cast %134 : vector<8xf32> to vector<8x1xf32>
    %cst_44 = arith.constant 3.200000e+01 : f32
    %136 = vector.broadcast %cst_44 : f32 to vector<8x1xf32>
    %137 = arith.divf %135, %136 : vector<8x1xf32>
    %138 = vector.broadcast %137 : vector<8x1xf32> to vector<8x32xf32>
    %139 = arith.subf %133, %138 : vector<8x32xf32>
    %140 = arith.mulf %139, %139 : vector<8x32xf32>
    %cst_45 = arith.constant dense<0.000000e+00> : vector<8xf32>
    %141 = vector.multi_reduction <add>, %140, %cst_45 [1] : vector<8x32xf32> to vector<8xf32>
    %142 = vector.shape_cast %141 : vector<8xf32> to vector<8x1xf32>
    %cst_46 = arith.constant 3.200000e+01 : f32
    %143 = vector.broadcast %cst_46 : f32 to vector<8x1xf32>
    %144 = arith.divf %142, %143 : vector<8x1xf32>
    %145 = vector.broadcast %137 : vector<8x1xf32> to vector<8x32xf32>
    %146 = arith.subf %133, %145 : vector<8x32xf32>
    %cst_47 = arith.constant 9.99999974E-6 : f32
    %147 = vector.broadcast %cst_47 : f32 to vector<8x1xf32>
    %148 = arith.addf %144, %147 : vector<8x1xf32>
    %149 = math.rsqrt %148 : vector<8x1xf32>
    %150 = vector.broadcast %149 : vector<8x1xf32> to vector<8x32xf32>
    %151 = arith.mulf %146, %150 : vector<8x32xf32>
    %152 = vector.broadcast %11 : vector<1x32xf32> to vector<8x32xf32>
    %153 = arith.mulf %151, %152 : vector<8x32xf32>
    %154 = vector.broadcast %12 : vector<1x32xf32> to vector<8x32xf32>
    %155 = arith.addf %153, %154 : vector<8x32xf32>
    %c0_48 = arith.constant 0 : index
    %c0_49 = arith.constant 0 : index
    %c0_50 = arith.constant 0 : index
    %156 = vector.load %arg11[%c0_48, %c0_49, %c0_50] : memref<1x8x32xf32, #tpu.memory_space<vmem>>, vector<1x8x32xf32>
    %157 = vector.shape_cast %156 : vector<1x8x32xf32> to vector<8x32xf32>
    %158 = vector.shape_cast %155 : vector<8x32xf32> to vector<1x8x32xf32>
    tpu.vector_store %arg11[%c0_48, %c0_49, %c0_50], %158 {strides = array<i32>} : memref<1x8x32xf32, #tpu.memory_space<vmem>>, vector<1x8x32xf32>,
    return
  }
  func.func @transform_0(%arg0: i32, %arg1: i32) -> (i32, i32, i32) {
    %c0_i32 = arith.constant 0 : i32
    %c0_i32_0 = arith.constant 0 : i32
    %c0_i32_1 = arith.constant 0 : i32
    return %arg0, %c0_i32, %c0_i32_0 : i32, i32, i32
  }
  func.func @transform_1(%arg0: i32, %arg1: i32) -> (i32, i32, i32) {
    %c0_i32 = arith.constant 0 : i32
    %c0_i32_0 = arith.constant 0 : i32
    %c0_i32_1 = arith.constant 0 : i32
    return %arg0, %c0_i32, %c0_i32_0 : i32, i32, i32
  }
  func.func @transform_2(%arg0: i32, %arg1: i32) -> (i32, i32) {
    %c0_i32 = arith.constant 0 : i32
    %c0_i32_0 = arith.constant 0 : i32
    %c0_i32_1 = arith.constant 0 : i32
    return %c0_i32, %c0_i32_0 : i32, i32
  }
  func.func @transform_3(%arg0: i32, %arg1: i32) -> (i32, i32) {
    %c0_i32 = arith.constant 0 : i32
    %c0_i32_0 = arith.constant 0 : i32
    %c0_i32_1 = arith.constant 0 : i32
    return %c0_i32, %c0_i32_0 : i32, i32
  }
  func.func @transform_4(%arg0: i32, %arg1: i32) -> (i32, i32) {
    %c0_i32 = arith.constant 0 : i32
    %c0_i32_0 = arith.constant 0 : i32
    %c0_i32_1 = arith.constant 0 : i32
    return %c0_i32, %c0_i32_0 : i32, i32
  }
  func.func @transform_5(%arg0: i32, %arg1: i32) -> (i32, i32) {
    %c0_i32 = arith.constant 0 : i32
    %c0_i32_0 = arith.constant 0 : i32
    %c0_i32_1 = arith.constant 0 : i32
    return %c0_i32, %c0_i32_0 : i32, i32
  }
  func.func @transform_6(%arg0: i32, %arg1: i32) -> (i32, i32) {
    %c0_i32 = arith.constant 0 : i32
    %c0_i32_0 = arith.constant 0 : i32
    %c0_i32_1 = arith.constant 0 : i32
    return %c0_i32, %c0_i32_0 : i32, i32
  }
  func.func @transform_7(%arg0: i32, %arg1: i32) -> (i32, i32) {
    %c0_i32 = arith.constant 0 : i32
    %c0_i32_0 = arith.constant 0 : i32
    %c0_i32_1 = arith.constant 0 : i32
    return %c0_i32, %c0_i32_0 : i32, i32
  }
  func.func @transform_8(%arg0: i32, %arg1: i32) -> (i32, i32) {
    %c0_i32 = arith.constant 0 : i32
    %c0_i32_0 = arith.constant 0 : i32
    %c0_i32_1 = arith.constant 0 : i32
    return %c0_i32, %c0_i32_0 : i32, i32
  }
  func.func @transform_9(%arg0: i32, %arg1: i32) -> (i32, i32, i32) {
    %c0_i32 = arith.constant 0 : i32
    %c0_i32_0 = arith.constant 0 : i32
    return %arg0, %arg1, %c0_i32 : i32, i32, i32
  }
}

module attributes {stable_mosaic.version = 11 : i64} {
  func.func @_encoder_layer_kernel(%arg0: i32, %arg1: i32, %arg2: memref<1x8x32xf32, #tpu.memory_space<vmem>>, %arg3: memref<1x1x8xbf16, #tpu.memory_space<vmem>>, %arg4: memref<32x96xbf16, #tpu.memory_space<vmem>>, %arg5: memref<1x96xf32, #tpu.memory_space<vmem>>, %arg6: memref<32x32xbf16, #tpu.memory_space<vmem>>, %arg7: memref<32x2048xbf16, #tpu.memory_space<vmem>>, %arg8: memref<1x2048xf32, #tpu.memory_space<vmem>>, %arg9: memref<2048x32xbf16, #tpu.memory_space<vmem>>, %arg10: memref<4x32xf32, #tpu.memory_space<vmem>>, %arg11: memref<1x8x32xf32, #tpu.memory_space<vmem>>, %arg12: memref<8x32xf32, #tpu.memory_space<vmem>>) attributes {dimension_semantics = [#tpu.dimension_semantics<parallel>, #tpu.dimension_semantics<parallel>], iteration_bounds = array<i64: 2, 1>, scalar_prefetch = 0 : i64, scratch_operands = 1 : i64, tpu.core_type = #tpu.core_type<tc>, window_params = [{transform_indices = @transform_0, window_bounds = array<i64: 1, 8, 32>}, {transform_indices = @transform_1, window_bounds = array<i64: 1, 1, 8>}, {pipeline_mode = #tpu.pipeline_mode<synchronous>, transform_indices = @transform_2, window_bounds = array<i64: 32, 96>}, {pipeline_mode = #tpu.pipeline_mode<synchronous>, transform_indices = @transform_3, window_bounds = array<i64: 1, 96>}, {pipeline_mode = #tpu.pipeline_mode<synchronous>, transform_indices = @transform_4, window_bounds = array<i64: 32, 32>}, {pipeline_mode = #tpu.pipeline_mode<synchronous>, transform_indices = @transform_5, window_bounds = array<i64: 32, 2048>}, {pipeline_mode = #tpu.pipeline_mode<synchronous>, transform_indices = @transform_6, window_bounds = array<i64: 1, 2048>}, {pipeline_mode = #tpu.pipeline_mode<synchronous>, transform_indices = @transform_7, window_bounds = array<i64: 2048, 32>}, {pipeline_mode = #tpu.pipeline_mode<synchronous>, transform_indices = @transform_8, window_bounds = array<i64: 4, 32>}, {transform_indices = @transform_9, window_bounds = array<i64: 1, 8, 32>}]} {
    %c8_i32 = arith.constant 8 : i32
    %0 = arith.muli %arg1, %c8_i32 : i32
    %1 = tpu.assume_multiple %0, 8 : i32
    %c0 = arith.constant 0 : index
    %c0_0 = arith.constant 0 : index
    %c0_1 = arith.constant 0 : index
    %2 = vector.load %arg2[%c0, %c0_0, %c0_1] : memref<1x8x32xf32, #tpu.memory_space<vmem>>, vector<1x8x32xf32>
    %3 = vector.shape_cast %2 : vector<1x8x32xf32> to vector<8x32xf32>
    %c0_2 = arith.constant 0 : index
    %4 = arith.index_cast %1 : i32 to index
    %c0_3 = arith.constant 0 : index
    %5 = vector.load %arg2[%c0_2, %4, %c0_3] : memref<1x8x32xf32, #tpu.memory_space<vmem>>, vector<1x8x32xf32>
    %6 = vector.shape_cast %5 : vector<1x8x32xf32> to vector<8x32xf32>
    %c0_4 = arith.constant 0 : index
    %c0_5 = arith.constant 0 : index
    %c0_6 = arith.constant 0 : index
    %7 = vector.load %arg3[%c0_4, %c0_5, %c0_6] : memref<1x1x8xbf16, #tpu.memory_space<vmem>>, vector<1x1x8xbf16>
    %8 = vector.shape_cast %7 : vector<1x1x8xbf16> to vector<1x8xbf16>
    %9 = arith.extf %8 : vector<1x8xbf16> to vector<1x8xf32>
    %c0_7 = arith.constant 0 : index
    %c0_8 = arith.constant 0 : index
    %10 = vector.load %arg10[%c0_7, %c0_8] : memref<4x32xf32, #tpu.memory_space<vmem>>, vector<4x32xf32>
    %11 = vector.extract_strided_slice %10 {offsets = [0, 0], sizes = [1, 32], strides = [1, 1]} : vector<4x32xf32> to vector<1x32xf32>
    %12 = vector.extract_strided_slice %10 {offsets = [1, 0], sizes = [1, 32], strides = [1, 1]} : vector<4x32xf32> to vector<1x32xf32>
    %13 = vector.extract_strided_slice %10 {offsets = [2, 0], sizes = [1, 32], strides = [1, 1]} : vector<4x32xf32> to vector<1x32xf32>
    %14 = vector.extract_strided_slice %10 {offsets = [3, 0], sizes = [1, 32], strides = [1, 1]} : vector<4x32xf32> to vector<1x32xf32>
    %c0_9 = arith.constant 0 : index
    %c0_10 = arith.constant 0 : index
    %15 = vector.load %arg4[%c0_9, %c0_10] : memref<32x96xbf16, #tpu.memory_space<vmem>>, vector<32x96xbf16>
    %c0_11 = arith.constant 0 : index
    %c0_12 = arith.constant 0 : index
    %16 = vector.load %arg5[%c0_11, %c0_12] : memref<1x96xf32, #tpu.memory_space<vmem>>, vector<1x96xf32>
    %17 = arith.truncf %6 : vector<8x32xf32> to vector<8x32xbf16>
    %18 = vector.extract_strided_slice %15 {offsets = [0, 0], sizes = [32, 32], strides = [1, 1]} : vector<32x96xbf16> to vector<32x32xbf16>
    %cst = arith.constant dense<0.000000e+00> : vector<8x32xf32>
    %19 = tpu.matmul %17, %18, %cst {dimension_numbers = #tpu.dot_dimension_numbers<[1], [0], [0], [1], [0, 0, 1, 1], [], []>} : vector<8x32xbf16>, vector<32x32xbf16>, vector<8x32xf32> -> vector<8x32xf32>
    %20 = vector.extract_strided_slice %16 {offsets = [0, 0], sizes = [1, 32], strides = [1, 1]} : vector<1x96xf32> to vector<1x32xf32>
    %21 = vector.broadcast %20 : vector<1x32xf32> to vector<8x32xf32>
    %22 = arith.addf %19, %21 : vector<8x32xf32>
    %23 = arith.truncf %3 : vector<8x32xf32> to vector<8x32xbf16>
    %24 = vector.extract_strided_slice %15 {offsets = [0, 32], sizes = [32, 64], strides = [1, 1]} : vector<32x96xbf16> to vector<32x64xbf16>
    %cst_13 = arith.constant dense<0.000000e+00> : vector<8x64xf32>
    %25 = tpu.matmul %23, %24, %cst_13 {dimension_numbers = #tpu.dot_dimension_numbers<[1], [0], [0], [1], [0, 0, 1, 1], [], []>} : vector<8x32xbf16>, vector<32x64xbf16>, vector<8x64xf32> -> vector<8x64xf32>
    %26 = vector.extract_strided_slice %16 {offsets = [0, 32], sizes = [1, 64], strides = [1, 1]} : vector<1x96xf32> to vector<1x64xf32>
    %27 = vector.broadcast %26 : vector<1x64xf32> to vector<8x64xf32>
    %28 = arith.addf %25, %27 : vector<8x64xf32>
    %29 = vector.extract_strided_slice %28 {offsets = [0, 0], sizes = [8, 32], strides = [1, 1]} : vector<8x64xf32> to vector<8x32xf32>
    %30 = vector.extract_strided_slice %28 {offsets = [0, 32], sizes = [8, 32], strides = [1, 1]} : vector<8x64xf32> to vector<8x32xf32>
    %31 = arith.truncf %22 : vector<8x32xf32> to vector<8x32xbf16>
    %32 = vector.extract_strided_slice %31 {offsets = [0, 0], sizes = [8, 8], strides = [1, 1]} : vector<8x32xbf16> to vector<8x8xbf16>
    %33 = vector.extract_strided_slice %31 {offsets = [0, 8], sizes = [8, 8], strides = [1, 1]} : vector<8x32xbf16> to vector<8x8xbf16>
    %34 = vector.extract_strided_slice %31 {offsets = [0, 16], sizes = [8, 8], strides = [1, 1]} : vector<8x32xbf16> to vector<8x8xbf16>
    %35 = vector.extract_strided_slice %31 {offsets = [0, 24], sizes = [8, 8], strides = [1, 1]} : vector<8x32xbf16> to vector<8x8xbf16>
    %36 = vector.shape_cast %32 : vector<8x8xbf16> to vector<1x8x8xbf16>
    %37 = vector.shape_cast %33 : vector<8x8xbf16> to vector<1x8x8xbf16>
    %38 = vector.shape_cast %34 : vector<8x8xbf16> to vector<1x8x8xbf16>
    %39 = vector.shape_cast %35 : vector<8x8xbf16> to vector<1x8x8xbf16>
    %40 = tpu.concatenate %36, %37, %38, %39 in 0 : vector<1x8x8xbf16>, vector<1x8x8xbf16>, vector<1x8x8xbf16>, vector<1x8x8xbf16> -> vector<4x8x8xbf16>
    %41 = arith.truncf %29 : vector<8x32xf32> to vector<8x32xbf16>
    %42 = vector.extract_strided_slice %41 {offsets = [0, 0], sizes = [8, 8], strides = [1, 1]} : vector<8x32xbf16> to vector<8x8xbf16>
    %43 = vector.extract_strided_slice %41 {offsets = [0, 8], sizes = [8, 8], strides = [1, 1]} : vector<8x32xbf16> to vector<8x8xbf16>
    %44 = vector.extract_strided_slice %41 {offsets = [0, 16], sizes = [8, 8], strides = [1, 1]} : vector<8x32xbf16> to vector<8x8xbf16>
    %45 = vector.extract_strided_slice %41 {offsets = [0, 24], sizes = [8, 8], strides = [1, 1]} : vector<8x32xbf16> to vector<8x8xbf16>
    %46 = vector.shape_cast %42 : vector<8x8xbf16> to vector<1x8x8xbf16>
    %47 = vector.shape_cast %43 : vector<8x8xbf16> to vector<1x8x8xbf16>
    %48 = vector.shape_cast %44 : vector<8x8xbf16> to vector<1x8x8xbf16>
    %49 = vector.shape_cast %45 : vector<8x8xbf16> to vector<1x8x8xbf16>
    %50 = tpu.concatenate %46, %47, %48, %49 in 0 : vector<1x8x8xbf16>, vector<1x8x8xbf16>, vector<1x8x8xbf16>, vector<1x8x8xbf16> -> vector<4x8x8xbf16>
    %51 = arith.truncf %30 : vector<8x32xf32> to vector<8x32xbf16>
    %52 = vector.extract_strided_slice %51 {offsets = [0, 0], sizes = [8, 8], strides = [1, 1]} : vector<8x32xbf16> to vector<8x8xbf16>
    %53 = vector.extract_strided_slice %51 {offsets = [0, 8], sizes = [8, 8], strides = [1, 1]} : vector<8x32xbf16> to vector<8x8xbf16>
    %54 = vector.extract_strided_slice %51 {offsets = [0, 16], sizes = [8, 8], strides = [1, 1]} : vector<8x32xbf16> to vector<8x8xbf16>
    %55 = vector.extract_strided_slice %51 {offsets = [0, 24], sizes = [8, 8], strides = [1, 1]} : vector<8x32xbf16> to vector<8x8xbf16>
    %56 = vector.shape_cast %52 : vector<8x8xbf16> to vector<1x8x8xbf16>
    %57 = vector.shape_cast %53 : vector<8x8xbf16> to vector<1x8x8xbf16>
    %58 = vector.shape_cast %54 : vector<8x8xbf16> to vector<1x8x8xbf16>
    %59 = vector.shape_cast %55 : vector<8x8xbf16> to vector<1x8x8xbf16>
    %60 = tpu.concatenate %56, %57, %58, %59 in 0 : vector<1x8x8xbf16>, vector<1x8x8xbf16>, vector<1x8x8xbf16>, vector<1x8x8xbf16> -> vector<4x8x8xbf16>
    "tpu.trace_start"() <{level = 10 : i32, message = "hqd,hkd->hqk"}> : () -> ()
    %cst_14 = arith.constant dense<0.000000e+00> : vector<4x8x8xf32>
    %61 = tpu.matmul %40, %50, %cst_14 {dimension_numbers = #tpu.dot_dimension_numbers<[2], [2], [1], [1], [0, 0, 0, 1, 1, 1], [0], [0]>} : vector<4x8x8xbf16>, vector<4x8x8xbf16>, vector<4x8x8xf32> -> vector<4x8x8xf32>
    "tpu.trace_stop"() : () -> ()
    %cst_15 = arith.constant 0.353553385 : f32
    %62 = vector.broadcast %cst_15 : f32 to vector<4x8x8xf32>
    %63 = arith.mulf %61, %62 : vector<4x8x8xf32>
    %64 = vector.shape_cast %9 : vector<1x8xf32> to vector<1x1x8xf32>
    %65 = vector.broadcast %64 : vector<1x1x8xf32> to vector<4x8x8xf32>
    %66 = arith.addf %63, %65 : vector<4x8x8xf32>
    %cst_16 = arith.constant dense<0xFF800000> : vector<4x8xf32>
    %67 = vector.multi_reduction <maximumf>, %66, %cst_16 [2] : vector<4x8x8xf32> to vector<4x8xf32>
    %68 = vector.shape_cast %67 : vector<4x8xf32> to vector<4x8x1xf32>
    %69 = vector.broadcast %68 : vector<4x8x1xf32> to vector<4x8x8xf32>
    %70 = arith.subf %66, %69 : vector<4x8x8xf32>
    %71 = math.exp %70 : vector<4x8x8xf32>
    %cst_17 = arith.constant dense<0.000000e+00> : vector<4x8xf32>
    %72 = vector.multi_reduction <add>, %71, %cst_17 [2] : vector<4x8x8xf32> to vector<4x8xf32>
    %73 = vector.shape_cast %72 : vector<4x8xf32> to vector<4x8x1xf32>
    %74 = tpu.reciprocal %73 {approx = true} : vector<4x8x1xf32> -> vector<4x8x1xf32>
    %75 = vector.broadcast %74 : vector<4x8x1xf32> to vector<4x8x8xf32>
    %76 = arith.mulf %71, %75 : vector<4x8x8xf32>
    %77 = arith.truncf %76 : vector<4x8x8xf32> to vector<4x8x8xbf16>
    "tpu.trace_start"() <{level = 10 : i32, message = "hqk,hkd->hqd"}> : () -> ()
    %cst_18 = arith.constant dense<0.000000e+00> : vector<4x8x8xf32>
    %78 = tpu.matmul %77, %60, %cst_18 {dimension_numbers = #tpu.dot_dimension_numbers<[2], [1], [1], [2], [0, 0, 0, 1, 1, 2], [0], [0]>} : vector<4x8x8xbf16>, vector<4x8x8xbf16>, vector<4x8x8xf32> -> vector<4x8x8xf32>
    "tpu.trace_stop"() : () -> ()
    %79 = vector.extract_strided_slice %78 {offsets = [0, 0, 0], sizes = [1, 8, 8], strides = [1, 1, 1]} : vector<4x8x8xf32> to vector<1x8x8xf32>
    %80 = vector.shape_cast %79 : vector<1x8x8xf32> to vector<8x8xf32>
    %c0_19 = arith.constant 0 : index
    %c0_20 = arith.constant 0 : index
    %81 = vector.load %arg12[%c0_19, %c0_20] : memref<8x32xf32, #tpu.memory_space<vmem>>, vector<8x8xf32>
    tpu.vector_store %arg12[%c0_19, %c0_20], %80 {strides = array<i32>} : memref<8x32xf32, #tpu.memory_space<vmem>>, vector<8x8xf32>,
    %82 = vector.extract_strided_slice %78 {offsets = [1, 0, 0], sizes = [1, 8, 8], strides = [1, 1, 1]} : vector<4x8x8xf32> to vector<1x8x8xf32>
    %83 = vector.shape_cast %82 : vector<1x8x8xf32> to vector<8x8xf32>
    %c0_21 = arith.constant 0 : index
    %c8 = arith.constant 8 : index
    %84 = vector.load %arg12[%c0_21, %c8] : memref<8x32xf32, #tpu.memory_space<vmem>>, vector<8x8xf32>
    tpu.vector_store %arg12[%c0_21, %c8], %83 {strides = array<i32>} : memref<8x32xf32, #tpu.memory_space<vmem>>, vector<8x8xf32>,
    %85 = vector.extract_strided_slice %78 {offsets = [2, 0, 0], sizes = [1, 8, 8], strides = [1, 1, 1]} : vector<4x8x8xf32> to vector<1x8x8xf32>
    %86 = vector.shape_cast %85 : vector<1x8x8xf32> to vector<8x8xf32>
    %c0_22 = arith.constant 0 : index
    %c16 = arith.constant 16 : index
    %87 = vector.load %arg12[%c0_22, %c16] : memref<8x32xf32, #tpu.memory_space<vmem>>, vector<8x8xf32>
    tpu.vector_store %arg12[%c0_22, %c16], %86 {strides = array<i32>} : memref<8x32xf32, #tpu.memory_space<vmem>>, vector<8x8xf32>,
    %88 = vector.extract_strided_slice %78 {offsets = [3, 0, 0], sizes = [1, 8, 8], strides = [1, 1, 1]} : vector<4x8x8xf32> to vector<1x8x8xf32>
    %89 = vector.shape_cast %88 : vector<1x8x8xf32> to vector<8x8xf32>
    %c0_23 = arith.constant 0 : index
    %c24 = arith.constant 24 : index
    %90 = vector.load %arg12[%c0_23, %c24] : memref<8x32xf32, #tpu.memory_space<vmem>>, vector<8x8xf32>
    tpu.vector_store %arg12[%c0_23, %c24], %89 {strides = array<i32>} : memref<8x32xf32, #tpu.memory_space<vmem>>, vector<8x8xf32>,
    %c0_24 = arith.constant 0 : index
    %c0_25 = arith.constant 0 : index
    %91 = vector.load %arg12[%c0_24, %c0_25] : memref<8x32xf32, #tpu.memory_space<vmem>>, vector<8x32xf32>
    %92 = arith.truncf %91 : vector<8x32xf32> to vector<8x32xbf16>
    %c0_26 = arith.constant 0 : index
    %c0_27 = arith.constant 0 : index
    %93 = vector.load %arg6[%c0_26, %c0_27] : memref<32x32xbf16, #tpu.memory_space<vmem>>, vector<32x32xbf16>
    %cst_28 = arith.constant dense<0.000000e+00> : vector<8x32xf32>
    %94 = tpu.matmul %92, %93, %cst_28 {dimension_numbers = #tpu.dot_dimension_numbers<[1], [0], [0], [1], [0, 0, 1, 1], [], []>} : vector<8x32xbf16>, vector<32x32xbf16>, vector<8x32xf32> -> vector<8x32xf32>
    %95 = vector.broadcast %13 : vector<1x32xf32> to vector<8x32xf32>
    %96 = arith.addf %94, %95 : vector<8x32xf32>
    %97 = arith.addf %96, %6 : vector<8x32xf32>
    %cst_29 = arith.constant dense<0.000000e+00> : vector<8xf32>
    %98 = vector.multi_reduction <add>, %97, %cst_29 [1] : vector<8x32xf32> to vector<8xf32>
    %99 = vector.shape_cast %98 : vector<8xf32> to vector<8x1xf32>
    %cst_30 = arith.constant 3.200000e+01 : f32
    %100 = vector.broadcast %cst_30 : f32 to vector<8x1xf32>
    %101 = arith.divf %99, %100 : vector<8x1xf32>
    %102 = vector.broadcast %101 : vector<8x1xf32> to vector<8x32xf32>
    %103 = arith.subf %97, %102 : vector<8x32xf32>
    %104 = arith.mulf %103, %103 : vector<8x32xf32>
    %cst_31 = arith.constant dense<0.000000e+00> : vector<8xf32>
    %105 = vector.multi_reduction <add>, %104, %cst_31 [1] : vector<8x32xf32> to vector<8xf32>
    %106 = vector.shape_cast %105 : vector<8xf32> to vector<8x1xf32>
    %cst_32 = arith.constant 3.200000e+01 : f32
    %107 = vector.broadcast %cst_32 : f32 to vector<8x1xf32>
    %108 = arith.divf %106, %107 : vector<8x1xf32>
    %109 = vector.broadcast %101 : vector<8x1xf32> to vector<8x32xf32>
    %110 = arith.subf %97, %109 : vector<8x32xf32>
    %cst_33 = arith.constant 9.99999974E-6 : f32
    %111 = vector.broadcast %cst_33 : f32 to vector<8x1xf32>
    %112 = arith.addf %108, %111 : vector<8x1xf32>
    %113 = math.rsqrt %112 : vector<8x1xf32>
    %114 = vector.broadcast %113 : vector<8x1xf32> to vector<8x32xf32>
    %115 = arith.mulf %110, %114 : vector<8x32xf32>
    %116 = vector.broadcast %11 : vector<1x32xf32> to vector<8x32xf32>
    %117 = arith.mulf %115, %116 : vector<8x32xf32>
    %118 = vector.broadcast %12 : vector<1x32xf32> to vector<8x32xf32>
    %119 = arith.addf %117, %118 : vector<8x32xf32>
    %120 = arith.truncf %119 : vector<8x32xf32> to vector<8x32xbf16>
    %c0_34 = arith.constant 0 : index
    %c0_35 = arith.constant 0 : index
    %121 = vector.load %arg7[%c0_34, %c0_35] : memref<32x2048xbf16, #tpu.memory_space<vmem>>, vector<32x2048xbf16>
    %cst_36 = arith.constant dense<0.000000e+00> : vector<8x2048xf32>
    %122 = tpu.matmul %120, %121, %cst_36 {dimension_numbers = #tpu.dot_dimension_numbers<[1], [0], [0], [1], [0, 0, 1, 1], [], []>} : vector<8x32xbf16>, vector<32x2048xbf16>, vector<8x2048xf32> -> vector<8x2048xf32>
    %c0_37 = arith.constant 0 : index
    %c0_38 = arith.constant 0 : index
    %123 = vector.load %arg8[%c0_37, %c0_38] : memref<1x2048xf32, #tpu.memory_space<vmem>>, vector<1x2048xf32>
    %124 = vector.broadcast %123 : vector<1x2048xf32> to vector<8x2048xf32>
    %125 = arith.addf %122, %124 : vector<8x2048xf32>
    %cst_39 = arith.constant 0.000000e+00 : f32
    %126 = vector.broadcast %cst_39 : f32 to vector<8x2048xf32>
    %127 = arith.maximumf %125, %126 : vector<8x2048xf32>
    %128 = arith.truncf %127 : vector<8x2048xf32> to vector<8x2048xbf16>
    %c0_40 = arith.constant 0 : index
    %c0_41 = arith.constant 0 : index
    %129 = vector.load %arg9[%c0_40, %c0_41] : memref<2048x32xbf16, #tpu.memory_space<vmem>>, vector<2048x32xbf16>
    %cst_42 = arith.constant dense<0.000000e+00> : vector<8x32xf32>
    %130 = tpu.matmul %128, %129, %cst_42 {dimension_numbers = #tpu.dot_dimension_numbers<[1], [0], [0], [1], [0, 0, 1, 1], [], []>} : vector<8x2048xbf16>, vector<2048x32xbf16>, vector<8x32xf32> -> vector<8x32xf32>
    %131 = vector.broadcast %14 : vector<1x32xf32> to vector<8x32xf32>
    %132 = arith.addf %130, %131 : vector<8x32xf32>
    %133 = arith.addf %132, %119 : vector<8x32xf32>
    %cst_43 = arith.constant dense<0.000000e+00> : vector<8xf32>
    %134 = vector.multi_reduction <add>, %133, %cst_43 [1] : vector<8x32xf32> to vector<8xf32>
    %135 = vector.shape_cast %134 : vector<8xf32> to vector<8x1xf32>
    %cst_44 = arith.constant 3.200000e+01 : f32
    %136 = vector.broadcast %cst_44 : f32 to vector<8x1xf32>
    %137 = arith.divf %135, %136 : vector<8x1xf32>
    %138 = vector.broadcast %137 : vector<8x1xf32> to vector<8x32xf32>
    %139 = arith.subf %133, %138 : vector<8x32xf32>
    %140 = arith.mulf %139, %139 : vector<8x32xf32>
    %cst_45 = arith.constant dense<0.000000e+00> : vector<8xf32>
    %141 = vector.multi_reduction <add>, %140, %cst_45 [1] : vector<8x32xf32> to vector<8xf32>
    %142 = vector.shape_cast %141 : vector<8xf32> to vector<8x1xf32>
    %cst_46 = arith.constant 3.200000e+01 : f32
    %143 = vector.broadcast %cst_46 : f32 to vector<8x1xf32>
    %144 = arith.divf %142, %143 : vector<8x1xf32>
    %145 = vector.broadcast %137 : vector<8x1xf32> to vector<8x32xf32>
    %146 = arith.subf %133, %145 : vector<8x32xf32>
    %cst_47 = arith.constant 9.99999974E-6 : f32
    %147 = vector.broadcast %cst_47 : f32 to vector<8x1xf32>
    %148 = arith.addf %144, %147 : vector<8x1xf32>
    %149 = math.rsqrt %148 : vector<8x1xf32>
    %150 = vector.broadcast %149 : vector<8x1xf32> to vector<8x32xf32>
    %151 = arith.mulf %146, %150 : vector<8x32xf32>
    %152 = vector.broadcast %11 : vector<1x32xf32> to vector<8x32xf32>
    %153 = arith.mulf %151, %152 : vector<8x32xf32>
    %154 = vector.broadcast %12 : vector<1x32xf32> to vector<8x32xf32>
    %155 = arith.addf %153, %154 : vector<8x32xf32>
    %c0_48 = arith.constant 0 : index
    %c0_49 = arith.constant 0 : index
    %c0_50 = arith.constant 0 : index
    %156 = vector.load %arg11[%c0_48, %c0_49, %c0_50] : memref<1x8x32xf32, #tpu.memory_space<vmem>>, vector<1x8x32xf32>
    %157 = vector.shape_cast %156 : vector<1x8x32xf32> to vector<8x32xf32>
    %158 = vector.shape_cast %155 : vector<8x32xf32> to vector<1x8x32xf32>
    tpu.vector_store %arg11[%c0_48, %c0_49, %c0_50], %158 {strides = array<i32>} : memref<1x8x32xf32, #tpu.memory_space<vmem>>, vector<1x8x32xf32>,
    return
  }
  func.func @transform_0(%arg0: i32, %arg1: i32) -> (i32, i32, i32) {
    %c0_i32 = arith.constant 0 : i32
    %c0_i32_0 = arith.constant 0 : i32
    %c0_i32_1 = arith.constant 0 : i32
    return %arg0, %c0_i32, %c0_i32_0 : i32, i32, i32
  }
  func.func @transform_1(%arg0: i32, %arg1: i32) -> (i32, i32, i32) {
    %c0_i32 = arith.constant 0 : i32
    %c0_i32_0 = arith.constant 0 : i32
    %c0_i32_1 = arith.constant 0 : i32
    return %arg0, %c0_i32, %c0_i32_0 : i32, i32, i32
  }
  func.func @transform_2(%arg0: i32, %arg1: i32) -> (i32, i32) {
    %c0_i32 = arith.constant 0 : i32
    %c0_i32_0 = arith.constant 0 : i32
    %c0_i32_1 = arith.constant 0 : i32
    return %c0_i32, %c0_i32_0 : i32, i32
  }
  func.func @transform_3(%arg0: i32, %arg1: i32) -> (i32, i32) {
    %c0_i32 = arith.constant 0 : i32
    %c0_i32_0 = arith.constant 0 : i32
    %c0_i32_1 = arith.constant 0 : i32
    return %c0_i32, %c0_i32_0 : i32, i32
  }
  func.func @transform_4(%arg0: i32, %arg1: i32) -> (i32, i32) {
    %c0_i32 = arith.constant 0 : i32
    %c0_i32_0 = arith.constant 0 : i32
    %c0_i32_1 = arith.constant 0 : i32
    return %c0_i32, %c0_i32_0 : i32, i32
  }
  func.func @transform_5(%arg0: i32, %arg1: i32) -> (i32, i32) {
    %c0_i32 = arith.constant 0 : i32
    %c0_i32_0 = arith.constant 0 : i32
    %c0_i32_1 = arith.constant 0 : i32
    return %c0_i32, %c0_i32_0 : i32, i32
  }
  func.func @transform_6(%arg0: i32, %arg1: i32) -> (i32, i32) {
    %c0_i32 = arith.constant 0 : i32
    %c0_i32_0 = arith.constant 0 : i32
    %c0_i32_1 = arith.constant 0 : i32
    return %c0_i32, %c0_i32_0 : i32, i32
  }
  func.func @transform_7(%arg0: i32, %arg1: i32) -> (i32, i32) {
    %c0_i32 = arith.constant 0 : i32
    %c0_i32_0 = arith.constant 0 : i32
    %c0_i32_1 = arith.constant 0 : i32
    return %c0_i32, %c0_i32_0 : i32, i32
  }
  func.func @transform_8(%arg0: i32, %arg1: i32) -> (i32, i32) {
    %c0_i32 = arith.constant 0 : i32
    %c0_i32_0 = arith.constant 0 : i32
    %c0_i32_1 = arith.constant 0 : i32
    return %c0_i32, %c0_i32_0 : i32, i32
  }
  func.func @transform_9(%arg0: i32, %arg1: i32) -> (i32, i32, i32) {
    %c0_i32 = arith.constant 0 : i32
    %c0_i32_0 = arith.constant 0 : i32
    return %arg0, %arg1, %c0_i32 : i32, i32, i32
  }
}

</mosaic_0001>

<llo_original>
// kernel: tpu_custom_call.1
$region0: #{tpu_custom_call.1}
  #allocation0 [shape = 'u32[]', space=smem, size = 0x4, offset = 0x4, fixed_abs, tag = 'smem constant byte address 0x4 - core index']
  #allocation1 [shape = 'u32[144,128]{1,0:T(1,128)}', space=vmem, size = 0x12000, scoped, tag = 'internal scratch']
  #allocation2 [shape = 'f32[8,32]{1,0:T(8,128)}', space=vmem, size = 0x1000, scoped, tag = 'scratch operand']
  %s0 = inlined_call_operand.vmem [shape: f32[2,8,32], index: 0, kind: input, shape index: {}]
  %s1 = inlined_call_operand.vmem [shape: bf16[2,1,8], index: 1, kind: input, shape index: {}]
  %s2 = inlined_call_operand.vmem [shape: bf16[32,96], index: 2, kind: input, shape index: {}]
  %s3 = inlined_call_operand.vmem [shape: f32[1,96], index: 3, kind: input, shape index: {}]
  %s4 = inlined_call_operand.vmem [shape: bf16[32,32], index: 4, kind: input, shape index: {}]
  %s5 = inlined_call_operand.vmem [shape: bf16[32,2048], index: 5, kind: input, shape index: {}]
  %s6 = inlined_call_operand.vmem [shape: f32[1,2048], index: 6, kind: input, shape index: {}]
  %s7 = inlined_call_operand.vmem [shape: bf16[2048,32], index: 7, kind: input, shape index: {}]
  %s8 = inlined_call_operand.vmem [shape: f32[4,32], index: 8, kind: input, shape index: {}]
  %s9 = inlined_call_operand.hbm [shape: f32[2,8,32], index: 9, kind: output, shape index: {}]
  %s10 = sld [smem:[#allocation0]]
  $region69: #{tpu_custom_call.1} parent=0
    _
  %s12 = ssub.s32 1, %s10
  %s13 = scalar_select 0, %s12, %s10
  $region1: #{tpu_custom_call.1} parent=0
    #allocation3 [shape = 'u8[8192]{0}', space=vmem, size = 0x2000, scoped, tag = 'output window, operand 0']
    #allocation4 [shape = 's32[2]{0}', space=sflag, size = 0x8, scoped, tag = 'scoped memory for tpu_custom_call.1']
    %14 = vsyncpa [#allocation4], 0
    %s15 = scalar_lea.sflag [#allocation4], 1
    %16 = vsyncpa %s15, 0
    loop: start=0, step=1, limit=4
    $region2: #{tpu_custom_call.1} parent=1 // loop_pre_header
      _
    $region3: #{tpu_custom_call.1} parent=1 // loop_header
      %s18 = sphi 0, %s22
      %p19 = scmp.ge.s32.totalorder %s18, 4
      %s25 = sphi 0, %s37
      %s26 = sphi 0, %s33
      %s27 = sphi 0, %s25
      %s28 = sphi 0, %s26
      %s29 = sphi 0, %s27
      %s30 = sphi 0, %s28
      %s40 = sphi 0, %s42
      %s43 = sphi 0, %s40
      %s44 = sphi 0, %s43
      %s60 = sphi 0, %s44
      %s66 = sphi 0, %s68
      %s69 = sphi 0, %s66
      %s70 = sphi 0, %s69
      %s86 = sphi 0, %s70
      %s90 = sphi 0, %s90
      %s92 = sphi 0, %s90
      %s93 = sphi 0, %s92
      %s107 = sphi 0, %s93
      %s111 = sphi 0, %s111
      %s113 = sphi 0, %s111
      %s114 = sphi 0, %s113
      %s128 = sphi 0, %s114
      %s132 = sphi 0, %s132
      %s134 = sphi 0, %s132
      %s135 = sphi 0, %s134
      %s149 = sphi 0, %s135
      %s153 = sphi 0, %s153
      %s155 = sphi 0, %s153
      %s156 = sphi 0, %s155
      %s170 = sphi 0, %s156
      %s174 = sphi 0, %s174
      %s176 = sphi 0, %s174
      %s177 = sphi 0, %s176
      %s191 = sphi 0, %s177
      %s195 = sphi 0, %s195
      %s197 = sphi 0, %s195
      %s198 = sphi 0, %s197
      %s212 = sphi 0, %s198
      %s216 = sphi 0, %s216
      %s218 = sphi 0, %s216
      %s219 = sphi 0, %s218
      %s233 = sphi 0, %s219
      %s241 = sphi 0, %s243
      %s244 = sphi 0, %s241
      %s245 = sphi 0, %s244
      %s261 = sphi 0, %s245
    $region4: #{tpu_custom_call.1} parent=1 // loop_header_branch
      %21 = sbr.rel (%p19) target = $region8
    $region5: #{tpu_custom_call.1} parent=1 // loop_body
      %s23 = ssub.s32 %s18, 1
      %s24 = ssub.s32 %s18, 2
      %s31 = sadd.s32 1, %s26
      %p32 = scmp.ge.s32.totalorder %s31, 1
      %s33 = scalar_select %p32, 0, %s31
      %s34 = sadd.s32 1, %s25
      %s35 = scalar_select %p32, %s34, %s25
      %p36 = scmp.ge.s32.totalorder %s35, 2
      %s37 = scalar_select %p36, 0, %s35
      %s38 = ssub.s32 %s25, %s37
      %p39 = scmp.eq.s32.totalorder %s38, 0
      %s41 = sadd.s32 %s40, 1
      %s42 = scalar_select %p39, %s40, %s41
      %p45 = pneg %p39
      %p46 = scmp.eq.s32.totalorder %s18, 1
      %p47 = por %p45, %p46
      %p48 = scmp.ne.s32.totalorder %s40, %s43
      %p49 = scmp.eq.s32.totalorder %s18, 0
      %p50 = por %p48, %p49
      %p51 = scmp.ne.s32.totalorder %s40, %s43
      %p52 = scmp.eq.s32.totalorder %s23, 1
      %p53 = por %p51, %p52
      %p54 = scmp.ne.s32.totalorder %s43, %s44
      %p55 = scmp.eq.s32.totalorder %s23, 0
      %p56 = por %p54, %p55
      %p57 = scmp.ne.s32.totalorder %s43, %s44
      %p58 = scmp.eq.s32.totalorder %s24, 1
      %p59 = por %p57, %p58
      %p61 = scmp.ne.s32.totalorder %s44, %s60
      %p62 = scmp.eq.s32.totalorder %s24, 0
      %p63 = por %p61, %p62
      %s64 = ssub.s32 %s25, %s37
      %p65 = scmp.eq.s32.totalorder %s64, 0
      %s67 = sadd.s32 %s66, 1
      %s68 = scalar_select %p65, %s66, %s67
      %p71 = pneg %p65
      %p72 = scmp.eq.s32.totalorder %s18, 1
      %p73 = por %p71, %p72
      %p74 = scmp.ne.s32.totalorder %s66, %s69
      %p75 = scmp.eq.s32.totalorder %s18, 0
      %p76 = por %p74, %p75
      %p77 = scmp.ne.s32.totalorder %s66, %s69
      %p78 = scmp.eq.s32.totalorder %s23, 1
      %p79 = por %p77, %p78
      %p80 = scmp.ne.s32.totalorder %s69, %s70
      %p81 = scmp.eq.s32.totalorder %s23, 0
      %p82 = por %p80, %p81
      %p83 = scmp.ne.s32.totalorder %s69, %s70
      %p84 = scmp.eq.s32.totalorder %s24, 1
      %p85 = por %p83, %p84
      %p87 = scmp.ne.s32.totalorder %s70, %s86
      %p88 = scmp.eq.s32.totalorder %s24, 0
      %p89 = por %p87, %p88
      %s91 = sadd.s32 %s90, 1
      %p94 = scmp.eq.s32.totalorder %s18, 1
      %p95 = scmp.ne.s32.totalorder %s90, %s92
      %p96 = scmp.eq.s32.totalorder %s18, 0
      %p97 = por %p95, %p96
      %p98 = scmp.ne.s32.totalorder %s90, %s92
      %p99 = scmp.eq.s32.totalorder %s23, 1
      %p100 = por %p98, %p99
      %p101 = scmp.ne.s32.totalorder %s92, %s93
      %p102 = scmp.eq.s32.totalorder %s23, 0
      %p103 = por %p101, %p102
      %p104 = scmp.ne.s32.totalorder %s92, %s93
      %p105 = scmp.eq.s32.totalorder %s24, 1
      %p106 = por %p104, %p105
      %p108 = scmp.ne.s32.totalorder %s93, %s107
      %p109 = scmp.eq.s32.totalorder %s24, 0
      %p110 = por %p108, %p109
      %s112 = sadd.s32 %s111, 1
      %p115 = scmp.eq.s32.totalorder %s18, 1
      %p116 = scmp.ne.s32.totalorder %s111, %s113
      %p117 = scmp.eq.s32.totalorder %s18, 0
      %p118 = por %p116, %p117
      %p119 = scmp.ne.s32.totalorder %s111, %s113
      %p120 = scmp.eq.s32.totalorder %s23, 1
      %p121 = por %p119, %p120
      %p122 = scmp.ne.s32.totalorder %s113, %s114
      %p123 = scmp.eq.s32.totalorder %s23, 0
      %p124 = por %p122, %p123
      %p125 = scmp.ne.s32.totalorder %s113, %s114
      %p126 = scmp.eq.s32.totalorder %s24, 1
      %p127 = por %p125, %p126
      %p129 = scmp.ne.s32.totalorder %s114, %s128
      %p130 = scmp.eq.s32.totalorder %s24, 0
      %p131 = por %p129, %p130
      %s133 = sadd.s32 %s132, 1
      %p136 = scmp.eq.s32.totalorder %s18, 1
      %p137 = scmp.ne.s32.totalorder %s132, %s134
      %p138 = scmp.eq.s32.totalorder %s18, 0
      %p139 = por %p137, %p138
      %p140 = scmp.ne.s32.totalorder %s132, %s134
      %p141 = scmp.eq.s32.totalorder %s23, 1
      %p142 = por %p140, %p141
      %p143 = scmp.ne.s32.totalorder %s134, %s135
      %p144 = scmp.eq.s32.totalorder %s23, 0
      %p145 = por %p143, %p144
      %p146 = scmp.ne.s32.totalorder %s134, %s135
      %p147 = scmp.eq.s32.totalorder %s24, 1
      %p148 = por %p146, %p147
      %p150 = scmp.ne.s32.totalorder %s135, %s149
      %p151 = scmp.eq.s32.totalorder %s24, 0
      %p152 = por %p150, %p151
      %s154 = sadd.s32 %s153, 1
      %p157 = scmp.eq.s32.totalorder %s18, 1
      %p158 = scmp.ne.s32.totalorder %s153, %s155
      %p159 = scmp.eq.s32.totalorder %s18, 0
      %p160 = por %p158, %p159
      %p161 = scmp.ne.s32.totalorder %s153, %s155
      %p162 = scmp.eq.s32.totalorder %s23, 1
      %p163 = por %p161, %p162
      %p164 = scmp.ne.s32.totalorder %s155, %s156
      %p165 = scmp.eq.s32.totalorder %s23, 0
      %p166 = por %p164, %p165
      %p167 = scmp.ne.s32.totalorder %s155, %s156
      %p168 = scmp.eq.s32.totalorder %s24, 1
      %p169 = por %p167, %p168
      %p171 = scmp.ne.s32.totalorder %s156, %s170
      %p172 = scmp.eq.s32.totalorder %s24, 0
      %p173 = por %p171, %p172
      %s175 = sadd.s32 %s174, 1
      %p178 = scmp.eq.s32.totalorder %s18, 1
      %p179 = scmp.ne.s32.totalorder %s174, %s176
      %p180 = scmp.eq.s32.totalorder %s18, 0
      %p181 = por %p179, %p180
      %p182 = scmp.ne.s32.totalorder %s174, %s176
      %p183 = scmp.eq.s32.totalorder %s23, 1
      %p184 = por %p182, %p183
      %p185 = scmp.ne.s32.totalorder %s176, %s177
      %p186 = scmp.eq.s32.totalorder %s23, 0
      %p187 = por %p185, %p186
      %p188 = scmp.ne.s32.totalorder %s176, %s177
      %p189 = scmp.eq.s32.totalorder %s24, 1
      %p190 = por %p188, %p189
      %p192 = scmp.ne.s32.totalorder %s177, %s191
      %p193 = scmp.eq.s32.totalorder %s24, 0
      %p194 = por %p192, %p193
      %s196 = sadd.s32 %s195, 1
      %p199 = scmp.eq.s32.totalorder %s18, 1
      %p200 = scmp.ne.s32.totalorder %s195, %s197
      %p201 = scmp.eq.s32.totalorder %s18, 0
      %p202 = por %p200, %p201
      %p203 = scmp.ne.s32.totalorder %s195, %s197
      %p204 = scmp.eq.s32.totalorder %s23, 1
      %p205 = por %p203, %p204
      %p206 = scmp.ne.s32.totalorder %s197, %s198
      %p207 = scmp.eq.s32.totalorder %s23, 0
      %p208 = por %p206, %p207
      %p209 = scmp.ne.s32.totalorder %s197, %s198
      %p210 = scmp.eq.s32.totalorder %s24, 1
      %p211 = por %p209, %p210
      %p213 = scmp.ne.s32.totalorder %s198, %s212
      %p214 = scmp.eq.s32.totalorder %s24, 0
      %p215 = por %p213, %p214
      %s217 = sadd.s32 %s216, 1
      %p220 = scmp.eq.s32.totalorder %s18, 1
      %p221 = scmp.ne.s32.totalorder %s216, %s218
      %p222 = scmp.eq.s32.totalorder %s18, 0
      %p223 = por %p221, %p222
      %p224 = scmp.ne.s32.totalorder %s216, %s218
      %p225 = scmp.eq.s32.totalorder %s23, 1
      %p226 = por %p224, %p225
      %p227 = scmp.ne.s32.totalorder %s218, %s219
      %p228 = scmp.eq.s32.totalorder %s23, 0
      %p229 = por %p227, %p228
      %p230 = scmp.ne.s32.totalorder %s218, %s219
      %p231 = scmp.eq.s32.totalorder %s24, 1
      %p232 = por %p230, %p231
      %p234 = scmp.ne.s32.totalorder %s219, %s233
      %p235 = scmp.eq.s32.totalorder %s24, 0
      %p236 = por %p234, %p235
      %s237 = ssub.s32 %s25, %s37
      %s238 = ssub.s32 %s26, %s33
      %s239 = sor.u32 %s237, %s238
      %p240 = scmp.eq.s32.totalorder %s239, 0
      %s242 = sadd.s32 %s241, 1
      %s243 = scalar_select %p240, %s241, %s242
      %p246 = pneg %p240
      %p247 = scmp.eq.s32.totalorder %s18, 1
      %p248 = por %p246, %p247
      %p249 = scmp.ne.s32.totalorder %s241, %s244
      %p250 = scmp.eq.s32.totalorder %s18, 0
      %p251 = por %p249, %p250
      %p252 = scmp.ne.s32.totalorder %s241, %s244
      %p253 = scmp.eq.s32.totalorder %s23, 1
      %p254 = por %p252, %p253
      %p255 = scmp.ne.s32.totalorder %s244, %s245
      %p256 = scmp.eq.s32.totalorder %s23, 0
      %p257 = por %p255, %p256
      %p258 = scmp.ne.s32.totalorder %s244, %s245
      %p259 = scmp.eq.s32.totalorder %s24, 1
      %p260 = por %p258, %p259
      %p262 = scmp.ne.s32.totalorder %s245, %s261
      %p263 = scmp.eq.s32.totalorder %s24, 0
      %p264 = por %p262, %p263
      %p265 = scmp.le.s32.totalorder 1, %s18
      %p266 = scmp.lt.s32.totalorder %s18, 3
      %p267 = pnand %p265, %p266
      %p268 = pneg %p267
      // Predicated region
      $region9: #{tpu_custom_call.1} parent=5 // pred_check
        _
      $region10: #{tpu_custom_call.1} parent=5 // pred_check_branch
        %270 = sbr.rel (%p267) target = $region12
      $region11: #{tpu_custom_call.1} parent=5 // pred_region
        %s271 = ssub.s32 %s18, 1
        // Predicated region
        $region13: #{tpu_custom_call.1} parent=11 // pred_check
          %p272 = pneg %p103
        $region14: #{tpu_custom_call.1} parent=11 // pred_check_branch
          %274 = sbr.rel (%p272) target = $region16
        $region15: #{tpu_custom_call.1} parent=11 // pred_region
          _
        $region16: #{tpu_custom_call.1} parent=11 // pred_fallthru
          _
        // Predicated region
        $region17: #{tpu_custom_call.1} parent=11 // pred_check
          %p275 = pneg %p124
        $region18: #{tpu_custom_call.1} parent=11 // pred_check_branch
          %277 = sbr.rel (%p275) target = $region20
        $region19: #{tpu_custom_call.1} parent=11 // pred_region
          _
        $region20: #{tpu_custom_call.1} parent=11 // pred_fallthru
          _
        // Predicated region
        $region21: #{tpu_custom_call.1} parent=11 // pred_check
          %p278 = pneg %p145
        $region22: #{tpu_custom_call.1} parent=11 // pred_check_branch
          %280 = sbr.rel (%p278) target = $region24
        $region23: #{tpu_custom_call.1} parent=11 // pred_region
          _
        $region24: #{tpu_custom_call.1} parent=11 // pred_fallthru
          _
        // Predicated region
        $region25: #{tpu_custom_call.1} parent=11 // pred_check
          %p281 = pneg %p166
        $region26: #{tpu_custom_call.1} parent=11 // pred_check_branch
          %283 = sbr.rel (%p281) target = $region28
        $region27: #{tpu_custom_call.1} parent=11 // pred_region
          _
        $region28: #{tpu_custom_call.1} parent=11 // pred_fallthru
          _
        // Predicated region
        $region29: #{tpu_custom_call.1} parent=11 // pred_check
          %p284 = pneg %p187
        $region30: #{tpu_custom_call.1} parent=11 // pred_check_branch
          %286 = sbr.rel (%p284) target = $region32
        $region31: #{tpu_custom_call.1} parent=11 // pred_region
          _
        $region32: #{tpu_custom_call.1} parent=11 // pred_fallthru
          _
        // Predicated region
        $region33: #{tpu_custom_call.1} parent=11 // pred_check
          %p287 = pneg %p208
        $region34: #{tpu_custom_call.1} parent=11 // pred_check_branch
          %289 = sbr.rel (%p287) target = $region36
        $region35: #{tpu_custom_call.1} parent=11 // pred_region
          _
        $region36: #{tpu_custom_call.1} parent=11 // pred_fallthru
          _
        // Predicated region
        $region37: #{tpu_custom_call.1} parent=11 // pred_check
          %p290 = pneg %p229
        $region38: #{tpu_custom_call.1} parent=11 // pred_check_branch
          %292 = sbr.rel (%p290) target = $region40
        $region39: #{tpu_custom_call.1} parent=11 // pred_region
          _
        $region40: #{tpu_custom_call.1} parent=11 // pred_fallthru
          _
      $region12: #{tpu_custom_call.1} parent=5 // pred_fallthru
        _
      %p293 = scmp.lt.s32.totalorder %s18, 2
      // Predicated region
      $region41: #{tpu_custom_call.1} parent=5 // pred_check
        %p294 = pneg %p293
      $region42: #{tpu_custom_call.1} parent=5 // pred_check_branch
        %296 = sbr.rel (%p294) target = $region44
      $region43: #{tpu_custom_call.1} parent=5 // pred_region
        // Predicated region
        $region45: #{tpu_custom_call.1} parent=43 // pred_check
          %p297 = pneg %p50
        $region46: #{tpu_custom_call.1} parent=43 // pred_check_branch
          %299 = sbr.rel (%p297) target = $region48
        $region47: #{tpu_custom_call.1} parent=43 // pred_region
          %p300 = scmp.lt.s32.totalorder %s25, 1
          %s301 = scalar_select %p300, %s25, 1
          %s302 = smul.addr %s301, 8
          %s303 = scalar_lea.vmem %s0, %s302
        $region48: #{tpu_custom_call.1} parent=43 // pred_fallthru
          _
        // Predicated region
        $region49: #{tpu_custom_call.1} parent=43 // pred_check
          %p304 = pneg %p76
        $region50: #{tpu_custom_call.1} parent=43 // pred_check_branch
          %306 = sbr.rel (%p304) target = $region52
        $region51: #{tpu_custom_call.1} parent=43 // pred_region
          %p307 = scmp.lt.s32.totalorder %s25, 1
          %s308 = scalar_select %p307, %s25, 1
          %s309 = scalar_lea.vmem %s1, %s308
        $region52: #{tpu_custom_call.1} parent=43 // pred_fallthru
          _
      $region44: #{tpu_custom_call.1} parent=5 // pred_fallthru
        _
      %p310 = scmp.le.s32.totalorder 1, %s18
      %p311 = scmp.lt.s32.totalorder %s18, 3
      %p312 = pnand %p310, %p311
      %p313 = pneg %p312
      // Predicated region
      $region53: #{tpu_custom_call.1} parent=5 // pred_check
        _
      $region54: #{tpu_custom_call.1} parent=5 // pred_check_branch
        %315 = sbr.rel (%p312) target = $region56
      $region55: #{tpu_custom_call.1} parent=5 // pred_region
        %s316 = ssub.s32 %s18, 1
        %p317 = scmp.lt.s32.totalorder %s27, 1
        %s318 = scalar_select %p317, %s27, 1
        %s319 = smul.addr %s318, 8
        %s320 = scalar_lea.vmem %s0, %s319
        %p321 = pneg %p56
        %p322 = pneg %p53
        %p323 = scmp.lt.s32.totalorder %s27, 1
        %s324 = scalar_select %p323, %s27, 1
        %s325 = scalar_lea.vmem %s1, %s324
        %p326 = pneg %p82
        %p327 = pneg %p79
        %p328 = pneg %p103
        %p329 = pneg %p100
        %p330 = pneg %p124
        %p331 = pneg %p121
        %p332 = pneg %p145
        %p333 = pneg %p142
        %p334 = pneg %p166
        %p335 = pneg %p163
        %p336 = pneg %p187
        %p337 = pneg %p184
        %p338 = pneg %p208
        %p339 = pneg %p205
        %p340 = pneg %p229
        %p341 = pneg %p226
        %p342 = pneg %p257
        %p343 = pneg %p254
        %s344 = sand.u32 %s244, 1
        %s345 = scalar_lea.sflag [#allocation4], %s344
        %s346 = sand.u32 %s244, 1
        %s347 = smul.addr %s346, 8
        %s348 = scalar_lea.vmem [#allocation3], %s347
        %p349 = scmp.lt.s32.totalorder %s27, 1
        %s350 = scalar_select %p349, %s27, 1
        %s351 = smul.addr %s350, 8
        %s352 = scalar_lea.vmem %s0, %s351
        %p353 = scmp.lt.s32.totalorder %s27, 1
        %s354 = scalar_select %p353, %s27, 1
        %s355 = scalar_lea.vmem %s1, %s354
        %s357 = smul.u32 %s28, 8
        %v358 = vld [vmem:[%s352] sm:$0xff]
        %s359 = scalar_lea.vmem %s352, %s357
        %v360 = vld [vmem:[%s359] sm:$0xff]
        %v361 = vld [vmem:[%s355] sm:$0x1]
        %v362 = vunpack.c.l.bf16 %v361
        %v363 = vld [vmem:[%s8] sm:$0xf]
        %v364 = vld [vmem:[%s2] sm:$0xf]
        %v365 = vld [vmem:[%s2 + $0x4] sm:$0xf]
        %v366 = vld [vmem:[%s2 + $0x8] sm:$0xf]
        %v367 = vld [vmem:[%s2 + $0xc] sm:$0xf]
        %v368 = vld [vmem:[%s3] sm:$0x1]
        %v369 = vpack.c.bf16 %v360, %v360
        %v371 = vlaneseq
        %v372 = vshrl.u32 %v371, 7
        %v373 = vsub.s32 0, %v372
        %v374 = vrot.slane %v368, %v373
        %v380 = vunpack.c.l.b16 %v364
        %v381 = vunpack.c.l.b16 %v365
        %v382 = vunpack.c.l.b16 %v366
        %v383 = vunpack.c.l.b16 %v367
        %v384 = vpack.c.b16 %v381, %v380
        %v385 = vpack.c.b16 %v383, %v382
        %vm388 = vcmask 261120
        %v390 = vsel %vm388, %v369, 0
        %392 = vmatprep.subr.bf16.mxu0 0
        %393 = vmatpush1.bf16.msra.mxu0 %v384
        %394 = vmatprep.subr.bf16.mxu0 0
        %395 = vmatpush1.bf16.msra.mxu0 %v385
        %396 = vmatprep.subr.bf16.mxu0 0
        %397 = vmatpush1.bf16.msra.mxu0 0
        %398 = vmatprep.subr.bf16.mxu0 0
        %399 = vmatpush1.bf16.msra.mxu0 0
        %400 = vmatprep.subr.bf16.mxu0 0
        %401 = vmatpush1.bf16.msra.mxu0 0
        %402 = vmatprep.subr.bf16.mxu0 0
        %403 = vmatpush1.bf16.msra.mxu0 0
        %404 = vmatprep.subr.bf16.mxu0 0
        %405 = vmatpush1.bf16.msra.mxu0 0
        %406 = vmatprep.subr.bf16.mxu0 0
        %407 = vmatpush1.bf16.msra.mxu0 0
        %408 = vmatprep.subr.bf16.mxu0 0
        %409 = vmatpush1.bf16.msra.mxu0 0
        %410 = vmatprep.subr.bf16.mxu0 0
        %411 = vmatpush1.bf16.msra.mxu0 0
        %412 = vmatprep.subr.bf16.mxu0 0
        %413 = vmatpush1.bf16.msra.mxu0 0
        %414 = vmatprep.subr.bf16.mxu0 0
        %415 = vmatpush1.bf16.msra.mxu0 0
        %416 = vmatprep.subr.bf16.mxu0 0
        %417 = vmatpush1.bf16.msra.mxu0 0
        %418 = vmatprep.subr.bf16.mxu0 0
        %419 = vmatpush1.bf16.msra.mxu0 0
        %420 = vmatprep.subr.bf16.mxu0 0
        %421 = vmatpush1.bf16.msra.mxu0 0
        %422 = vmatprep.subr.bf16.mxu0 0
        %423 = vmatpush1.bf16.msra.mxu0 0
        %424 = vmatprep.mubr.bf16.mxu0 0
        %425 = vmatmul.mubr.bf16.gmra.mrb[0].mxu0 %v390
        %v426 = vpop.f32.mrb[0].mxu0
        %v427 = vadd.f32 %v374, %v426
        %v428 = vpop.f32.mrb[0].mxu0
        %v429 = vpop.f32.mrb[0].mxu0
        %v430 = vpop.f32.mrb[0].mxu0
        %431 = vdwg.mxu0
        %v432 = vpack.c.bf16 %v358, %v358
        %433 = vrot.lane.b32.xlu0 %v384, 96
        %v434 = vpop.permute.xlu0 %433
        %435 = vrot.lane.b32.xlu0 %v385, 96
        %v436 = vpop.permute.xlu0 %435
        %439 = vrot.lane.b32.xlu0 %v374, 96
        %v440 = vpop.permute.xlu0 %439
        %v443 = vsel %vm388, %v432, 0
        %445 = vmatprep.subr.bf16.mxu0 0
        %446 = vmatpush1.bf16.msra.mxu0 %v434
        %447 = vmatprep.subr.bf16.mxu0 0
        %448 = vmatpush1.bf16.msra.mxu0 %v436
        %449 = vmatprep.subr.bf16.mxu0 0
        %450 = vmatpush1.bf16.msra.mxu0 0
        %451 = vmatprep.subr.bf16.mxu0 0
        %452 = vmatpush1.bf16.msra.mxu0 0
        %453 = vmatprep.subr.bf16.mxu0 0
        %454 = vmatpush1.bf16.msra.mxu0 0
        %455 = vmatprep.subr.bf16.mxu0 0
        %456 = vmatpush1.bf16.msra.mxu0 0
        %457 = vmatprep.subr.bf16.mxu0 0
        %458 = vmatpush1.bf16.msra.mxu0 0
        %459 = vmatprep.subr.bf16.mxu0 0
        %460 = vmatpush1.bf16.msra.mxu0 0
        %461 = vmatprep.subr.bf16.mxu0 0
        %462 = vmatpush1.bf16.msra.mxu0 0
        %463 = vmatprep.subr.bf16.mxu0 0
        %464 = vmatpush1.bf16.msra.mxu0 0
        %465 = vmatprep.subr.bf16.mxu0 0
        %466 = vmatpush1.bf16.msra.mxu0 0
        %467 = vmatprep.subr.bf16.mxu0 0
        %468 = vmatpush1.bf16.msra.mxu0 0
        %469 = vmatprep.subr.bf16.mxu0 0
        %470 = vmatpush1.bf16.msra.mxu0 0
        %471 = vmatprep.subr.bf16.mxu0 0
        %472 = vmatpush1.bf16.msra.mxu0 0
        %473 = vmatprep.subr.bf16.mxu0 0
        %474 = vmatpush1.bf16.msra.mxu0 0
        %475 = vmatprep.subr.bf16.mxu0 0
        %476 = vmatpush1.bf16.msra.mxu0 0
        %477 = vmatprep.mubr.bf16.mxu0 0
        %478 = vmatmul.mubr.bf16.gmra.mrb[0].mxu0 %v443
        %v479 = vpop.f32.mrb[0].mxu0
        %v480 = vadd.f32 %v440, %v479
        %v481 = vpop.f32.mrb[0].mxu0
        %v482 = vpop.f32.mrb[0].mxu0
        %v483 = vpop.f32.mrb[0].mxu0
        %484 = vdwg.mxu0
        %v485 = vpack.c.bf16 %v427, %v427
        %487 = vrot.lane.b32.xlu0 %v485, 120
        %v488 = vpop.permute.xlu0 %487
        %489 = vrot.lane.b32.xlu0 %v485, 112
        %v490 = vpop.permute.xlu0 %489
        %491 = vrot.lane.b32.xlu0 %v485, 104
        %v492 = vpop.permute.xlu0 %491
        %v493 = vpack.c.bf16 %v480, %v480
        %495 = vrot.lane.b32.xlu0 %v493, 120
        %v496 = vpop.permute.xlu0 %495
        %497 = vrot.lane.b32.xlu0 %v493, 112
        %v498 = vpop.permute.xlu0 %497
        %499 = vrot.lane.b32.xlu0 %v493, 104
        %v500 = vpop.permute.xlu0 %499
        %vm501 = vcmask 64512
        %v503 = vsel %vm501, %v485, 0
        %v506 = vsel %vm501, %v493, 0
        %508 = vmatprep.subr.bf16.mxu0 0
        %509 = vmatpush1.bf16.xpose.msra.mxu0 %v506
        %510 = vmatprep.subr.bf16.mxu0 0
        %511 = vmatpush1.bf16.xpose.msra.mxu0 0
        %512 = vmatprep.subr.bf16.mxu0 0
        %513 = vmatpush1.bf16.xpose.msra.mxu0 0
        %514 = vmatprep.subr.bf16.mxu0 0
        %515 = vmatpush1.bf16.xpose.msra.mxu0 0
        %516 = vmatprep.subr.bf16.mxu0 0
        %517 = vmatpush1.bf16.xpose.msra.mxu0 0
        %518 = vmatprep.subr.bf16.mxu0 0
        %519 = vmatpush1.bf16.xpose.msra.mxu0 0
        %520 = vmatprep.subr.bf16.mxu0 0
        %521 = vmatpush1.bf16.xpose.msra.mxu0 0
        %522 = vmatprep.subr.bf16.mxu0 0
        %523 = vmatpush1.bf16.xpose.msra.mxu0 0
        %524 = vmatprep.subr.bf16.mxu0 0
        %525 = vmatpush1.bf16.xpose.msra.mxu0 0
        %526 = vmatprep.subr.bf16.mxu0 0
        %527 = vmatpush1.bf16.xpose.msra.mxu0 0
        %528 = vmatprep.subr.bf16.mxu0 0
        %529 = vmatpush1.bf16.xpose.msra.mxu0 0
        %530 = vmatprep.subr.bf16.mxu0 0
        %531 = vmatpush1.bf16.xpose.msra.mxu0 0
        %532 = vmatprep.subr.bf16.mxu0 0
        %533 = vmatpush1.bf16.xpose.msra.mxu0 0
        %534 = vmatprep.subr.bf16.mxu0 0
        %535 = vmatpush1.bf16.xpose.msra.mxu0 0
        %536 = vmatprep.subr.bf16.mxu0 0
        %537 = vmatpush1.bf16.xpose.msra.mxu0 0
        %538 = vmatprep.subr.bf16.mxu0 0
        %539 = vmatpush1.bf16.xpose.msra.mxu0 0
        %540 = vmatprep.mubr.bf16.mxu0 0
        %541 = vmatmul.mubr.bf16.gmra.mrb[0].mxu0 %v503
        %v542 = vpop.f32.mrb[0].mxu0
        %v543 = vadd.f32 0.0, %v542
        %v544 = vpop.f32.mrb[0].mxu0
        %v545 = vpop.f32.mrb[0].mxu0
        %v546 = vpop.f32.mrb[0].mxu0
        %547 = vdwg.mxu0
        %v549 = vsel %vm501, %v488, 0
        %v552 = vsel %vm501, %v496, 0
        %554 = vmatprep.subr.bf16.mxu0 0
        %555 = vmatpush1.bf16.xpose.msra.mxu0 %v552
        %556 = vmatprep.subr.bf16.mxu0 0
        %557 = vmatpush1.bf16.xpose.msra.mxu0 0
        %558 = vmatprep.subr.bf16.mxu0 0
        %559 = vmatpush1.bf16.xpose.msra.mxu0 0
        %560 = vmatprep.subr.bf16.mxu0 0
        %561 = vmatpush1.bf16.xpose.msra.mxu0 0
        %562 = vmatprep.subr.bf16.mxu0 0
        %563 = vmatpush1.bf16.xpose.msra.mxu0 0
        %564 = vmatprep.subr.bf16.mxu0 0
        %565 = vmatpush1.bf16.xpose.msra.mxu0 0
        %566 = vmatprep.subr.bf16.mxu0 0
        %567 = vmatpush1.bf16.xpose.msra.mxu0 0
        %568 = vmatprep.subr.bf16.mxu0 0
        %569 = vmatpush1.bf16.xpose.msra.mxu0 0
        %570 = vmatprep.subr.bf16.mxu0 0
        %571 = vmatpush1.bf16.xpose.msra.mxu0 0
        %572 = vmatprep.subr.bf16.mxu0 0
        %573 = vmatpush1.bf16.xpose.msra.mxu0 0
        %574 = vmatprep.subr.bf16.mxu0 0
        %575 = vmatpush1.bf16.xpose.msra.mxu0 0
        %576 = vmatprep.subr.bf16.mxu0 0
        %577 = vmatpush1.bf16.xpose.msra.mxu0 0
        %578 = vmatprep.subr.bf16.mxu0 0
        %579 = vmatpush1.bf16.xpose.msra.mxu0 0
        %580 = vmatprep.subr.bf16.mxu0 0
        %581 = vmatpush1.bf16.xpose.msra.mxu0 0
        %582 = vmatprep.subr.bf16.mxu0 0
        %583 = vmatpush1.bf16.xpose.msra.mxu0 0
        %584 = vmatprep.subr.bf16.mxu0 0
        %585 = vmatpush1.bf16.xpose.msra.mxu0 0
        %586 = vmatprep.mubr.bf16.mxu0 0
        %587 = vmatmul.mubr.bf16.gmra.mrb[0].mxu0 %v549
        %v588 = vpop.f32.mrb[0].mxu0
        %v589 = vadd.f32 0.0, %v588
        %v590 = vpop.f32.mrb[0].mxu0
        %v591 = vpop.f32.mrb[0].mxu0
        %v592 = vpop.f32.mrb[0].mxu0
        %593 = vdwg.mxu0
        %v595 = vsel %vm501, %v490, 0
        %v598 = vsel %vm501, %v498, 0
        %600 = vmatprep.subr.bf16.mxu0 0
        %601 = vmatpush1.bf16.xpose.msra.mxu0 %v598
        %602 = vmatprep.subr.bf16.mxu0 0
        %603 = vmatpush1.bf16.xpose.msra.mxu0 0
        %604 = vmatprep.subr.bf16.mxu0 0
        %605 = vmatpush1.bf16.xpose.msra.mxu0 0
        %606 = vmatprep.subr.bf16.mxu0 0
        %607 = vmatpush1.bf16.xpose.msra.mxu0 0
        %608 = vmatprep.subr.bf16.mxu0 0
        %609 = vmatpush1.bf16.xpose.msra.mxu0 0
        %610 = vmatprep.subr.bf16.mxu0 0
        %611 = vmatpush1.bf16.xpose.msra.mxu0 0
        %612 = vmatprep.subr.bf16.mxu0 0
        %613 = vmatpush1.bf16.xpose.msra.mxu0 0
        %614 = vmatprep.subr.bf16.mxu0 0
        %615 = vmatpush1.bf16.xpose.msra.mxu0 0
        %616 = vmatprep.subr.bf16.mxu0 0
        %617 = vmatpush1.bf16.xpose.msra.mxu0 0
        %618 = vmatprep.subr.bf16.mxu0 0
        %619 = vmatpush1.bf16.xpose.msra.mxu0 0
        %620 = vmatprep.subr.bf16.mxu0 0
        %621 = vmatpush1.bf16.xpose.msra.mxu0 0
        %622 = vmatprep.subr.bf16.mxu0 0
        %623 = vmatpush1.bf16.xpose.msra.mxu0 0
        %624 = vmatprep.subr.bf16.mxu0 0
        %625 = vmatpush1.bf16.xpose.msra.mxu0 0
        %626 = vmatprep.subr.bf16.mxu0 0
        %627 = vmatpush1.bf16.xpose.msra.mxu0 0
        %628 = vmatprep.subr.bf16.mxu0 0
        %629 = vmatpush1.bf16.xpose.msra.mxu0 0
        %630 = vmatprep.subr.bf16.mxu0 0
        %631 = vmatpush1.bf16.xpose.msra.mxu0 0
        %632 = vmatprep.mubr.bf16.mxu0 0
        %633 = vmatmul.mubr.bf16.gmra.mrb[0].mxu0 %v595
        %v634 = vpop.f32.mrb[0].mxu0
        %v635 = vadd.f32 0.0, %v634
        %v636 = vpop.f32.mrb[0].mxu0
        %v637 = vpop.f32.mrb[0].mxu0
        %v638 = vpop.f32.mrb[0].mxu0
        %639 = vdwg.mxu0
        %v641 = vsel %vm501, %v492, 0
        %v644 = vsel %vm501, %v500, 0
        %646 = vmatprep.subr.bf16.mxu0 0
        %647 = vmatpush1.bf16.xpose.msra.mxu0 %v644
        %648 = vmatprep.subr.bf16.mxu0 0
        %649 = vmatpush1.bf16.xpose.msra.mxu0 0
        %650 = vmatprep.subr.bf16.mxu0 0
        %651 = vmatpush1.bf16.xpose.msra.mxu0 0
        %652 = vmatprep.subr.bf16.mxu0 0
        %653 = vmatpush1.bf16.xpose.msra.mxu0 0
        %654 = vmatprep.subr.bf16.mxu0 0
        %655 = vmatpush1.bf16.xpose.msra.mxu0 0
        %656 = vmatprep.subr.bf16.mxu0 0
        %657 = vmatpush1.bf16.xpose.msra.mxu0 0
        %658 = vmatprep.subr.bf16.mxu0 0
        %659 = vmatpush1.bf16.xpose.msra.mxu0 0
        %660 = vmatprep.subr.bf16.mxu0 0
        %661 = vmatpush1.bf16.xpose.msra.mxu0 0
        %662 = vmatprep.subr.bf16.mxu0 0
        %663 = vmatpush1.bf16.xpose.msra.mxu0 0
        %664 = vmatprep.subr.bf16.mxu0 0
        %665 = vmatpush1.bf16.xpose.msra.mxu0 0
        %666 = vmatprep.subr.bf16.mxu0 0
        %667 = vmatpush1.bf16.xpose.msra.mxu0 0
        %668 = vmatprep.subr.bf16.mxu0 0
        %669 = vmatpush1.bf16.xpose.msra.mxu0 0
        %670 = vmatprep.subr.bf16.mxu0 0
        %671 = vmatpush1.bf16.xpose.msra.mxu0 0
        %672 = vmatprep.subr.bf16.mxu0 0
        %673 = vmatpush1.bf16.xpose.msra.mxu0 0
        %674 = vmatprep.subr.bf16.mxu0 0
        %675 = vmatpush1.bf16.xpose.msra.mxu0 0
        %676 = vmatprep.subr.bf16.mxu0 0
        %677 = vmatpush1.bf16.xpose.msra.mxu0 0
        %678 = vmatprep.mubr.bf16.mxu0 0
        %679 = vmatmul.mubr.bf16.gmra.mrb[0].mxu0 %v641
        %v680 = vpop.f32.mrb[0].mxu0
        %v681 = vadd.f32 0.0, %v680
        %v682 = vpop.f32.mrb[0].mxu0
        %v683 = vpop.f32.mrb[0].mxu0
        %v684 = vpop.f32.mrb[0].mxu0
        %685 = vdwg.mxu0
        %v686 = vmul.f32 %v543, 0.35355338
        %v687 = vmul.f32 %v589, 0.35355338
        %v688 = vmul.f32 %v635, 0.35355338
        %v689 = vmul.f32 %v681, 0.35355338
        %v690 = vlaneseq
        %v691 = vshrl.u32 %v690, 7
        %v692 = vsub.s32 0, %v691
        %v693 = vrot.slane %v362, %v692
        %v694 = vadd.f32 %v686, %v693
        %v695 = vadd.f32 %v687, %v693
        %v696 = vadd.f32 %v688, %v693
        %v697 = vadd.f32 %v689, %v693
        %v698 = vsel %vm501, %v694, -inf
        %699 = vmax.xlane.f32.xlu0 %v698
        %v700 = vpop.xlane.xlu0 %699
        %v701 = vsel %vm501, %v695, -inf
        %702 = vmax.xlane.f32.xlu0 %v701
        %v703 = vpop.xlane.xlu0 %702
        %v704 = vsel %vm501, %v696, -inf
        %705 = vmax.xlane.f32.xlu0 %v704
        %v706 = vpop.xlane.xlu0 %705
        %v707 = vsel %vm501, %v697, -inf
        %708 = vmax.xlane.f32.xlu0 %v707
        %v709 = vpop.xlane.xlu0 %708
        %v710 = vsub.f32 %v694, %v700
        %v711 = vsub.f32 %v695, %v703
        %v712 = vsub.f32 %v696, %v706
        %v713 = vsub.f32 %v697, %v709
        %v714 = vmul.f32 %v710, 1.442695
        %v715 = vpow.pop %v714
        %v716 = vmul.f32 %v711, 1.442695
        %v717 = vpow.pop %v716
        %v718 = vmul.f32 %v712, 1.442695
        %v719 = vpow.pop %v718
        %v720 = vmul.f32 %v713, 1.442695
        %v721 = vpow.pop %v720
        %v722 = vsel %vm501, %v715, 0.0
        %723 = vadd.xlane.f32.xlu0 %v722
        %v724 = vpop.xlane.xlu0 %723
        %v725 = vsel %vm501, %v717, 0.0
        %726 = vadd.xlane.f32.xlu0 %v725
        %v727 = vpop.xlane.xlu0 %726
        %v728 = vsel %vm501, %v719, 0.0
        %729 = vadd.xlane.f32.xlu0 %v728
        %v730 = vpop.xlane.xlu0 %729
        %v731 = vsel %vm501, %v721, 0.0
        %732 = vadd.xlane.f32.xlu0 %v731
        %v733 = vpop.xlane.xlu0 %732
        %v734 = vrcp.pop %v724
        %v735 = vrcp.pop %v727
        %v736 = vrcp.pop %v730
        %v737 = vrcp.pop %v733
        %v738 = vmul.f32 %v715, %v734
        %v739 = vmul.f32 %v717, %v735
        %v740 = vmul.f32 %v719, %v736
        %v741 = vmul.f32 %v721, %v737
        %v742 = vpack.c.bf16 %v738, %v738
        %v743 = vpack.c.bf16 %v739, %v739
        %v744 = vpack.c.bf16 %v740, %v740
        %v745 = vpack.c.bf16 %v741, %v741
        %746 = vrot.lane.b32.xlu0 %v493, 96
        %v747 = vpop.permute.xlu0 %746
        %v749 = vsel %vm501, %v742, 0
        %vm751 = vcmask 1043456
        %v753 = vsel %vm751, %v747, 0
        %755 = vmatprep.subr.bf16.mxu0 0
        %756 = vmatpush1.bf16.msra.mxu0 %v753
        %757 = vmatprep.subr.bf16.mxu0 0
        %758 = vmatpush1.bf16.msra.mxu0 0
        %759 = vmatprep.subr.bf16.mxu0 0
        %760 = vmatpush1.bf16.msra.mxu0 0
        %761 = vmatprep.subr.bf16.mxu0 0
        %762 = vmatpush1.bf16.msra.mxu0 0
        %763 = vmatprep.subr.bf16.mxu0 0
        %764 = vmatpush1.bf16.msra.mxu0 0
        %765 = vmatprep.subr.bf16.mxu0 0
        %766 = vmatpush1.bf16.msra.mxu0 0
        %767 = vmatprep.subr.bf16.mxu0 0
        %768 = vmatpush1.bf16.msra.mxu0 0
        %769 = vmatprep.subr.bf16.mxu0 0
        %770 = vmatpush1.bf16.msra.mxu0 0
        %771 = vmatprep.subr.bf16.mxu0 0
        %772 = vmatpush1.bf16.msra.mxu0 0
        %773 = vmatprep.subr.bf16.mxu0 0
        %774 = vmatpush1.bf16.msra.mxu0 0
        %775 = vmatprep.subr.bf16.mxu0 0
        %776 = vmatpush1.bf16.msra.mxu0 0
        %777 = vmatprep.subr.bf16.mxu0 0
        %778 = vmatpush1.bf16.msra.mxu0 0
        %779 = vmatprep.subr.bf16.mxu0 0
        %780 = vmatpush1.bf16.msra.mxu0 0
        %781 = vmatprep.subr.bf16.mxu0 0
        %782 = vmatpush1.bf16.msra.mxu0 0
        %783 = vmatprep.subr.bf16.mxu0 0
        %784 = vmatpush1.bf16.msra.mxu0 0
        %785 = vmatprep.subr.bf16.mxu0 0
        %786 = vmatpush1.bf16.msra.mxu0 0
        %787 = vmatprep.mubr.bf16.mxu0 0
        %788 = vmatmul.mubr.bf16.gmra.mrb[0].mxu0 %v749
        %v789 = vpop.f32.mrb[0].mxu0
        %v790 = vadd.f32 0.0, %v789
        %v791 = vpop.f32.mrb[0].mxu0
        %v792 = vpop.f32.mrb[0].mxu0
        %v793 = vpop.f32.mrb[0].mxu0
        %794 = vdwg.mxu0
        %795 = vrot.lane.b32.xlu0 %v496, 96
        %v796 = vpop.permute.xlu0 %795
        %v798 = vsel %vm501, %v743, 0
        %v801 = vsel %vm751, %v796, 0
        %803 = vmatprep.subr.bf16.mxu0 0
        %804 = vmatpush1.bf16.msra.mxu0 %v801
        %805 = vmatprep.subr.bf16.mxu0 0
        %806 = vmatpush1.bf16.msra.mxu0 0
        %807 = vmatprep.subr.bf16.mxu0 0
        %808 = vmatpush1.bf16.msra.mxu0 0
        %809 = vmatprep.subr.bf16.mxu0 0
        %810 = vmatpush1.bf16.msra.mxu0 0
        %811 = vmatprep.subr.bf16.mxu0 0
        %812 = vmatpush1.bf16.msra.mxu0 0
        %813 = vmatprep.subr.bf16.mxu0 0
        %814 = vmatpush1.bf16.msra.mxu0 0
        %815 = vmatprep.subr.bf16.mxu0 0
        %816 = vmatpush1.bf16.msra.mxu0 0
        %817 = vmatprep.subr.bf16.mxu0 0
        %818 = vmatpush1.bf16.msra.mxu0 0
        %819 = vmatprep.subr.bf16.mxu0 0
        %820 = vmatpush1.bf16.msra.mxu0 0
        %821 = vmatprep.subr.bf16.mxu0 0
        %822 = vmatpush1.bf16.msra.mxu0 0
        %823 = vmatprep.subr.bf16.mxu0 0
        %824 = vmatpush1.bf16.msra.mxu0 0
        %825 = vmatprep.subr.bf16.mxu0 0
        %826 = vmatpush1.bf16.msra.mxu0 0
        %827 = vmatprep.subr.bf16.mxu0 0
        %828 = vmatpush1.bf16.msra.mxu0 0
        %829 = vmatprep.subr.bf16.mxu0 0
        %830 = vmatpush1.bf16.msra.mxu0 0
        %831 = vmatprep.subr.bf16.mxu0 0
        %832 = vmatpush1.bf16.msra.mxu0 0
        %833 = vmatprep.subr.bf16.mxu0 0
        %834 = vmatpush1.bf16.msra.mxu0 0
        %835 = vmatprep.mubr.bf16.mxu0 0
        %836 = vmatmul.mubr.bf16.gmra.mrb[0].mxu0 %v798
        %v837 = vpop.f32.mrb[0].mxu0
        %v838 = vadd.f32 0.0, %v837
        %v839 = vpop.f32.mrb[0].mxu0
        %v840 = vpop.f32.mrb[0].mxu0
        %v841 = vpop.f32.mrb[0].mxu0
        %842 = vdwg.mxu0
        %843 = vrot.lane.b32.xlu0 %v498, 96
        %v844 = vpop.permute.xlu0 %843
        %v846 = vsel %vm501, %v744, 0
        %v849 = vsel %vm751, %v844, 0
        %851 = vmatprep.subr.bf16.mxu0 0
        %852 = vmatpush1.bf16.msra.mxu0 %v849
        %853 = vmatprep.subr.bf16.mxu0 0
        %854 = vmatpush1.bf16.msra.mxu0 0
        %855 = vmatprep.subr.bf16.mxu0 0
        %856 = vmatpush1.bf16.msra.mxu0 0
        %857 = vmatprep.subr.bf16.mxu0 0
        %858 = vmatpush1.bf16.msra.mxu0 0
        %859 = vmatprep.subr.bf16.mxu0 0
        %860 = vmatpush1.bf16.msra.mxu0 0
        %861 = vmatprep.subr.bf16.mxu0 0
        %862 = vmatpush1.bf16.msra.mxu0 0
        %863 = vmatprep.subr.bf16.mxu0 0
        %864 = vmatpush1.bf16.msra.mxu0 0
        %865 = vmatprep.subr.bf16.mxu0 0
        %866 = vmatpush1.bf16.msra.mxu0 0
        %867 = vmatprep.subr.bf16.mxu0 0
        %868 = vmatpush1.bf16.msra.mxu0 0
        %869 = vmatprep.subr.bf16.mxu0 0
        %870 = vmatpush1.bf16.msra.mxu0 0
        %871 = vmatprep.subr.bf16.mxu0 0
        %872 = vmatpush1.bf16.msra.mxu0 0
        %873 = vmatprep.subr.bf16.mxu0 0
        %874 = vmatpush1.bf16.msra.mxu0 0
        %875 = vmatprep.subr.bf16.mxu0 0
        %876 = vmatpush1.bf16.msra.mxu0 0
        %877 = vmatprep.subr.bf16.mxu0 0
        %878 = vmatpush1.bf16.msra.mxu0 0
        %879 = vmatprep.subr.bf16.mxu0 0
        %880 = vmatpush1.bf16.msra.mxu0 0
        %881 = vmatprep.subr.bf16.mxu0 0
        %882 = vmatpush1.bf16.msra.mxu0 0
        %883 = vmatprep.mubr.bf16.mxu0 0
        %884 = vmatmul.mubr.bf16.gmra.mrb[0].mxu0 %v846
        %v885 = vpop.f32.mrb[0].mxu0
        %v886 = vadd.f32 0.0, %v885
        %v887 = vpop.f32.mrb[0].mxu0
        %v888 = vpop.f32.mrb[0].mxu0
        %v889 = vpop.f32.mrb[0].mxu0
        %890 = vdwg.mxu0
        %891 = vrot.lane.b32.xlu0 %v500, 96
        %v892 = vpop.permute.xlu0 %891
        %v894 = vsel %vm501, %v745, 0
        %v897 = vsel %vm751, %v892, 0
        %899 = vmatprep.subr.bf16.mxu0 0
        %900 = vmatpush1.bf16.msra.mxu0 %v897
        %901 = vmatprep.subr.bf16.mxu0 0
        %902 = vmatpush1.bf16.msra.mxu0 0
        %903 = vmatprep.subr.bf16.mxu0 0
        %904 = vmatpush1.bf16.msra.mxu0 0
        %905 = vmatprep.subr.bf16.mxu0 0
        %906 = vmatpush1.bf16.msra.mxu0 0
        %907 = vmatprep.subr.bf16.mxu0 0
        %908 = vmatpush1.bf16.msra.mxu0 0
        %909 = vmatprep.subr.bf16.mxu0 0
        %910 = vmatpush1.bf16.msra.mxu0 0
        %911 = vmatprep.subr.bf16.mxu0 0
        %912 = vmatpush1.bf16.msra.mxu0 0
        %913 = vmatprep.subr.bf16.mxu0 0
        %914 = vmatpush1.bf16.msra.mxu0 0
        %915 = vmatprep.subr.bf16.mxu0 0
        %916 = vmatpush1.bf16.msra.mxu0 0
        %917 = vmatprep.subr.bf16.mxu0 0
        %918 = vmatpush1.bf16.msra.mxu0 0
        %919 = vmatprep.subr.bf16.mxu0 0
        %920 = vmatpush1.bf16.msra.mxu0 0
        %921 = vmatprep.subr.bf16.mxu0 0
        %922 = vmatpush1.bf16.msra.mxu0 0
        %923 = vmatprep.subr.bf16.mxu0 0
        %924 = vmatpush1.bf16.msra.mxu0 0
        %925 = vmatprep.subr.bf16.mxu0 0
        %926 = vmatpush1.bf16.msra.mxu0 0
        %927 = vmatprep.subr.bf16.mxu0 0
        %928 = vmatpush1.bf16.msra.mxu0 0
        %929 = vmatprep.subr.bf16.mxu0 0
        %930 = vmatpush1.bf16.msra.mxu0 0
        %931 = vmatprep.mubr.bf16.mxu0 0
        %932 = vmatmul.mubr.bf16.gmra.mrb[0].mxu0 %v894
        %v933 = vpop.f32.mrb[0].mxu0
        %v934 = vadd.f32 0.0, %v933
        %v935 = vpop.f32.mrb[0].mxu0
        %v936 = vpop.f32.mrb[0].mxu0
        %v937 = vpop.f32.mrb[0].mxu0
        %938 = vdwg.mxu0
        %939 = vst.msk [vmem:[#allocation2] sm:$0xff] %vm501, %v790
        %941 = vrot.lane.b32.xlu0 %v838, 8
        %v942 = vpop.permute.xlu0 %941
        %vm944 = vcmask 130112
        %945 = vst.msk [vmem:[#allocation2] sm:$0xff] %vm944, %v942
        %947 = vrot.lane.b32.xlu0 %v886, 16
        %v948 = vpop.permute.xlu0 %947
        %vm950 = vcmask 195712
        %951 = vst.msk [vmem:[#allocation2] sm:$0xff] %vm950, %v948
        %953 = vrot.lane.b32.xlu0 %v934, 24
        %v954 = vpop.permute.xlu0 %953
        %vm956 = vcmask 261312
        %957 = vst.msk [vmem:[#allocation2] sm:$0xff] %vm956, %v954
        %v958 = vld [vmem:[#allocation2] sm:$0xff]
        %v959 = vpack.c.bf16 %v958, %v958
        %v960 = vld [vmem:[%s4] sm:$0xf]
        %v961 = vld [vmem:[%s4 + $0x4] sm:$0xf]
        %v962 = vld [vmem:[%s4 + $0x8] sm:$0xf]
        %v963 = vld [vmem:[%s4 + $0xc] sm:$0xf]
        %v964 = vlaneseq
        %v965 = vshrl.u32 %v964, 7
        %v966 = vsub.s32 2, %v965
        %v967 = vrot.slane %v363, %v966
        %v972 = vunpack.c.l.b16 %v960
        %v973 = vunpack.c.l.b16 %v961
        %v974 = vunpack.c.l.b16 %v962
        %v975 = vunpack.c.l.b16 %v963
        %v976 = vpack.c.b16 %v973, %v972
        %v977 = vpack.c.b16 %v975, %v974
        %v981 = vsel %vm388, %v959, 0
        %983 = vmatprep.subr.bf16.mxu0 0
        %984 = vmatpush1.bf16.msra.mxu0 %v976
        %985 = vmatprep.subr.bf16.mxu0 0
        %986 = vmatpush1.bf16.msra.mxu0 %v977
        %987 = vmatprep.subr.bf16.mxu0 0
        %988 = vmatpush1.bf16.msra.mxu0 0
        %989 = vmatprep.subr.bf16.mxu0 0
        %990 = vmatpush1.bf16.msra.mxu0 0
        %991 = vmatprep.subr.bf16.mxu0 0
        %992 = vmatpush1.bf16.msra.mxu0 0
        %993 = vmatprep.subr.bf16.mxu0 0
        %994 = vmatpush1.bf16.msra.mxu0 0
        %995 = vmatprep.subr.bf16.mxu0 0
        %996 = vmatpush1.bf16.msra.mxu0 0
        %997 = vmatprep.subr.bf16.mxu0 0
        %998 = vmatpush1.bf16.msra.mxu0 0
        %999 = vmatprep.subr.bf16.mxu0 0
        %1000 = vmatpush1.bf16.msra.mxu0 0
        %1001 = vmatprep.subr.bf16.mxu0 0
        %1002 = vmatpush1.bf16.msra.mxu0 0
        %1003 = vmatprep.subr.bf16.mxu0 0
        %1004 = vmatpush1.bf16.msra.mxu0 0
        %1005 = vmatprep.subr.bf16.mxu0 0
        %1006 = vmatpush1.bf16.msra.mxu0 0
        %1007 = vmatprep.subr.bf16.mxu0 0
        %1008 = vmatpush1.bf16.msra.mxu0 0
        %1009 = vmatprep.subr.bf16.mxu0 0
        %1010 = vmatpush1.bf16.msra.mxu0 0
        %1011 = vmatprep.subr.bf16.mxu0 0
        %1012 = vmatpush1.bf16.msra.mxu0 0
        %1013 = vmatprep.subr.bf16.mxu0 0
        %1014 = vmatpush1.bf16.msra.mxu0 0
        %1015 = vmatprep.mubr.bf16.mxu0 0
        %1016 = vmatmul.mubr.bf16.gmra.mrb[0].mxu0 %v981
        %v1017 = vpop.f32.mrb[0].mxu0
        %v1018 = vadd.f32 %v967, %v1017
        %v1019 = vpop.f32.mrb[0].mxu0
        %v1020 = vpop.f32.mrb[0].mxu0
        %v1021 = vpop.f32.mrb[0].mxu0
        %1022 = vdwg.mxu0
        %v1023 = vadd.f32 %v1018, %v360
        %v1024 = vsel %vm388, %v1023, 0.0
        %1025 = vadd.xlane.f32.xlu0 %v1024
        %v1026 = vpop.xlane.xlu0 %1025
        %v1027 = vrcp.pop 32.0
        %v1028 = vmul.f32 %v1026, %v1027
        %v1029 = vsub.f32 %v1023, %v1028
        %v1030 = vmul.f32 %v1029, %v1029
        %v1031 = vsel %vm388, %v1030, 0.0
        %1032 = vadd.xlane.f32.xlu0 %v1031
        %v1033 = vpop.xlane.xlu0 %1032
        %v1034 = vmul.f32 %v1033, %v1027
        %v1035 = vadd.f32 %v1034, 1e-05
        %v1036 = vrsqrt.pop %v1035
        %v1037 = vmul.f32 %v1029, %v1036
        %v1038 = vlaneseq
        %v1039 = vshrl.u32 %v1038, 7
        %v1040 = vsub.s32 0, %v1039
        %v1041 = vrot.slane %v363, %v1040
        %v1042 = vmul.f32 %v1037, %v1041
        %v1043 = vlaneseq
        %v1044 = vshrl.u32 %v1043, 7
        %v1045 = vsub.s32 1, %v1044
        %v1046 = vrot.slane %v363, %v1045
        %v1047 = vadd.f32 %v1042, %v1046
        %v1048 = vpack.c.bf16 %v1047, %v1047
        %v1049 = vld [vmem:[%s5] sm:$0xff]
        %v1050 = vld [vmem:[%s5 + $0x8] sm:$0xff]
        %v1051 = vld [vmem:[%s5 + $0x10] sm:$0xff]
        %v1052 = vld [vmem:[%s5 + $0x18] sm:$0xff]
        %v1053 = vld [vmem:[%s5 + $0x20] sm:$0xff]
        %v1054 = vld [vmem:[%s5 + $0x28] sm:$0xff]
        %v1055 = vld [vmem:[%s5 + $0x30] sm:$0xff]
        %v1056 = vld [vmem:[%s5 + $0x38] sm:$0xff]
        %v1057 = vld [vmem:[%s5 + $0x40] sm:$0xff]
        %v1058 = vld [vmem:[%s5 + $0x48] sm:$0xff]
        %v1059 = vld [vmem:[%s5 + $0x50] sm:$0xff]
        %v1060 = vld [vmem:[%s5 + $0x58] sm:$0xff]
        %v1061 = vld [vmem:[%s5 + $0x60] sm:$0xff]
        %v1062 = vld [vmem:[%s5 + $0x68] sm:$0xff]
        %v1063 = vld [vmem:[%s5 + $0x70] sm:$0xff]
        %v1064 = vld [vmem:[%s5 + $0x78] sm:$0xff]
        %v1065 = vld [vmem:[%s5 + $0x80] sm:$0xff]
        %v1066 = vld [vmem:[%s5 + $0x88] sm:$0xff]
        %v1067 = vld [vmem:[%s5 + $0x90] sm:$0xff]
        %v1068 = vld [vmem:[%s5 + $0x98] sm:$0xff]
        %v1069 = vld [vmem:[%s5 + $0xa0] sm:$0xff]
        %v1070 = vld [vmem:[%s5 + $0xa8] sm:$0xff]
        %v1071 = vld [vmem:[%s5 + $0xb0] sm:$0xff]
        %v1072 = vld [vmem:[%s5 + $0xb8] sm:$0xff]
        %v1073 = vld [vmem:[%s5 + $0xc0] sm:$0xff]
        %v1074 = vld [vmem:[%s5 + $0xc8] sm:$0xff]
        %v1075 = vld [vmem:[%s5 + $0xd0] sm:$0xff]
        %v1076 = vld [vmem:[%s5 + $0xd8] sm:$0xff]
        %v1077 = vld [vmem:[%s5 + $0xe0] sm:$0xff]
        %v1078 = vld [vmem:[%s5 + $0xe8] sm:$0xff]
        %v1079 = vld [vmem:[%s5 + $0xf0] sm:$0xff]
        %v1080 = vld [vmem:[%s5 + $0xf8] sm:$0xff]
        %v1081 = vld [vmem:[%s6] sm:$0xff]
        %v1082 = vld [vmem:[%s6 + $0x8] sm:$0xff]
        %v1085 = vlaneseq
        %v1086 = vshrl.u32 %v1085, 7
        %v1087 = vsub.s32 0, %v1086
        %v1088 = vrot.slane %v1081, %v1087
        %v1089 = vlaneseq
        %v1090 = vshrl.u32 %v1089, 7
        %v1091 = vsub.s32 1, %v1090
        %v1092 = vrot.slane %v1081, %v1091
        %v1093 = vlaneseq
        %v1094 = vshrl.u32 %v1093, 7
        %v1095 = vsub.s32 2, %v1094
        %v1096 = vrot.slane %v1081, %v1095
        %v1097 = vlaneseq
        %v1098 = vshrl.u32 %v1097, 7
        %v1099 = vsub.s32 3, %v1098
        %v1100 = vrot.slane %v1081, %v1099
        %v1101 = vlaneseq
        %v1102 = vshrl.u32 %v1101, 7
        %v1103 = vsub.s32 4, %v1102
        %v1104 = vrot.slane %v1081, %v1103
        %v1105 = vlaneseq
        %v1106 = vshrl.u32 %v1105, 7
        %v1107 = vsub.s32 5, %v1106
        %v1108 = vrot.slane %v1081, %v1107
        %v1109 = vlaneseq
        %v1110 = vshrl.u32 %v1109, 7
        %v1111 = vsub.s32 6, %v1110
        %v1112 = vrot.slane %v1081, %v1111
        %v1113 = vlaneseq
        %v1114 = vshrl.u32 %v1113, 7
        %v1115 = vsub.s32 7, %v1114
        %v1116 = vrot.slane %v1081, %v1115
        %v1117 = vlaneseq
        %v1118 = vshrl.u32 %v1117, 7
        %v1119 = vsub.s32 0, %v1118
        %v1120 = vrot.slane %v1082, %v1119
        %v1121 = vlaneseq
        %v1122 = vshrl.u32 %v1121, 7
        %v1123 = vsub.s32 1, %v1122
        %v1124 = vrot.slane %v1082, %v1123
        %v1125 = vlaneseq
        %v1126 = vshrl.u32 %v1125, 7
        %v1127 = vsub.s32 2, %v1126
        %v1128 = vrot.slane %v1082, %v1127
        %v1129 = vlaneseq
        %v1130 = vshrl.u32 %v1129, 7
        %v1131 = vsub.s32 3, %v1130
        %v1132 = vrot.slane %v1082, %v1131
        %v1133 = vlaneseq
        %v1134 = vshrl.u32 %v1133, 7
        %v1135 = vsub.s32 4, %v1134
        %v1136 = vrot.slane %v1082, %v1135
        %v1137 = vlaneseq
        %v1138 = vshrl.u32 %v1137, 7
        %v1139 = vsub.s32 5, %v1138
        %v1140 = vrot.slane %v1082, %v1139
        %v1141 = vlaneseq
        %v1142 = vshrl.u32 %v1141, 7
        %v1143 = vsub.s32 6, %v1142
        %v1144 = vrot.slane %v1082, %v1143
        %v1145 = vlaneseq
        %v1146 = vshrl.u32 %v1145, 7
        %v1147 = vsub.s32 7, %v1146
        %v1148 = vrot.slane %v1082, %v1147
        %v1197 = vunpack.c.l.b16 %v1049
        %v1198 = vunpack.c.h.b16 %v1049
        %v1199 = vunpack.c.l.b16 %v1050
        %v1200 = vunpack.c.h.b16 %v1050
        %v1201 = vunpack.c.l.b16 %v1051
        %v1202 = vunpack.c.h.b16 %v1051
        %v1203 = vunpack.c.l.b16 %v1052
        %v1204 = vunpack.c.h.b16 %v1052
        %v1205 = vunpack.c.l.b16 %v1053
        %v1206 = vunpack.c.h.b16 %v1053
        %v1207 = vunpack.c.l.b16 %v1054
        %v1208 = vunpack.c.h.b16 %v1054
        %v1209 = vunpack.c.l.b16 %v1055
        %v1210 = vunpack.c.h.b16 %v1055
        %v1211 = vunpack.c.l.b16 %v1056
        %v1212 = vunpack.c.h.b16 %v1056
        %v1213 = vunpack.c.l.b16 %v1057
        %v1214 = vunpack.c.h.b16 %v1057
        %v1215 = vunpack.c.l.b16 %v1058
        %v1216 = vunpack.c.h.b16 %v1058
        %v1217 = vunpack.c.l.b16 %v1059
        %v1218 = vunpack.c.h.b16 %v1059
        %v1219 = vunpack.c.l.b16 %v1060
        %v1220 = vunpack.c.h.b16 %v1060
        %v1221 = vunpack.c.l.b16 %v1061
        %v1222 = vunpack.c.h.b16 %v1061
        %v1223 = vunpack.c.l.b16 %v1062
        %v1224 = vunpack.c.h.b16 %v1062
        %v1225 = vunpack.c.l.b16 %v1063
        %v1226 = vunpack.c.h.b16 %v1063
        %v1227 = vunpack.c.l.b16 %v1064
        %v1228 = vunpack.c.h.b16 %v1064
        %v1229 = vunpack.c.l.b16 %v1065
        %v1230 = vunpack.c.h.b16 %v1065
        %v1231 = vunpack.c.l.b16 %v1066
        %v1232 = vunpack.c.h.b16 %v1066
        %v1233 = vunpack.c.l.b16 %v1067
        %v1234 = vunpack.c.h.b16 %v1067
        %v1235 = vunpack.c.l.b16 %v1068
        %v1236 = vunpack.c.h.b16 %v1068
        %v1237 = vunpack.c.l.b16 %v1069
        %v1238 = vunpack.c.h.b16 %v1069
        %v1239 = vunpack.c.l.b16 %v1070
        %v1240 = vunpack.c.h.b16 %v1070
        %v1241 = vunpack.c.l.b16 %v1071
        %v1242 = vunpack.c.h.b16 %v1071
        %v1243 = vunpack.c.l.b16 %v1072
        %v1244 = vunpack.c.h.b16 %v1072
        %v1245 = vunpack.c.l.b16 %v1073
        %v1246 = vunpack.c.h.b16 %v1073
        %v1247 = vunpack.c.l.b16 %v1074
        %v1248 = vunpack.c.h.b16 %v1074
        %v1249 = vunpack.c.l.b16 %v1075
        %v1250 = vunpack.c.h.b16 %v1075
        %v1251 = vunpack.c.l.b16 %v1076
        %v1252 = vunpack.c.h.b16 %v1076
        %v1253 = vunpack.c.l.b16 %v1077
        %v1254 = vunpack.c.h.b16 %v1077
        %v1255 = vunpack.c.l.b16 %v1078
        %v1256 = vunpack.c.h.b16 %v1078
        %v1257 = vunpack.c.l.b16 %v1079
        %v1258 = vunpack.c.h.b16 %v1079
        %v1259 = vunpack.c.l.b16 %v1080
        %v1260 = vunpack.c.h.b16 %v1080
        %v1261 = vpack.c.b16 %v1213, %v1197
        %v1262 = vpack.c.b16 %v1214, %v1198
        %v1263 = vpack.c.b16 %v1215, %v1199
        %v1264 = vpack.c.b16 %v1216, %v1200
        %v1265 = vpack.c.b16 %v1217, %v1201
        %v1266 = vpack.c.b16 %v1218, %v1202
        %v1267 = vpack.c.b16 %v1219, %v1203
        %v1268 = vpack.c.b16 %v1220, %v1204
        %v1269 = vpack.c.b16 %v1221, %v1205
        %v1270 = vpack.c.b16 %v1222, %v1206
        %v1271 = vpack.c.b16 %v1223, %v1207
        %v1272 = vpack.c.b16 %v1224, %v1208
        %v1273 = vpack.c.b16 %v1225, %v1209
        %v1274 = vpack.c.b16 %v1226, %v1210
        %v1275 = vpack.c.b16 %v1227, %v1211
        %v1276 = vpack.c.b16 %v1228, %v1212
        %v1277 = vpack.c.b16 %v1245, %v1229
        %v1278 = vpack.c.b16 %v1246, %v1230
        %v1279 = vpack.c.b16 %v1247, %v1231
        %v1280 = vpack.c.b16 %v1248, %v1232
        %v1281 = vpack.c.b16 %v1249, %v1233
        %v1282 = vpack.c.b16 %v1250, %v1234
        %v1283 = vpack.c.b16 %v1251, %v1235
        %v1284 = vpack.c.b16 %v1252, %v1236
        %v1285 = vpack.c.b16 %v1253, %v1237
        %v1286 = vpack.c.b16 %v1254, %v1238
        %v1287 = vpack.c.b16 %v1255, %v1239
        %v1288 = vpack.c.b16 %v1256, %v1240
        %v1289 = vpack.c.b16 %v1257, %v1241
        %v1290 = vpack.c.b16 %v1258, %v1242
        %v1291 = vpack.c.b16 %v1259, %v1243
        %v1292 = vpack.c.b16 %v1260, %v1244
        %v1326 = vsel %vm388, %v1048, 0
        %1328 = vmatprep.subr.bf16.mxu0 %v1262
        %1329 = vmatpush1.bf16.msra.mxu0 %v1261
        %1330 = vmatprep.subr.bf16.mxu0 %v1278
        %1331 = vmatpush1.bf16.msra.mxu0 %v1277
        %1332 = vmatprep.subr.bf16.mxu0 0
        %1333 = vmatpush1.bf16.msra.mxu0 0
        %1334 = vmatprep.subr.bf16.mxu0 0
        %1335 = vmatpush1.bf16.msra.mxu0 0
        %1336 = vmatprep.subr.bf16.mxu0 0
        %1337 = vmatpush1.bf16.msra.mxu0 0
        %1338 = vmatprep.subr.bf16.mxu0 0
        %1339 = vmatpush1.bf16.msra.mxu0 0
        %1340 = vmatprep.subr.bf16.mxu0 0
        %1341 = vmatpush1.bf16.msra.mxu0 0
        %1342 = vmatprep.subr.bf16.mxu0 0
        %1343 = vmatpush1.bf16.msra.mxu0 0
        %1344 = vmatprep.subr.bf16.mxu0 0
        %1345 = vmatpush1.bf16.msra.mxu0 0
        %1346 = vmatprep.subr.bf16.mxu0 0
        %1347 = vmatpush1.bf16.msra.mxu0 0
        %1348 = vmatprep.subr.bf16.mxu0 0
        %1349 = vmatpush1.bf16.msra.mxu0 0
        %1350 = vmatprep.subr.bf16.mxu0 0
        %1351 = vmatpush1.bf16.msra.mxu0 0
        %1352 = vmatprep.subr.bf16.mxu0 0
        %1353 = vmatpush1.bf16.msra.mxu0 0
        %1354 = vmatprep.subr.bf16.mxu0 0
        %1355 = vmatpush1.bf16.msra.mxu0 0
        %1356 = vmatprep.subr.bf16.mxu0 0
        %1357 = vmatpush1.bf16.msra.mxu0 0
        %1358 = vmatprep.subr.bf16.mxu0 0
        %1359 = vmatpush1.bf16.msra.mxu0 0
        %1360 = vmatprep.mubr.bf16.mxu0 0
        %1361 = vmatmul.mubr.bf16.gmra.mrb[0].mxu0 %v1326
        %v1362 = vpop.f32.mrb[0].mxu0
        %v1363 = vadd.f32 %v1088, %v1362
        %v1364 = vpop.f32.mrb[0].mxu0
        %v1365 = vadd.f32 %v1092, %v1364
        %v1366 = vpop.f32.mrb[0].mxu0
        %v1367 = vpop.f32.mrb[0].mxu0
        %1368 = vdwg.mxu0
        %1369 = vmatprep.subr.bf16.mxu0 %v1264
        %1370 = vmatpush1.bf16.msra.mxu0 %v1263
        %1371 = vmatprep.subr.bf16.mxu0 %v1280
        %1372 = vmatpush1.bf16.msra.mxu0 %v1279
        %1373 = vmatprep.subr.bf16.mxu0 0
        %1374 = vmatpush1.bf16.msra.mxu0 0
        %1375 = vmatprep.subr.bf16.mxu0 0
        %1376 = vmatpush1.bf16.msra.mxu0 0
        %1377 = vmatprep.subr.bf16.mxu0 0
        %1378 = vmatpush1.bf16.msra.mxu0 0
        %1379 = vmatprep.subr.bf16.mxu0 0
        %1380 = vmatpush1.bf16.msra.mxu0 0
        %1381 = vmatprep.subr.bf16.mxu0 0
        %1382 = vmatpush1.bf16.msra.mxu0 0
        %1383 = vmatprep.subr.bf16.mxu0 0
        %1384 = vmatpush1.bf16.msra.mxu0 0
        %1385 = vmatprep.subr.bf16.mxu0 0
        %1386 = vmatpush1.bf16.msra.mxu0 0
        %1387 = vmatprep.subr.bf16.mxu0 0
        %1388 = vmatpush1.bf16.msra.mxu0 0
        %1389 = vmatprep.subr.bf16.mxu0 0
        %1390 = vmatpush1.bf16.msra.mxu0 0
        %1391 = vmatprep.subr.bf16.mxu0 0
        %1392 = vmatpush1.bf16.msra.mxu0 0
        %1393 = vmatprep.subr.bf16.mxu0 0
        %1394 = vmatpush1.bf16.msra.mxu0 0
        %1395 = vmatprep.subr.bf16.mxu0 0
        %1396 = vmatpush1.bf16.msra.mxu0 0
        %1397 = vmatprep.subr.bf16.mxu0 0
        %1398 = vmatpush1.bf16.msra.mxu0 0
        %1399 = vmatprep.subr.bf16.mxu0 0
        %1400 = vmatpush1.bf16.msra.mxu0 0
        %1401 = vmatprep.mubr.bf16.mxu0 0
        %1402 = vmatmul.mubr.bf16.gmra.mrb[0].mxu0 %v1326
        %v1403 = vpop.f32.mrb[0].mxu0
        %v1404 = vadd.f32 %v1096, %v1403
        %v1405 = vpop.f32.mrb[0].mxu0
        %v1406 = vadd.f32 %v1100, %v1405
        %v1407 = vpop.f32.mrb[0].mxu0
        %v1408 = vpop.f32.mrb[0].mxu0
        %1409 = vdwg.mxu0
        %1410 = vmatprep.subr.bf16.mxu0 %v1266
        %1411 = vmatpush1.bf16.msra.mxu0 %v1265
        %1412 = vmatprep.subr.bf16.mxu0 %v1282
        %1413 = vmatpush1.bf16.msra.mxu0 %v1281
        %1414 = vmatprep.subr.bf16.mxu0 0
        %1415 = vmatpush1.bf16.msra.mxu0 0
        %1416 = vmatprep.subr.bf16.mxu0 0
        %1417 = vmatpush1.bf16.msra.mxu0 0
        %1418 = vmatprep.subr.bf16.mxu0 0
        %1419 = vmatpush1.bf16.msra.mxu0 0
        %1420 = vmatprep.subr.bf16.mxu0 0
        %1421 = vmatpush1.bf16.msra.mxu0 0
        %1422 = vmatprep.subr.bf16.mxu0 0
        %1423 = vmatpush1.bf16.msra.mxu0 0
        %1424 = vmatprep.subr.bf16.mxu0 0
        %1425 = vmatpush1.bf16.msra.mxu0 0
        %1426 = vmatprep.subr.bf16.mxu0 0
        %1427 = vmatpush1.bf16.msra.mxu0 0
        %1428 = vmatprep.subr.bf16.mxu0 0
        %1429 = vmatpush1.bf16.msra.mxu0 0
        %1430 = vmatprep.subr.bf16.mxu0 0
        %1431 = vmatpush1.bf16.msra.mxu0 0
        %1432 = vmatprep.subr.bf16.mxu0 0
        %1433 = vmatpush1.bf16.msra.mxu0 0
        %1434 = vmatprep.subr.bf16.mxu0 0
        %1435 = vmatpush1.bf16.msra.mxu0 0
        %1436 = vmatprep.subr.bf16.mxu0 0
        %1437 = vmatpush1.bf16.msra.mxu0 0
        %1438 = vmatprep.subr.bf16.mxu0 0
        %1439 = vmatpush1.bf16.msra.mxu0 0
        %1440 = vmatprep.subr.bf16.mxu0 0
        %1441 = vmatpush1.bf16.msra.mxu0 0
        %1442 = vmatprep.mubr.bf16.mxu0 0
        %1443 = vmatmul.mubr.bf16.gmra.mrb[0].mxu0 %v1326
        %v1444 = vpop.f32.mrb[0].mxu0
        %v1445 = vadd.f32 %v1104, %v1444
        %v1446 = vpop.f32.mrb[0].mxu0
        %v1447 = vadd.f32 %v1108, %v1446
        %v1448 = vpop.f32.mrb[0].mxu0
        %v1449 = vpop.f32.mrb[0].mxu0
        %1450 = vdwg.mxu0
        %1451 = vmatprep.subr.bf16.mxu0 %v1268
        %1452 = vmatpush1.bf16.msra.mxu0 %v1267
        %1453 = vmatprep.subr.bf16.mxu0 %v1284
        %1454 = vmatpush1.bf16.msra.mxu0 %v1283
        %1455 = vmatprep.subr.bf16.mxu0 0
        %1456 = vmatpush1.bf16.msra.mxu0 0
        %1457 = vmatprep.subr.bf16.mxu0 0
        %1458 = vmatpush1.bf16.msra.mxu0 0
        %1459 = vmatprep.subr.bf16.mxu0 0
        %1460 = vmatpush1.bf16.msra.mxu0 0
        %1461 = vmatprep.subr.bf16.mxu0 0
        %1462 = vmatpush1.bf16.msra.mxu0 0
        %1463 = vmatprep.subr.bf16.mxu0 0
        %1464 = vmatpush1.bf16.msra.mxu0 0
        %1465 = vmatprep.subr.bf16.mxu0 0
        %1466 = vmatpush1.bf16.msra.mxu0 0
        %1467 = vmatprep.subr.bf16.mxu0 0
        %1468 = vmatpush1.bf16.msra.mxu0 0
        %1469 = vmatprep.subr.bf16.mxu0 0
        %1470 = vmatpush1.bf16.msra.mxu0 0
        %1471 = vmatprep.subr.bf16.mxu0 0
        %1472 = vmatpush1.bf16.msra.mxu0 0
        %1473 = vmatprep.subr.bf16.mxu0 0
        %1474 = vmatpush1.bf16.msra.mxu0 0
        %1475 = vmatprep.subr.bf16.mxu0 0
        %1476 = vmatpush1.bf16.msra.mxu0 0
        %1477 = vmatprep.subr.bf16.mxu0 0
        %1478 = vmatpush1.bf16.msra.mxu0 0
        %1479 = vmatprep.subr.bf16.mxu0 0
        %1480 = vmatpush1.bf16.msra.mxu0 0
        %1481 = vmatprep.subr.bf16.mxu0 0
        %1482 = vmatpush1.bf16.msra.mxu0 0
        %1483 = vmatprep.mubr.bf16.mxu0 0
        %1484 = vmatmul.mubr.bf16.gmra.mrb[0].mxu0 %v1326
        %v1485 = vpop.f32.mrb[0].mxu0
        %v1486 = vadd.f32 %v1112, %v1485
        %v1487 = vpop.f32.mrb[0].mxu0
        %v1488 = vadd.f32 %v1116, %v1487
        %v1489 = vpop.f32.mrb[0].mxu0
        %v1490 = vpop.f32.mrb[0].mxu0
        %1491 = vdwg.mxu0
        %1492 = vmatprep.subr.bf16.mxu0 %v1270
        %1493 = vmatpush1.bf16.msra.mxu0 %v1269
        %1494 = vmatprep.subr.bf16.mxu0 %v1286
        %1495 = vmatpush1.bf16.msra.mxu0 %v1285
        %1496 = vmatprep.subr.bf16.mxu0 0
        %1497 = vmatpush1.bf16.msra.mxu0 0
        %1498 = vmatprep.subr.bf16.mxu0 0
        %1499 = vmatpush1.bf16.msra.mxu0 0
        %1500 = vmatprep.subr.bf16.mxu0 0
        %1501 = vmatpush1.bf16.msra.mxu0 0
        %1502 = vmatprep.subr.bf16.mxu0 0
        %1503 = vmatpush1.bf16.msra.mxu0 0
        %1504 = vmatprep.subr.bf16.mxu0 0
        %1505 = vmatpush1.bf16.msra.mxu0 0
        %1506 = vmatprep.subr.bf16.mxu0 0
        %1507 = vmatpush1.bf16.msra.mxu0 0
        %1508 = vmatprep.subr.bf16.mxu0 0
        %1509 = vmatpush1.bf16.msra.mxu0 0
        %1510 = vmatprep.subr.bf16.mxu0 0
        %1511 = vmatpush1.bf16.msra.mxu0 0
        %1512 = vmatprep.subr.bf16.mxu0 0
        %1513 = vmatpush1.bf16.msra.mxu0 0
        %1514 = vmatprep.subr.bf16.mxu0 0
        %1515 = vmatpush1.bf16.msra.mxu0 0
        %1516 = vmatprep.subr.bf16.mxu0 0
        %1517 = vmatpush1.bf16.msra.mxu0 0
        %1518 = vmatprep.subr.bf16.mxu0 0
        %1519 = vmatpush1.bf16.msra.mxu0 0
        %1520 = vmatprep.subr.bf16.mxu0 0
        %1521 = vmatpush1.bf16.msra.mxu0 0
        %1522 = vmatprep.subr.bf16.mxu0 0
        %1523 = vmatpush1.bf16.msra.mxu0 0
        %1524 = vmatprep.mubr.bf16.mxu0 0
        %1525 = vmatmul.mubr.bf16.gmra.mrb[0].mxu0 %v1326
        %v1526 = vpop.f32.mrb[0].mxu0
        %v1527 = vadd.f32 %v1120, %v1526
        %v1528 = vpop.f32.mrb[0].mxu0
        %v1529 = vadd.f32 %v1124, %v1528
        %v1530 = vpop.f32.mrb[0].mxu0
        %v1531 = vpop.f32.mrb[0].mxu0
        %1532 = vdwg.mxu0
        %1533 = vmatprep.subr.bf16.mxu0 %v1272
        %1534 = vmatpush1.bf16.msra.mxu0 %v1271
        %1535 = vmatprep.subr.bf16.mxu0 %v1288
        %1536 = vmatpush1.bf16.msra.mxu0 %v1287
        %1537 = vmatprep.subr.bf16.mxu0 0
        %1538 = vmatpush1.bf16.msra.mxu0 0
        %1539 = vmatprep.subr.bf16.mxu0 0
        %1540 = vmatpush1.bf16.msra.mxu0 0
        %1541 = vmatprep.subr.bf16.mxu0 0
        %1542 = vmatpush1.bf16.msra.mxu0 0
        %1543 = vmatprep.subr.bf16.mxu0 0
        %1544 = vmatpush1.bf16.msra.mxu0 0
        %1545 = vmatprep.subr.bf16.mxu0 0
        %1546 = vmatpush1.bf16.msra.mxu0 0
        %1547 = vmatprep.subr.bf16.mxu0 0
        %1548 = vmatpush1.bf16.msra.mxu0 0
        %1549 = vmatprep.subr.bf16.mxu0 0
        %1550 = vmatpush1.bf16.msra.mxu0 0
        %1551 = vmatprep.subr.bf16.mxu0 0
        %1552 = vmatpush1.bf16.msra.mxu0 0
        %1553 = vmatprep.subr.bf16.mxu0 0
        %1554 = vmatpush1.bf16.msra.mxu0 0
        %1555 = vmatprep.subr.bf16.mxu0 0
        %1556 = vmatpush1.bf16.msra.mxu0 0
        %1557 = vmatprep.subr.bf16.mxu0 0
        %1558 = vmatpush1.bf16.msra.mxu0 0
        %1559 = vmatprep.subr.bf16.mxu0 0
        %1560 = vmatpush1.bf16.msra.mxu0 0
        %1561 = vmatprep.subr.bf16.mxu0 0
        %1562 = vmatpush1.bf16.msra.mxu0 0
        %1563 = vmatprep.subr.bf16.mxu0 0
        %1564 = vmatpush1.bf16.msra.mxu0 0
        %1565 = vmatprep.mubr.bf16.mxu0 0
        %1566 = vmatmul.mubr.bf16.gmra.mrb[0].mxu0 %v1326
        %v1567 = vpop.f32.mrb[0].mxu0
        %v1568 = vadd.f32 %v1128, %v1567
        %v1569 = vpop.f32.mrb[0].mxu0
        %v1570 = vadd.f32 %v1132, %v1569
        %v1571 = vpop.f32.mrb[0].mxu0
        %v1572 = vpop.f32.mrb[0].mxu0
        %1573 = vdwg.mxu0
        %1574 = vmatprep.subr.bf16.mxu0 %v1274
        %1575 = vmatpush1.bf16.msra.mxu0 %v1273
        %1576 = vmatprep.subr.bf16.mxu0 %v1290
        %1577 = vmatpush1.bf16.msra.mxu0 %v1289
        %1578 = vmatprep.subr.bf16.mxu0 0
        %1579 = vmatpush1.bf16.msra.mxu0 0
        %1580 = vmatprep.subr.bf16.mxu0 0
        %1581 = vmatpush1.bf16.msra.mxu0 0
        %1582 = vmatprep.subr.bf16.mxu0 0
        %1583 = vmatpush1.bf16.msra.mxu0 0
        %1584 = vmatprep.subr.bf16.mxu0 0
        %1585 = vmatpush1.bf16.msra.mxu0 0
        %1586 = vmatprep.subr.bf16.mxu0 0
        %1587 = vmatpush1.bf16.msra.mxu0 0
        %1588 = vmatprep.subr.bf16.mxu0 0
        %1589 = vmatpush1.bf16.msra.mxu0 0
        %1590 = vmatprep.subr.bf16.mxu0 0
        %1591 = vmatpush1.bf16.msra.mxu0 0
        %1592 = vmatprep.subr.bf16.mxu0 0
        %1593 = vmatpush1.bf16.msra.mxu0 0
        %1594 = vmatprep.subr.bf16.mxu0 0
        %1595 = vmatpush1.bf16.msra.mxu0 0
        %1596 = vmatprep.subr.bf16.mxu0 0
        %1597 = vmatpush1.bf16.msra.mxu0 0
        %1598 = vmatprep.subr.bf16.mxu0 0
        %1599 = vmatpush1.bf16.msra.mxu0 0
        %1600 = vmatprep.subr.bf16.mxu0 0
        %1601 = vmatpush1.bf16.msra.mxu0 0
        %1602 = vmatprep.subr.bf16.mxu0 0
        %1603 = vmatpush1.bf16.msra.mxu0 0
        %1604 = vmatprep.subr.bf16.mxu0 0
        %1605 = vmatpush1.bf16.msra.mxu0 0
        %1606 = vmatprep.mubr.bf16.mxu0 0
        %1607 = vmatmul.mubr.bf16.gmra.mrb[0].mxu0 %v1326
        %v1608 = vpop.f32.mrb[0].mxu0
        %v1609 = vadd.f32 %v1136, %v1608
        %v1610 = vpop.f32.mrb[0].mxu0
        %v1611 = vadd.f32 %v1140, %v1610
        %v1612 = vpop.f32.mrb[0].mxu0
        %v1613 = vpop.f32.mrb[0].mxu0
        %1614 = vdwg.mxu0
        %1615 = vmatprep.subr.bf16.mxu0 %v1276
        %1616 = vmatpush1.bf16.msra.mxu0 %v1275
        %1617 = vmatprep.subr.bf16.mxu0 %v1292
        %1618 = vmatpush1.bf16.msra.mxu0 %v1291
        %1619 = vmatprep.subr.bf16.mxu0 0
        %1620 = vmatpush1.bf16.msra.mxu0 0
        %1621 = vmatprep.subr.bf16.mxu0 0
        %1622 = vmatpush1.bf16.msra.mxu0 0
        %1623 = vmatprep.subr.bf16.mxu0 0
        %1624 = vmatpush1.bf16.msra.mxu0 0
        %1625 = vmatprep.subr.bf16.mxu0 0
        %1626 = vmatpush1.bf16.msra.mxu0 0
        %1627 = vmatprep.subr.bf16.mxu0 0
        %1628 = vmatpush1.bf16.msra.mxu0 0
        %1629 = vmatprep.subr.bf16.mxu0 0
        %1630 = vmatpush1.bf16.msra.mxu0 0
        %1631 = vmatprep.subr.bf16.mxu0 0
        %1632 = vmatpush1.bf16.msra.mxu0 0
        %1633 = vmatprep.subr.bf16.mxu0 0
        %1634 = vmatpush1.bf16.msra.mxu0 0
        %1635 = vmatprep.subr.bf16.mxu0 0
        %1636 = vmatpush1.bf16.msra.mxu0 0
        %1637 = vmatprep.subr.bf16.mxu0 0
        %1638 = vmatpush1.bf16.msra.mxu0 0
        %1639 = vmatprep.subr.bf16.mxu0 0
        %1640 = vmatpush1.bf16.msra.mxu0 0
        %1641 = vmatprep.subr.bf16.mxu0 0
        %1642 = vmatpush1.bf16.msra.mxu0 0
        %1643 = vmatprep.subr.bf16.mxu0 0
        %1644 = vmatpush1.bf16.msra.mxu0 0
        %1645 = vmatprep.subr.bf16.mxu0 0
        %1646 = vmatpush1.bf16.msra.mxu0 0
        %1647 = vmatprep.mubr.bf16.mxu0 0
        %1648 = vmatmul.mubr.bf16.gmra.mrb[0].mxu0 %v1326
        %v1649 = vpop.f32.mrb[0].mxu0
        %v1650 = vadd.f32 %v1144, %v1649
        %v1651 = vpop.f32.mrb[0].mxu0
        %v1652 = vadd.f32 %v1148, %v1651
        %v1653 = vpop.f32.mrb[0].mxu0
        %v1654 = vpop.f32.mrb[0].mxu0
        %1655 = vdwg.mxu0
        %v1656 = vmax.f32 %v1363, 0.0
        %v1657 = vmax.f32 %v1365, 0.0
        %v1658 = vmax.f32 %v1404, 0.0
        %v1659 = vmax.f32 %v1406, 0.0
        %v1660 = vmax.f32 %v1445, 0.0
        %v1661 = vmax.f32 %v1447, 0.0
        %v1662 = vmax.f32 %v1486, 0.0
        %v1663 = vmax.f32 %v1488, 0.0
        %v1664 = vmax.f32 %v1527, 0.0
        %v1665 = vmax.f32 %v1529, 0.0
        %v1666 = vmax.f32 %v1568, 0.0
        %v1667 = vmax.f32 %v1570, 0.0
        %v1668 = vmax.f32 %v1609, 0.0
        %v1669 = vmax.f32 %v1611, 0.0
        %v1670 = vmax.f32 %v1650, 0.0
        %v1671 = vmax.f32 %v1652, 0.0
        %v1672 = vpack.c.bf16 %v1656, %v1656
        %v1673 = vpack.c.bf16 %v1657, %v1657
        %v1674 = vpack.c.bf16 %v1658, %v1658
        %v1675 = vpack.c.bf16 %v1659, %v1659
        %v1676 = vpack.c.bf16 %v1660, %v1660
        %v1677 = vpack.c.bf16 %v1661, %v1661
        %v1678 = vpack.c.bf16 %v1662, %v1662
        %v1679 = vpack.c.bf16 %v1663, %v1663
        %v1680 = vpack.c.bf16 %v1664, %v1664
        %v1681 = vpack.c.bf16 %v1665, %v1665
        %v1682 = vpack.c.bf16 %v1666, %v1666
        %v1683 = vpack.c.bf16 %v1667, %v1667
        %v1684 = vpack.c.bf16 %v1668, %v1668
        %v1685 = vpack.c.bf16 %v1669, %v1669
        %v1686 = vpack.c.bf16 %v1670, %v1670
        %v1687 = vpack.c.bf16 %v1671, %v1671
        %v1688 = vld [vmem:[%s7] sm:$0xf]
        %v1689 = vld [vmem:[%s7 + $0x4] sm:$0xf]
        %v1690 = vld [vmem:[%s7 + $0x8] sm:$0xf]
        %v1691 = vld [vmem:[%s7 + $0xc] sm:$0xf]
        %v1692 = vld [vmem:[%s7 + $0x10] sm:$0xf]
        %v1693 = vld [vmem:[%s7 + $0x14] sm:$0xf]
        %v1694 = vld [vmem:[%s7 + $0x18] sm:$0xf]
        %v1695 = vld [vmem:[%s7 + $0x1c] sm:$0xf]
        %v1696 = vld [vmem:[%s7 + $0x20] sm:$0xf]
        %v1697 = vld [vmem:[%s7 + $0x24] sm:$0xf]
        %v1698 = vld [vmem:[%s7 + $0x28] sm:$0xf]
        %v1699 = vld [vmem:[%s7 + $0x2c] sm:$0xf]
        %v1700 = vld [vmem:[%s7 + $0x30] sm:$0xf]
        %v1701 = vld [vmem:[%s7 + $0x34] sm:$0xf]
        %v1702 = vld [vmem:[%s7 + $0x38] sm:$0xf]
        %v1703 = vld [vmem:[%s7 + $0x3c] sm:$0xf]
        %v1704 = vld [vmem:[%s7 + $0x40] sm:$0xf]
        %v1705 = vld [vmem:[%s7 + $0x44] sm:$0xf]
        %v1706 = vld [vmem:[%s7 + $0x48] sm:$0xf]
        %v1707 = vld [vmem:[%s7 + $0x4c] sm:$0xf]
        %v1708 = vld [vmem:[%s7 + $0x50] sm:$0xf]
        %v1709 = vld [vmem:[%s7 + $0x54] sm:$0xf]
        %v1710 = vld [vmem:[%s7 + $0x58] sm:$0xf]
        %v1711 = vld [vmem:[%s7 + $0x5c] sm:$0xf]
        %v1712 = vld [vmem:[%s7 + $0x60] sm:$0xf]
        %v1713 = vld [vmem:[%s7 + $0x64] sm:$0xf]
        %v1714 = vld [vmem:[%s7 + $0x68] sm:$0xf]
        %v1715 = vld [vmem:[%s7 + $0x6c] sm:$0xf]
        %v1716 = vld [vmem:[%s7 + $0x70] sm:$0xf]
        %v1717 = vld [vmem:[%s7 + $0x74] sm:$0xf]
        %v1718 = vld [vmem:[%s7 + $0x78] sm:$0xf]
        %v1719 = vld [vmem:[%s7 + $0x7c] sm:$0xf]
        %v1720 = vld [vmem:[%s7 + $0x80] sm:$0xf]
        %v1721 = vld [vmem:[%s7 + $0x84] sm:$0xf]
        %v1722 = vld [vmem:[%s7 + $0x88] sm:$0xf]
        %v1723 = vld [vmem:[%s7 + $0x8c] sm:$0xf]
        %v1724 = vld [vmem:[%s7 + $0x90] sm:$0xf]
        %v1725 = vld [vmem:[%s7 + $0x94] sm:$0xf]
        %v1726 = vld [vmem:[%s7 + $0x98] sm:$0xf]
        %v1727 = vld [vmem:[%s7 + $0x9c] sm:$0xf]
        %v1728 = vld [vmem:[%s7 + $0xa0] sm:$0xf]
        %v1729 = vld [vmem:[%s7 + $0xa4] sm:$0xf]
        %v1730 = vld [vmem:[%s7 + $0xa8] sm:$0xf]
        %v1731 = vld [vmem:[%s7 + $0xac] sm:$0xf]
        %v1732 = vld [vmem:[%s7 + $0xb0] sm:$0xf]
        %v1733 = vld [vmem:[%s7 + $0xb4] sm:$0xf]
        %v1734 = vld [vmem:[%s7 + $0xb8] sm:$0xf]
        %v1735 = vld [vmem:[%s7 + $0xbc] sm:$0xf]
        %v1736 = vld [vmem:[%s7 + $0xc0] sm:$0xf]
        %v1737 = vld [vmem:[%s7 + $0xc4] sm:$0xf]
        %v1738 = vld [vmem:[%s7 + $0xc8] sm:$0xf]
        %v1739 = vld [vmem:[%s7 + $0xcc] sm:$0xf]
        %v1740 = vld [vmem:[%s7 + $0xd0] sm:$0xf]
        %v1741 = vld [vmem:[%s7 + $0xd4] sm:$0xf]
        %v1742 = vld [vmem:[%s7 + $0xd8] sm:$0xf]
        %v1743 = vld [vmem:[%s7 + $0xdc] sm:$0xf]
        %v1744 = vld [vmem:[%s7 + $0xe0] sm:$0xf]
        %v1745 = vld [vmem:[%s7 + $0xe4] sm:$0xf]
        %v1746 = vld [vmem:[%s7 + $0xe8] sm:$0xf]
        %v1747 = vld [vmem:[%s7 + $0xec] sm:$0xf]
        %v1748 = vld [vmem:[%s7 + $0xf0] sm:$0xf]
        %v1749 = vld [vmem:[%s7 + $0xf4] sm:$0xf]
        %v1750 = vld [vmem:[%s7 + $0xf8] sm:$0xf]
        %v1751 = vld [vmem:[%s7 + $0xfc] sm:$0xf]
        %v1752 = vld [vmem:[%s7 + $0x100] sm:$0xf]
        %v1753 = vld [vmem:[%s7 + $0x104] sm:$0xf]
        %v1754 = vld [vmem:[%s7 + $0x108] sm:$0xf]
        %v1755 = vld [vmem:[%s7 + $0x10c] sm:$0xf]
        %v1756 = vld [vmem:[%s7 + $0x110] sm:$0xf]
        %v1757 = vld [vmem:[%s7 + $0x114] sm:$0xf]
        %v1758 = vld [vmem:[%s7 + $0x118] sm:$0xf]
        %v1759 = vld [vmem:[%s7 + $0x11c] sm:$0xf]
        %v1760 = vld [vmem:[%s7 + $0x120] sm:$0xf]
        %v1761 = vld [vmem:[%s7 + $0x124] sm:$0xf]
        %v1762 = vld [vmem:[%s7 + $0x128] sm:$0xf]
        %v1763 = vld [vmem:[%s7 + $0x12c] sm:$0xf]
        %v1764 = vld [vmem:[%s7 + $0x130] sm:$0xf]
        %v1765 = vld [vmem:[%s7 + $0x134] sm:$0xf]
        %v1766 = vld [vmem:[%s7 + $0x138] sm:$0xf]
        %v1767 = vld [vmem:[%s7 + $0x13c] sm:$0xf]
        %v1768 = vld [vmem:[%s7 + $0x140] sm:$0xf]
        %v1769 = vld [vmem:[%s7 + $0x144] sm:$0xf]
        %v1770 = vld [vmem:[%s7 + $0x148] sm:$0xf]
        %v1771 = vld [vmem:[%s7 + $0x14c] sm:$0xf]
        %v1772 = vld [vmem:[%s7 + $0x150] sm:$0xf]
        %v1773 = vld [vmem:[%s7 + $0x154] sm:$0xf]
        %v1774 = vld [vmem:[%s7 + $0x158] sm:$0xf]
        %v1775 = vld [vmem:[%s7 + $0x15c] sm:$0xf]
        %v1776 = vld [vmem:[%s7 + $0x160] sm:$0xf]
        %v1777 = vld [vmem:[%s7 + $0x164] sm:$0xf]
        %v1778 = vld [vmem:[%s7 + $0x168] sm:$0xf]
        %v1779 = vld [vmem:[%s7 + $0x16c] sm:$0xf]
        %v1780 = vld [vmem:[%s7 + $0x170] sm:$0xf]
        %v1781 = vld [vmem:[%s7 + $0x174] sm:$0xf]
        %v1782 = vld [vmem:[%s7 + $0x178] sm:$0xf]
        %v1783 = vld [vmem:[%s7 + $0x17c] sm:$0xf]
        %v1784 = vld [vmem:[%s7 + $0x180] sm:$0xf]
        %v1785 = vld [vmem:[%s7 + $0x184] sm:$0xf]
        %v1786 = vld [vmem:[%s7 + $0x188] sm:$0xf]
        %v1787 = vld [vmem:[%s7 + $0x18c] sm:$0xf]
        %v1788 = vld [vmem:[%s7 + $0x190] sm:$0xf]
        %v1789 = vld [vmem:[%s7 + $0x194] sm:$0xf]
        %v1790 = vld [vmem:[%s7 + $0x198] sm:$0xf]
        %v1791 = vld [vmem:[%s7 + $0x19c] sm:$0xf]
        %v1792 = vld [vmem:[%s7 + $0x1a0] sm:$0xf]
        %v1793 = vld [vmem:[%s7 + $0x1a4] sm:$0xf]
        %v1794 = vld [vmem:[%s7 + $0x1a8] sm:$0xf]
        %v1795 = vld [vmem:[%s7 + $0x1ac] sm:$0xf]
        %v1796 = vld [vmem:[%s7 + $0x1b0] sm:$0xf]
        %v1797 = vld [vmem:[%s7 + $0x1b4] sm:$0xf]
        %v1798 = vld [vmem:[%s7 + $0x1b8] sm:$0xf]
        %v1799 = vld [vmem:[%s7 + $0x1bc] sm:$0xf]
        %v1800 = vld [vmem:[%s7 + $0x1c0] sm:$0xf]
        %v1801 = vld [vmem:[%s7 + $0x1c4] sm:$0xf]
        %v1802 = vld [vmem:[%s7 + $0x1c8] sm:$0xf]
        %v1803 = vld [vmem:[%s7 + $0x1cc] sm:$0xf]
        %v1804 = vld [vmem:[%s7 + $0x1d0] sm:$0xf]
        %v1805 = vld [vmem:[%s7 + $0x1d4] sm:$0xf]
        %v1806 = vld [vmem:[%s7 + $0x1d8] sm:$0xf]
        %v1807 = vld [vmem:[%s7 + $0x1dc] sm:$0xf]
        %v1808 = vld [vmem:[%s7 + $0x1e0] sm:$0xf]
        %v1809 = vld [vmem:[%s7 + $0x1e4] sm:$0xf]
        %v1810 = vld [vmem:[%s7 + $0x1e8] sm:$0xf]
        %v1811 = vld [vmem:[%s7 + $0x1ec] sm:$0xf]
        %v1812 = vld [vmem:[%s7 + $0x1f0] sm:$0xf]
        %v1813 = vld [vmem:[%s7 + $0x1f4] sm:$0xf]
        %v1814 = vld [vmem:[%s7 + $0x1f8] sm:$0xf]
        %v1815 = vld [vmem:[%s7 + $0x1fc] sm:$0xf]
        %v1816 = vld [vmem:[%s7 + $0x200] sm:$0xf]
        %v1817 = vld [vmem:[%s7 + $0x204] sm:$0xf]
        %v1818 = vld [vmem:[%s7 + $0x208] sm:$0xf]
        %v1819 = vld [vmem:[%s7 + $0x20c] sm:$0xf]
        %v1820 = vld [vmem:[%s7 + $0x210] sm:$0xf]
        %v1821 = vld [vmem:[%s7 + $0x214] sm:$0xf]
        %v1822 = vld [vmem:[%s7 + $0x218] sm:$0xf]
        %v1823 = vld [vmem:[%s7 + $0x21c] sm:$0xf]
        %v1824 = vld [vmem:[%s7 + $0x220] sm:$0xf]
        %v1825 = vld [vmem:[%s7 + $0x224] sm:$0xf]
        %v1826 = vld [vmem:[%s7 + $0x228] sm:$0xf]
        %v1827 = vld [vmem:[%s7 + $0x22c] sm:$0xf]
        %v1828 = vld [vmem:[%s7 + $0x230] sm:$0xf]
        %v1829 = vld [vmem:[%s7 + $0x234] sm:$0xf]
        %v1830 = vld [vmem:[%s7 + $0x238] sm:$0xf]
        %v1831 = vld [vmem:[%s7 + $0x23c] sm:$0xf]
        %v1832 = vld [vmem:[%s7 + $0x240] sm:$0xf]
        %v1833 = vld [vmem:[%s7 + $0x244] sm:$0xf]
        %v1834 = vld [vmem:[%s7 + $0x248] sm:$0xf]
        %v1835 = vld [vmem:[%s7 + $0x24c] sm:$0xf]
        %v1836 = vld [vmem:[%s7 + $0x250] sm:$0xf]
        %v1837 = vld [vmem:[%s7 + $0x254] sm:$0xf]
        %v1838 = vld [vmem:[%s7 + $0x258] sm:$0xf]
        %v1839 = vld [vmem:[%s7 + $0x25c] sm:$0xf]
        %v1840 = vld [vmem:[%s7 + $0x260] sm:$0xf]
        %v1841 = vld [vmem:[%s7 + $0x264] sm:$0xf]
        %v1842 = vld [vmem:[%s7 + $0x268] sm:$0xf]
        %v1843 = vld [vmem:[%s7 + $0x26c] sm:$0xf]
        %v1844 = vld [vmem:[%s7 + $0x270] sm:$0xf]
        %v1845 = vld [vmem:[%s7 + $0x274] sm:$0xf]
        %v1846 = vld [vmem:[%s7 + $0x278] sm:$0xf]
        %v1847 = vld [vmem:[%s7 + $0x27c] sm:$0xf]
        %v1848 = vld [vmem:[%s7 + $0x280] sm:$0xf]
        %v1849 = vld [vmem:[%s7 + $0x284] sm:$0xf]
        %v1850 = vld [vmem:[%s7 + $0x288] sm:$0xf]
        %v1851 = vld [vmem:[%s7 + $0x28c] sm:$0xf]
        %v1852 = vld [vmem:[%s7 + $0x290] sm:$0xf]
        %v1853 = vld [vmem:[%s7 + $0x294] sm:$0xf]
        %v1854 = vld [vmem:[%s7 + $0x298] sm:$0xf]
        %v1855 = vld [vmem:[%s7 + $0x29c] sm:$0xf]
        %v1856 = vld [vmem:[%s7 + $0x2a0] sm:$0xf]
        %v1857 = vld [vmem:[%s7 + $0x2a4] sm:$0xf]
        %v1858 = vld [vmem:[%s7 + $0x2a8] sm:$0xf]
        %v1859 = vld [vmem:[%s7 + $0x2ac] sm:$0xf]
        %v1860 = vld [vmem:[%s7 + $0x2b0] sm:$0xf]
        %v1861 = vld [vmem:[%s7 + $0x2b4] sm:$0xf]
        %v1862 = vld [vmem:[%s7 + $0x2b8] sm:$0xf]
        %v1863 = vld [vmem:[%s7 + $0x2bc] sm:$0xf]
        %v1864 = vld [vmem:[%s7 + $0x2c0] sm:$0xf]
        %v1865 = vld [vmem:[%s7 + $0x2c4] sm:$0xf]
        %v1866 = vld [vmem:[%s7 + $0x2c8] sm:$0xf]
        %v1867 = vld [vmem:[%s7 + $0x2cc] sm:$0xf]
        %v1868 = vld [vmem:[%s7 + $0x2d0] sm:$0xf]
        %v1869 = vld [vmem:[%s7 + $0x2d4] sm:$0xf]
        %v1870 = vld [vmem:[%s7 + $0x2d8] sm:$0xf]
        %v1871 = vld [vmem:[%s7 + $0x2dc] sm:$0xf]
        %v1872 = vld [vmem:[%s7 + $0x2e0] sm:$0xf]
        %v1873 = vld [vmem:[%s7 + $0x2e4] sm:$0xf]
        %v1874 = vld [vmem:[%s7 + $0x2e8] sm:$0xf]
        %v1875 = vld [vmem:[%s7 + $0x2ec] sm:$0xf]
        %v1876 = vld [vmem:[%s7 + $0x2f0] sm:$0xf]
        %v1877 = vld [vmem:[%s7 + $0x2f4] sm:$0xf]
        %v1878 = vld [vmem:[%s7 + $0x2f8] sm:$0xf]
        %v1879 = vld [vmem:[%s7 + $0x2fc] sm:$0xf]
        %v1880 = vld [vmem:[%s7 + $0x300] sm:$0xf]
        %v1881 = vld [vmem:[%s7 + $0x304] sm:$0xf]
        %v1882 = vld [vmem:[%s7 + $0x308] sm:$0xf]
        %v1883 = vld [vmem:[%s7 + $0x30c] sm:$0xf]
        %v1884 = vld [vmem:[%s7 + $0x310] sm:$0xf]
        %v1885 = vld [vmem:[%s7 + $0x314] sm:$0xf]
        %v1886 = vld [vmem:[%s7 + $0x318] sm:$0xf]
        %v1887 = vld [vmem:[%s7 + $0x31c] sm:$0xf]
        %v1888 = vld [vmem:[%s7 + $0x320] sm:$0xf]
        %v1889 = vld [vmem:[%s7 + $0x324] sm:$0xf]
        %v1890 = vld [vmem:[%s7 + $0x328] sm:$0xf]
        %v1891 = vld [vmem:[%s7 + $0x32c] sm:$0xf]
        %v1892 = vld [vmem:[%s7 + $0x330] sm:$0xf]
        %v1893 = vld [vmem:[%s7 + $0x334] sm:$0xf]
        %v1894 = vld [vmem:[%s7 + $0x338] sm:$0xf]
        %v1895 = vld [vmem:[%s7 + $0x33c] sm:$0xf]
        %v1896 = vld [vmem:[%s7 + $0x340] sm:$0xf]
        %v1897 = vld [vmem:[%s7 + $0x344] sm:$0xf]
        %v1898 = vld [vmem:[%s7 + $0x348] sm:$0xf]
        %v1899 = vld [vmem:[%s7 + $0x34c] sm:$0xf]
        %v1900 = vld [vmem:[%s7 + $0x350] sm:$0xf]
        %v1901 = vld [vmem:[%s7 + $0x354] sm:$0xf]
        %v1902 = vld [vmem:[%s7 + $0x358] sm:$0xf]
        %v1903 = vld [vmem:[%s7 + $0x35c] sm:$0xf]
        %v1904 = vld [vmem:[%s7 + $0x360] sm:$0xf]
        %v1905 = vld [vmem:[%s7 + $0x364] sm:$0xf]
        %v1906 = vld [vmem:[%s7 + $0x368] sm:$0xf]
        %v1907 = vld [vmem:[%s7 + $0x36c] sm:$0xf]
        %v1908 = vld [vmem:[%s7 + $0x370] sm:$0xf]
        %v1909 = vld [vmem:[%s7 + $0x374] sm:$0xf]
        %v1910 = vld [vmem:[%s7 + $0x378] sm:$0xf]
        %v1911 = vld [vmem:[%s7 + $0x37c] sm:$0xf]
        %v1912 = vld [vmem:[%s7 + $0x380] sm:$0xf]
        %v1913 = vld [vmem:[%s7 + $0x384] sm:$0xf]
        %v1914 = vld [vmem:[%s7 + $0x388] sm:$0xf]
        %v1915 = vld [vmem:[%s7 + $0x38c] sm:$0xf]
        %v1916 = vld [vmem:[%s7 + $0x390] sm:$0xf]
        %v1917 = vld [vmem:[%s7 + $0x394] sm:$0xf]
        %v1918 = vld [vmem:[%s7 + $0x398] sm:$0xf]
        %v1919 = vld [vmem:[%s7 + $0x39c] sm:$0xf]
        %v1920 = vld [vmem:[%s7 + $0x3a0] sm:$0xf]
        %v1921 = vld [vmem:[%s7 + $0x3a4] sm:$0xf]
        %v1922 = vld [vmem:[%s7 + $0x3a8] sm:$0xf]
        %v1923 = vld [vmem:[%s7 + $0x3ac] sm:$0xf]
        %v1924 = vld [vmem:[%s7 + $0x3b0] sm:$0xf]
        %v1925 = vld [vmem:[%s7 + $0x3b4] sm:$0xf]
        %v1926 = vld [vmem:[%s7 + $0x3b8] sm:$0xf]
        %v1927 = vld [vmem:[%s7 + $0x3bc] sm:$0xf]
        %v1928 = vld [vmem:[%s7 + $0x3c0] sm:$0xf]
        %v1929 = vld [vmem:[%s7 + $0x3c4] sm:$0xf]
        %v1930 = vld [vmem:[%s7 + $0x3c8] sm:$0xf]
        %v1931 = vld [vmem:[%s7 + $0x3cc] sm:$0xf]
        %v1932 = vld [vmem:[%s7 + $0x3d0] sm:$0xf]
        %v1933 = vld [vmem:[%s7 + $0x3d4] sm:$0xf]
        %v1934 = vld [vmem:[%s7 + $0x3d8] sm:$0xf]
        %v1935 = vld [vmem:[%s7 + $0x3dc] sm:$0xf]
        %v1936 = vld [vmem:[%s7 + $0x3e0] sm:$0xf]
        %v1937 = vld [vmem:[%s7 + $0x3e4] sm:$0xf]
        %v1938 = vld [vmem:[%s7 + $0x3e8] sm:$0xf]
        %v1939 = vld [vmem:[%s7 + $0x3ec] sm:$0xf]
        %v1940 = vld [vmem:[%s7 + $0x3f0] sm:$0xf]
        %v1941 = vld [vmem:[%s7 + $0x3f4] sm:$0xf]
        %v1942 = vld [vmem:[%s7 + $0x3f8] sm:$0xf]
        %v1943 = vld [vmem:[%s7 + $0x3fc] sm:$0xf]
        %v1944 = vlaneseq
        %v1945 = vshrl.u32 %v1944, 7
        %v1946 = vsub.s32 3, %v1945
        %v1947 = vrot.slane %v363, %v1946
        %v2204 = vunpack.c.l.b16 %v1688
        %v2205 = vunpack.c.l.b16 %v1689
        %v2206 = vunpack.c.l.b16 %v1690
        %v2207 = vunpack.c.l.b16 %v1691
        %v2208 = vunpack.c.l.b16 %v1692
        %v2209 = vunpack.c.l.b16 %v1693
        %v2210 = vunpack.c.l.b16 %v1694
        %v2211 = vunpack.c.l.b16 %v1695
        %v2212 = vunpack.c.l.b16 %v1696
        %v2213 = vunpack.c.l.b16 %v1697
        %v2214 = vunpack.c.l.b16 %v1698
        %v2215 = vunpack.c.l.b16 %v1699
        %v2216 = vunpack.c.l.b16 %v1700
        %v2217 = vunpack.c.l.b16 %v1701
        %v2218 = vunpack.c.l.b16 %v1702
        %v2219 = vunpack.c.l.b16 %v1703
        %v2220 = vunpack.c.l.b16 %v1704
        %v2221 = vunpack.c.l.b16 %v1705
        %v2222 = vunpack.c.l.b16 %v1706
        %v2223 = vunpack.c.l.b16 %v1707
        %v2224 = vunpack.c.l.b16 %v1708
        %v2225 = vunpack.c.l.b16 %v1709
        %v2226 = vunpack.c.l.b16 %v1710
        %v2227 = vunpack.c.l.b16 %v1711
        %v2228 = vunpack.c.l.b16 %v1712
        %v2229 = vunpack.c.l.b16 %v1713
        %v2230 = vunpack.c.l.b16 %v1714
        %v2231 = vunpack.c.l.b16 %v1715
        %v2232 = vunpack.c.l.b16 %v1716
        %v2233 = vunpack.c.l.b16 %v1717
        %v2234 = vunpack.c.l.b16 %v1718
        %v2235 = vunpack.c.l.b16 %v1719
        %v2236 = vunpack.c.l.b16 %v1720
        %v2237 = vunpack.c.l.b16 %v1721
        %v2238 = vunpack.c.l.b16 %v1722
        %v2239 = vunpack.c.l.b16 %v1723
        %v2240 = vunpack.c.l.b16 %v1724
        %v2241 = vunpack.c.l.b16 %v1725
        %v2242 = vunpack.c.l.b16 %v1726
        %v2243 = vunpack.c.l.b16 %v1727
        %v2244 = vunpack.c.l.b16 %v1728
        %v2245 = vunpack.c.l.b16 %v1729
        %v2246 = vunpack.c.l.b16 %v1730
        %v2247 = vunpack.c.l.b16 %v1731
        %v2248 = vunpack.c.l.b16 %v1732
        %v2249 = vunpack.c.l.b16 %v1733
        %v2250 = vunpack.c.l.b16 %v1734
        %v2251 = vunpack.c.l.b16 %v1735
        %v2252 = vunpack.c.l.b16 %v1736
        %v2253 = vunpack.c.l.b16 %v1737
        %v2254 = vunpack.c.l.b16 %v1738
        %v2255 = vunpack.c.l.b16 %v1739
        %v2256 = vunpack.c.l.b16 %v1740
        %v2257 = vunpack.c.l.b16 %v1741
        %v2258 = vunpack.c.l.b16 %v1742
        %v2259 = vunpack.c.l.b16 %v1743
        %v2260 = vunpack.c.l.b16 %v1744
        %v2261 = vunpack.c.l.b16 %v1745
        %v2262 = vunpack.c.l.b16 %v1746
        %v2263 = vunpack.c.l.b16 %v1747
        %v2264 = vunpack.c.l.b16 %v1748
        %v2265 = vunpack.c.l.b16 %v1749
        %v2266 = vunpack.c.l.b16 %v1750
        %v2267 = vunpack.c.l.b16 %v1751
        %v2268 = vunpack.c.l.b16 %v1752
        %v2269 = vunpack.c.l.b16 %v1753
        %v2270 = vunpack.c.l.b16 %v1754
        %v2271 = vunpack.c.l.b16 %v1755
        %v2272 = vunpack.c.l.b16 %v1756
        %v2273 = vunpack.c.l.b16 %v1757
        %v2274 = vunpack.c.l.b16 %v1758
        %v2275 = vunpack.c.l.b16 %v1759
        %v2276 = vunpack.c.l.b16 %v1760
        %v2277 = vunpack.c.l.b16 %v1761
        %v2278 = vunpack.c.l.b16 %v1762
        %v2279 = vunpack.c.l.b16 %v1763
        %v2280 = vunpack.c.l.b16 %v1764
        %v2281 = vunpack.c.l.b16 %v1765
        %v2282 = vunpack.c.l.b16 %v1766
        %v2283 = vunpack.c.l.b16 %v1767
        %v2284 = vunpack.c.l.b16 %v1768
        %v2285 = vunpack.c.l.b16 %v1769
        %v2286 = vunpack.c.l.b16 %v1770
        %v2287 = vunpack.c.l.b16 %v1771
        %v2288 = vunpack.c.l.b16 %v1772
        %v2289 = vunpack.c.l.b16 %v1773
        %v2290 = vunpack.c.l.b16 %v1774
        %v2291 = vunpack.c.l.b16 %v1775
        %v2292 = vunpack.c.l.b16 %v1776
        %v2293 = vunpack.c.l.b16 %v1777
        %v2294 = vunpack.c.l.b16 %v1778
        %v2295 = vunpack.c.l.b16 %v1779
        %v2296 = vunpack.c.l.b16 %v1780
        %v2297 = vunpack.c.l.b16 %v1781
        %v2298 = vunpack.c.l.b16 %v1782
        %v2299 = vunpack.c.l.b16 %v1783
        %v2300 = vunpack.c.l.b16 %v1784
        %v2301 = vunpack.c.l.b16 %v1785
        %v2302 = vunpack.c.l.b16 %v1786
        %v2303 = vunpack.c.l.b16 %v1787
        %v2304 = vunpack.c.l.b16 %v1788
        %v2305 = vunpack.c.l.b16 %v1789
        %v2306 = vunpack.c.l.b16 %v1790
        %v2307 = vunpack.c.l.b16 %v1791
        %v2308 = vunpack.c.l.b16 %v1792
        %v2309 = vunpack.c.l.b16 %v1793
        %v2310 = vunpack.c.l.b16 %v1794
        %v2311 = vunpack.c.l.b16 %v1795
        %v2312 = vunpack.c.l.b16 %v1796
        %v2313 = vunpack.c.l.b16 %v1797
        %v2314 = vunpack.c.l.b16 %v1798
        %v2315 = vunpack.c.l.b16 %v1799
        %v2316 = vunpack.c.l.b16 %v1800
        %v2317 = vunpack.c.l.b16 %v1801
        %v2318 = vunpack.c.l.b16 %v1802
        %v2319 = vunpack.c.l.b16 %v1803
        %v2320 = vunpack.c.l.b16 %v1804
        %v2321 = vunpack.c.l.b16 %v1805
        %v2322 = vunpack.c.l.b16 %v1806
        %v2323 = vunpack.c.l.b16 %v1807
        %v2324 = vunpack.c.l.b16 %v1808
        %v2325 = vunpack.c.l.b16 %v1809
        %v2326 = vunpack.c.l.b16 %v1810
        %v2327 = vunpack.c.l.b16 %v1811
        %v2328 = vunpack.c.l.b16 %v1812
        %v2329 = vunpack.c.l.b16 %v1813
        %v2330 = vunpack.c.l.b16 %v1814
        %v2331 = vunpack.c.l.b16 %v1815
        %v2332 = vunpack.c.l.b16 %v1816
        %v2333 = vunpack.c.l.b16 %v1817
        %v2334 = vunpack.c.l.b16 %v1818
        %v2335 = vunpack.c.l.b16 %v1819
        %v2336 = vunpack.c.l.b16 %v1820
        %v2337 = vunpack.c.l.b16 %v1821
        %v2338 = vunpack.c.l.b16 %v1822
        %v2339 = vunpack.c.l.b16 %v1823
        %v2340 = vunpack.c.l.b16 %v1824
        %v2341 = vunpack.c.l.b16 %v1825
        %v2342 = vunpack.c.l.b16 %v1826
        %v2343 = vunpack.c.l.b16 %v1827
        %v2344 = vunpack.c.l.b16 %v1828
        %v2345 = vunpack.c.l.b16 %v1829
        %v2346 = vunpack.c.l.b16 %v1830
        %v2347 = vunpack.c.l.b16 %v1831
        %v2348 = vunpack.c.l.b16 %v1832
        %v2349 = vunpack.c.l.b16 %v1833
        %v2350 = vunpack.c.l.b16 %v1834
        %v2351 = vunpack.c.l.b16 %v1835
        %v2352 = vunpack.c.l.b16 %v1836
        %v2353 = vunpack.c.l.b16 %v1837
        %v2354 = vunpack.c.l.b16 %v1838
        %v2355 = vunpack.c.l.b16 %v1839
        %v2356 = vunpack.c.l.b16 %v1840
        %v2357 = vunpack.c.l.b16 %v1841
        %v2358 = vunpack.c.l.b16 %v1842
        %v2359 = vunpack.c.l.b16 %v1843
        %v2360 = vunpack.c.l.b16 %v1844
        %v2361 = vunpack.c.l.b16 %v1845
        %v2362 = vunpack.c.l.b16 %v1846
        %v2363 = vunpack.c.l.b16 %v1847
        %v2364 = vunpack.c.l.b16 %v1848
        %v2365 = vunpack.c.l.b16 %v1849
        %v2366 = vunpack.c.l.b16 %v1850
        %v2367 = vunpack.c.l.b16 %v1851
        %v2368 = vunpack.c.l.b16 %v1852
        %v2369 = vunpack.c.l.b16 %v1853
        %v2370 = vunpack.c.l.b16 %v1854
        %v2371 = vunpack.c.l.b16 %v1855
        %v2372 = vunpack.c.l.b16 %v1856
        %v2373 = vunpack.c.l.b16 %v1857
        %v2374 = vunpack.c.l.b16 %v1858
        %v2375 = vunpack.c.l.b16 %v1859
        %v2376 = vunpack.c.l.b16 %v1860
        %v2377 = vunpack.c.l.b16 %v1861
        %v2378 = vunpack.c.l.b16 %v1862
        %v2379 = vunpack.c.l.b16 %v1863
        %v2380 = vunpack.c.l.b16 %v1864
        %v2381 = vunpack.c.l.b16 %v1865
        %v2382 = vunpack.c.l.b16 %v1866
        %v2383 = vunpack.c.l.b16 %v1867
        %v2384 = vunpack.c.l.b16 %v1868
        %v2385 = vunpack.c.l.b16 %v1869
        %v2386 = vunpack.c.l.b16 %v1870
        %v2387 = vunpack.c.l.b16 %v1871
        %v2388 = vunpack.c.l.b16 %v1872
        %v2389 = vunpack.c.l.b16 %v1873
        %v2390 = vunpack.c.l.b16 %v1874
        %v2391 = vunpack.c.l.b16 %v1875
        %v2392 = vunpack.c.l.b16 %v1876
        %v2393 = vunpack.c.l.b16 %v1877
        %v2394 = vunpack.c.l.b16 %v1878
        %v2395 = vunpack.c.l.b16 %v1879
        %v2396 = vunpack.c.l.b16 %v1880
        %v2397 = vunpack.c.l.b16 %v1881
        %v2398 = vunpack.c.l.b16 %v1882
        %v2399 = vunpack.c.l.b16 %v1883
        %v2400 = vunpack.c.l.b16 %v1884
        %v2401 = vunpack.c.l.b16 %v1885
        %v2402 = vunpack.c.l.b16 %v1886
        %v2403 = vunpack.c.l.b16 %v1887
        %v2404 = vunpack.c.l.b16 %v1888
        %v2405 = vunpack.c.l.b16 %v1889
        %v2406 = vunpack.c.l.b16 %v1890
        %v2407 = vunpack.c.l.b16 %v1891
        %v2408 = vunpack.c.l.b16 %v1892
        %v2409 = vunpack.c.l.b16 %v1893
        %v2410 = vunpack.c.l.b16 %v1894
        %v2411 = vunpack.c.l.b16 %v1895
        %v2412 = vunpack.c.l.b16 %v1896
        %v2413 = vunpack.c.l.b16 %v1897
        %v2414 = vunpack.c.l.b16 %v1898
        %v2415 = vunpack.c.l.b16 %v1899
        %v2416 = vunpack.c.l.b16 %v1900
        %v2417 = vunpack.c.l.b16 %v1901
        %v2418 = vunpack.c.l.b16 %v1902
        %v2419 = vunpack.c.l.b16 %v1903
        %v2420 = vunpack.c.l.b16 %v1904
        %v2421 = vunpack.c.l.b16 %v1905
        %v2422 = vunpack.c.l.b16 %v1906
        %v2423 = vunpack.c.l.b16 %v1907
        %v2424 = vunpack.c.l.b16 %v1908
        %v2425 = vunpack.c.l.b16 %v1909
        %v2426 = vunpack.c.l.b16 %v1910
        %v2427 = vunpack.c.l.b16 %v1911
        %v2428 = vunpack.c.l.b16 %v1912
        %v2429 = vunpack.c.l.b16 %v1913
        %v2430 = vunpack.c.l.b16 %v1914
        %v2431 = vunpack.c.l.b16 %v1915
        %v2432 = vunpack.c.l.b16 %v1916
        %v2433 = vunpack.c.l.b16 %v1917
        %v2434 = vunpack.c.l.b16 %v1918
        %v2435 = vunpack.c.l.b16 %v1919
        %v2436 = vunpack.c.l.b16 %v1920
        %v2437 = vunpack.c.l.b16 %v1921
        %v2438 = vunpack.c.l.b16 %v1922
        %v2439 = vunpack.c.l.b16 %v1923
        %v2440 = vunpack.c.l.b16 %v1924
        %v2441 = vunpack.c.l.b16 %v1925
        %v2442 = vunpack.c.l.b16 %v1926
        %v2443 = vunpack.c.l.b16 %v1927
        %v2444 = vunpack.c.l.b16 %v1928
        %v2445 = vunpack.c.l.b16 %v1929
        %v2446 = vunpack.c.l.b16 %v1930
        %v2447 = vunpack.c.l.b16 %v1931
        %v2448 = vunpack.c.l.b16 %v1932
        %v2449 = vunpack.c.l.b16 %v1933
        %v2450 = vunpack.c.l.b16 %v1934
        %v2451 = vunpack.c.l.b16 %v1935
        %v2452 = vunpack.c.l.b16 %v1936
        %v2453 = vunpack.c.l.b16 %v1937
        %v2454 = vunpack.c.l.b16 %v1938
        %v2455 = vunpack.c.l.b16 %v1939
        %v2456 = vunpack.c.l.b16 %v1940
        %v2457 = vunpack.c.l.b16 %v1941
        %v2458 = vunpack.c.l.b16 %v1942
        %v2459 = vunpack.c.l.b16 %v1943
        %v2460 = vpack.c.b16 %v2205, %v2204
        %v2461 = vpack.c.b16 %v2207, %v2206
        %v2462 = vpack.c.b16 %v2209, %v2208
        %v2463 = vpack.c.b16 %v2211, %v2210
        %v2464 = vpack.c.b16 %v2213, %v2212
        %v2465 = vpack.c.b16 %v2215, %v2214
        %v2466 = vpack.c.b16 %v2217, %v2216
        %v2467 = vpack.c.b16 %v2219, %v2218
        %v2468 = vpack.c.b16 %v2221, %v2220
        %v2469 = vpack.c.b16 %v2223, %v2222
        %v2470 = vpack.c.b16 %v2225, %v2224
        %v2471 = vpack.c.b16 %v2227, %v2226
        %v2472 = vpack.c.b16 %v2229, %v2228
        %v2473 = vpack.c.b16 %v2231, %v2230
        %v2474 = vpack.c.b16 %v2233, %v2232
        %v2475 = vpack.c.b16 %v2235, %v2234
        %v2476 = vpack.c.b16 %v2237, %v2236
        %v2477 = vpack.c.b16 %v2239, %v2238
        %v2478 = vpack.c.b16 %v2241, %v2240
        %v2479 = vpack.c.b16 %v2243, %v2242
        %v2480 = vpack.c.b16 %v2245, %v2244
        %v2481 = vpack.c.b16 %v2247, %v2246
        %v2482 = vpack.c.b16 %v2249, %v2248
        %v2483 = vpack.c.b16 %v2251, %v2250
        %v2484 = vpack.c.b16 %v2253, %v2252
        %v2485 = vpack.c.b16 %v2255, %v2254
        %v2486 = vpack.c.b16 %v2257, %v2256
        %v2487 = vpack.c.b16 %v2259, %v2258
        %v2488 = vpack.c.b16 %v2261, %v2260
        %v2489 = vpack.c.b16 %v2263, %v2262
        %v2490 = vpack.c.b16 %v2265, %v2264
        %v2491 = vpack.c.b16 %v2267, %v2266
        %v2492 = vpack.c.b16 %v2269, %v2268
        %v2493 = vpack.c.b16 %v2271, %v2270
        %v2494 = vpack.c.b16 %v2273, %v2272
        %v2495 = vpack.c.b16 %v2275, %v2274
        %v2496 = vpack.c.b16 %v2277, %v2276
        %v2497 = vpack.c.b16 %v2279, %v2278
        %v2498 = vpack.c.b16 %v2281, %v2280
        %v2499 = vpack.c.b16 %v2283, %v2282
        %v2500 = vpack.c.b16 %v2285, %v2284
        %v2501 = vpack.c.b16 %v2287, %v2286
        %v2502 = vpack.c.b16 %v2289, %v2288
        %v2503 = vpack.c.b16 %v2291, %v2290
        %v2504 = vpack.c.b16 %v2293, %v2292
        %v2505 = vpack.c.b16 %v2295, %v2294
        %v2506 = vpack.c.b16 %v2297, %v2296
        %v2507 = vpack.c.b16 %v2299, %v2298
        %v2508 = vpack.c.b16 %v2301, %v2300
        %v2509 = vpack.c.b16 %v2303, %v2302
        %v2510 = vpack.c.b16 %v2305, %v2304
        %v2511 = vpack.c.b16 %v2307, %v2306
        %v2512 = vpack.c.b16 %v2309, %v2308
        %v2513 = vpack.c.b16 %v2311, %v2310
        %v2514 = vpack.c.b16 %v2313, %v2312
        %v2515 = vpack.c.b16 %v2315, %v2314
        %v2516 = vpack.c.b16 %v2317, %v2316
        %v2517 = vpack.c.b16 %v2319, %v2318
        %v2518 = vpack.c.b16 %v2321, %v2320
        %v2519 = vpack.c.b16 %v2323, %v2322
        %v2520 = vpack.c.b16 %v2325, %v2324
        %v2521 = vpack.c.b16 %v2327, %v2326
        %v2522 = vpack.c.b16 %v2329, %v2328
        %v2523 = vpack.c.b16 %v2331, %v2330
        %v2524 = vpack.c.b16 %v2333, %v2332
        %v2525 = vpack.c.b16 %v2335, %v2334
        %v2526 = vpack.c.b16 %v2337, %v2336
        %v2527 = vpack.c.b16 %v2339, %v2338
        %v2528 = vpack.c.b16 %v2341, %v2340
        %v2529 = vpack.c.b16 %v2343, %v2342
        %v2530 = vpack.c.b16 %v2345, %v2344
        %v2531 = vpack.c.b16 %v2347, %v2346
        %v2532 = vpack.c.b16 %v2349, %v2348
        %v2533 = vpack.c.b16 %v2351, %v2350
        %v2534 = vpack.c.b16 %v2353, %v2352
        %v2535 = vpack.c.b16 %v2355, %v2354
        %v2536 = vpack.c.b16 %v2357, %v2356
        %v2537 = vpack.c.b16 %v2359, %v2358
        %v2538 = vpack.c.b16 %v2361, %v2360
        %v2539 = vpack.c.b16 %v2363, %v2362
        %v2540 = vpack.c.b16 %v2365, %v2364
        %v2541 = vpack.c.b16 %v2367, %v2366
        %v2542 = vpack.c.b16 %v2369, %v2368
        %v2543 = vpack.c.b16 %v2371, %v2370
        %v2544 = vpack.c.b16 %v2373, %v2372
        %v2545 = vpack.c.b16 %v2375, %v2374
        %v2546 = vpack.c.b16 %v2377, %v2376
        %v2547 = vpack.c.b16 %v2379, %v2378
        %v2548 = vpack.c.b16 %v2381, %v2380
        %v2549 = vpack.c.b16 %v2383, %v2382
        %v2550 = vpack.c.b16 %v2385, %v2384
        %v2551 = vpack.c.b16 %v2387, %v2386
        %v2552 = vpack.c.b16 %v2389, %v2388
        %v2553 = vpack.c.b16 %v2391, %v2390
        %v2554 = vpack.c.b16 %v2393, %v2392
        %v2555 = vpack.c.b16 %v2395, %v2394
        %v2556 = vpack.c.b16 %v2397, %v2396
        %v2557 = vpack.c.b16 %v2399, %v2398
        %v2558 = vpack.c.b16 %v2401, %v2400
        %v2559 = vpack.c.b16 %v2403, %v2402
        %v2560 = vpack.c.b16 %v2405, %v2404
        %v2561 = vpack.c.b16 %v2407, %v2406
        %v2562 = vpack.c.b16 %v2409, %v2408
        %v2563 = vpack.c.b16 %v2411, %v2410
        %v2564 = vpack.c.b16 %v2413, %v2412
        %v2565 = vpack.c.b16 %v2415, %v2414
        %v2566 = vpack.c.b16 %v2417, %v2416
        %v2567 = vpack.c.b16 %v2419, %v2418
        %v2568 = vpack.c.b16 %v2421, %v2420
        %v2569 = vpack.c.b16 %v2423, %v2422
        %v2570 = vpack.c.b16 %v2425, %v2424
        %v2571 = vpack.c.b16 %v2427, %v2426
        %v2572 = vpack.c.b16 %v2429, %v2428
        %v2573 = vpack.c.b16 %v2431, %v2430
        %v2574 = vpack.c.b16 %v2433, %v2432
        %v2575 = vpack.c.b16 %v2435, %v2434
        %v2576 = vpack.c.b16 %v2437, %v2436
        %v2577 = vpack.c.b16 %v2439, %v2438
        %v2578 = vpack.c.b16 %v2441, %v2440
        %v2579 = vpack.c.b16 %v2443, %v2442
        %v2580 = vpack.c.b16 %v2445, %v2444
        %v2581 = vpack.c.b16 %v2447, %v2446
        %v2582 = vpack.c.b16 %v2449, %v2448
        %v2583 = vpack.c.b16 %v2451, %v2450
        %v2584 = vpack.c.b16 %v2453, %v2452
        %v2585 = vpack.c.b16 %v2455, %v2454
        %v2586 = vpack.c.b16 %v2457, %v2456
        %v2587 = vpack.c.b16 %v2459, %v2458
        %2716 = vmatprep.subr.bf16.mxu0 0
        %2717 = vmatpush1.bf16.msra.mxu0 %v2460
        %2718 = vmatprep.subr.bf16.mxu0 0
        %2719 = vmatpush1.bf16.msra.mxu0 %v2461
        %2720 = vmatprep.subr.bf16.mxu0 0
        %2721 = vmatpush1.bf16.msra.mxu0 %v2462
        %2722 = vmatprep.subr.bf16.mxu0 0
        %2723 = vmatpush1.bf16.msra.mxu0 %v2463
        %2724 = vmatprep.subr.bf16.mxu0 0
        %2725 = vmatpush1.bf16.msra.mxu0 %v2464
        %2726 = vmatprep.subr.bf16.mxu0 0
        %2727 = vmatpush1.bf16.msra.mxu0 %v2465
        %2728 = vmatprep.subr.bf16.mxu0 0
        %2729 = vmatpush1.bf16.msra.mxu0 %v2466
        %2730 = vmatprep.subr.bf16.mxu0 0
        %2731 = vmatpush1.bf16.msra.mxu0 %v2467
        %2732 = vmatprep.subr.bf16.mxu0 0
        %2733 = vmatpush1.bf16.msra.mxu0 %v2468
        %2734 = vmatprep.subr.bf16.mxu0 0
        %2735 = vmatpush1.bf16.msra.mxu0 %v2469
        %2736 = vmatprep.subr.bf16.mxu0 0
        %2737 = vmatpush1.bf16.msra.mxu0 %v2470
        %2738 = vmatprep.subr.bf16.mxu0 0
        %2739 = vmatpush1.bf16.msra.mxu0 %v2471
        %2740 = vmatprep.subr.bf16.mxu0 0
        %2741 = vmatpush1.bf16.msra.mxu0 %v2472
        %2742 = vmatprep.subr.bf16.mxu0 0
        %2743 = vmatpush1.bf16.msra.mxu0 %v2473
        %2744 = vmatprep.subr.bf16.mxu0 0
        %2745 = vmatpush1.bf16.msra.mxu0 %v2474
        %2746 = vmatprep.subr.bf16.mxu0 0
        %2747 = vmatpush1.bf16.msra.mxu0 %v2475
        %2748 = vmatprep.mubr.bf16.mxu0 %v1673
        %2749 = vmatmul.mubr.bf16.gmra.mrb[0].mxu0 %v1672
        %v2750 = vpop.f32.mrb[0].mxu0
        %v2751 = vadd.f32 %v1947, %v2750
        %v2752 = vpop.f32.mrb[0].mxu0
        %v2753 = vpop.f32.mrb[0].mxu0
        %v2754 = vpop.f32.mrb[0].mxu0
        %2755 = vdwg.mxu0
        %2756 = vmatprep.subr.bf16.mxu0 0
        %2757 = vmatpush1.bf16.msra.mxu0 %v2476
        %2758 = vmatprep.subr.bf16.mxu0 0
        %2759 = vmatpush1.bf16.msra.mxu0 %v2477
        %2760 = vmatprep.subr.bf16.mxu0 0
        %2761 = vmatpush1.bf16.msra.mxu0 %v2478
        %2762 = vmatprep.subr.bf16.mxu0 0
        %2763 = vmatpush1.bf16.msra.mxu0 %v2479
        %2764 = vmatprep.subr.bf16.mxu0 0
        %2765 = vmatpush1.bf16.msra.mxu0 %v2480
        %2766 = vmatprep.subr.bf16.mxu0 0
        %2767 = vmatpush1.bf16.msra.mxu0 %v2481
        %2768 = vmatprep.subr.bf16.mxu0 0
        %2769 = vmatpush1.bf16.msra.mxu0 %v2482
        %2770 = vmatprep.subr.bf16.mxu0 0
        %2771 = vmatpush1.bf16.msra.mxu0 %v2483
        %2772 = vmatprep.subr.bf16.mxu0 0
        %2773 = vmatpush1.bf16.msra.mxu0 %v2484
        %2774 = vmatprep.subr.bf16.mxu0 0
        %2775 = vmatpush1.bf16.msra.mxu0 %v2485
        %2776 = vmatprep.subr.bf16.mxu0 0
        %2777 = vmatpush1.bf16.msra.mxu0 %v2486
        %2778 = vmatprep.subr.bf16.mxu0 0
        %2779 = vmatpush1.bf16.msra.mxu0 %v2487
        %2780 = vmatprep.subr.bf16.mxu0 0
        %2781 = vmatpush1.bf16.msra.mxu0 %v2488
        %2782 = vmatprep.subr.bf16.mxu0 0
        %2783 = vmatpush1.bf16.msra.mxu0 %v2489
        %2784 = vmatprep.subr.bf16.mxu0 0
        %2785 = vmatpush1.bf16.msra.mxu0 %v2490
        %2786 = vmatprep.subr.bf16.mxu0 0
        %2787 = vmatpush1.bf16.msra.mxu0 %v2491
        %2788 = vmatprep.mubr.bf16.mxu0 %v1675
        %2789 = vmatmul.mubr.bf16.gmra.mrb[0].mxu0 %v1674
        %v2790 = vpop.f32.mrb[0].mxu0
        %v2791 = vadd.f32 %v2751, %v2790
        %v2792 = vpop.f32.mrb[0].mxu0
        %v2793 = vpop.f32.mrb[0].mxu0
        %v2794 = vpop.f32.mrb[0].mxu0
        %2795 = vdwg.mxu0
        %2796 = vmatprep.subr.bf16.mxu0 0
        %2797 = vmatpush1.bf16.msra.mxu0 %v2492
        %2798 = vmatprep.subr.bf16.mxu0 0
        %2799 = vmatpush1.bf16.msra.mxu0 %v2493
        %2800 = vmatprep.subr.bf16.mxu0 0
        %2801 = vmatpush1.bf16.msra.mxu0 %v2494
        %2802 = vmatprep.subr.bf16.mxu0 0
        %2803 = vmatpush1.bf16.msra.mxu0 %v2495
        %2804 = vmatprep.subr.bf16.mxu0 0
        %2805 = vmatpush1.bf16.msra.mxu0 %v2496
        %2806 = vmatprep.subr.bf16.mxu0 0
        %2807 = vmatpush1.bf16.msra.mxu0 %v2497
        %2808 = vmatprep.subr.bf16.mxu0 0
        %2809 = vmatpush1.bf16.msra.mxu0 %v2498
        %2810 = vmatprep.subr.bf16.mxu0 0
        %2811 = vmatpush1.bf16.msra.mxu0 %v2499
        %2812 = vmatprep.subr.bf16.mxu0 0
        %2813 = vmatpush1.bf16.msra.mxu0 %v2500
        %2814 = vmatprep.subr.bf16.mxu0 0
        %2815 = vmatpush1.bf16.msra.mxu0 %v2501
        %2816 = vmatprep.subr.bf16.mxu0 0
        %2817 = vmatpush1.bf16.msra.mxu0 %v2502
        %2818 = vmatprep.subr.bf16.mxu0 0
        %2819 = vmatpush1.bf16.msra.mxu0 %v2503
        %2820 = vmatprep.subr.bf16.mxu0 0
        %2821 = vmatpush1.bf16.msra.mxu0 %v2504
        %2822 = vmatprep.subr.bf16.mxu0 0
        %2823 = vmatpush1.bf16.msra.mxu0 %v2505
        %2824 = vmatprep.subr.bf16.mxu0 0
        %2825 = vmatpush1.bf16.msra.mxu0 %v2506
        %2826 = vmatprep.subr.bf16.mxu0 0
        %2827 = vmatpush1.bf16.msra.mxu0 %v2507
        %2828 = vmatprep.mubr.bf16.mxu0 %v1677
        %2829 = vmatmul.mubr.bf16.gmra.mrb[0].mxu0 %v1676
        %v2830 = vpop.f32.mrb[0].mxu0
        %v2831 = vadd.f32 %v2791, %v2830
        %v2832 = vpop.f32.mrb[0].mxu0
        %v2833 = vpop.f32.mrb[0].mxu0
        %v2834 = vpop.f32.mrb[0].mxu0
        %2835 = vdwg.mxu0
        %2836 = vmatprep.subr.bf16.mxu0 0
        %2837 = vmatpush1.bf16.msra.mxu0 %v2508
        %2838 = vmatprep.subr.bf16.mxu0 0
        %2839 = vmatpush1.bf16.msra.mxu0 %v2509
        %2840 = vmatprep.subr.bf16.mxu0 0
        %2841 = vmatpush1.bf16.msra.mxu0 %v2510
        %2842 = vmatprep.subr.bf16.mxu0 0
        %2843 = vmatpush1.bf16.msra.mxu0 %v2511
        %2844 = vmatprep.subr.bf16.mxu0 0
        %2845 = vmatpush1.bf16.msra.mxu0 %v2512
        %2846 = vmatprep.subr.bf16.mxu0 0
        %2847 = vmatpush1.bf16.msra.mxu0 %v2513
        %2848 = vmatprep.subr.bf16.mxu0 0
        %2849 = vmatpush1.bf16.msra.mxu0 %v2514
        %2850 = vmatprep.subr.bf16.mxu0 0
        %2851 = vmatpush1.bf16.msra.mxu0 %v2515
        %2852 = vmatprep.subr.bf16.mxu0 0
        %2853 = vmatpush1.bf16.msra.mxu0 %v2516
        %2854 = vmatprep.subr.bf16.mxu0 0
        %2855 = vmatpush1.bf16.msra.mxu0 %v2517
        %2856 = vmatprep.subr.bf16.mxu0 0
        %2857 = vmatpush1.bf16.msra.mxu0 %v2518
        %2858 = vmatprep.subr.bf16.mxu0 0
        %2859 = vmatpush1.bf16.msra.mxu0 %v2519
        %2860 = vmatprep.subr.bf16.mxu0 0
        %2861 = vmatpush1.bf16.msra.mxu0 %v2520
        %2862 = vmatprep.subr.bf16.mxu0 0
        %2863 = vmatpush1.bf16.msra.mxu0 %v2521
        %2864 = vmatprep.subr.bf16.mxu0 0
        %2865 = vmatpush1.bf16.msra.mxu0 %v2522
        %2866 = vmatprep.subr.bf16.mxu0 0
        %2867 = vmatpush1.bf16.msra.mxu0 %v2523
        %2868 = vmatprep.mubr.bf16.mxu0 %v1679
        %2869 = vmatmul.mubr.bf16.gmra.mrb[0].mxu0 %v1678
        %v2870 = vpop.f32.mrb[0].mxu0
        %v2871 = vadd.f32 %v2831, %v2870
        %v2872 = vpop.f32.mrb[0].mxu0
        %v2873 = vpop.f32.mrb[0].mxu0
        %v2874 = vpop.f32.mrb[0].mxu0
        %2875 = vdwg.mxu0
        %2876 = vmatprep.subr.bf16.mxu0 0
        %2877 = vmatpush1.bf16.msra.mxu0 %v2524
        %2878 = vmatprep.subr.bf16.mxu0 0
        %2879 = vmatpush1.bf16.msra.mxu0 %v2525
        %2880 = vmatprep.subr.bf16.mxu0 0
        %2881 = vmatpush1.bf16.msra.mxu0 %v2526
        %2882 = vmatprep.subr.bf16.mxu0 0
        %2883 = vmatpush1.bf16.msra.mxu0 %v2527
        %2884 = vmatprep.subr.bf16.mxu0 0
        %2885 = vmatpush1.bf16.msra.mxu0 %v2528
        %2886 = vmatprep.subr.bf16.mxu0 0
        %2887 = vmatpush1.bf16.msra.mxu0 %v2529
        %2888 = vmatprep.subr.bf16.mxu0 0
        %2889 = vmatpush1.bf16.msra.mxu0 %v2530
        %2890 = vmatprep.subr.bf16.mxu0 0
        %2891 = vmatpush1.bf16.msra.mxu0 %v2531
        %2892 = vmatprep.subr.bf16.mxu0 0
        %2893 = vmatpush1.bf16.msra.mxu0 %v2532
        %2894 = vmatprep.subr.bf16.mxu0 0
        %2895 = vmatpush1.bf16.msra.mxu0 %v2533
        %2896 = vmatprep.subr.bf16.mxu0 0
        %2897 = vmatpush1.bf16.msra.mxu0 %v2534
        %2898 = vmatprep.subr.bf16.mxu0 0
        %2899 = vmatpush1.bf16.msra.mxu0 %v2535
        %2900 = vmatprep.subr.bf16.mxu0 0
        %2901 = vmatpush1.bf16.msra.mxu0 %v2536
        %2902 = vmatprep.subr.bf16.mxu0 0
        %2903 = vmatpush1.bf16.msra.mxu0 %v2537
        %2904 = vmatprep.subr.bf16.mxu0 0
        %2905 = vmatpush1.bf16.msra.mxu0 %v2538
        %2906 = vmatprep.subr.bf16.mxu0 0
        %2907 = vmatpush1.bf16.msra.mxu0 %v2539
        %2908 = vmatprep.mubr.bf16.mxu0 %v1681
        %2909 = vmatmul.mubr.bf16.gmra.mrb[0].mxu0 %v1680
        %v2910 = vpop.f32.mrb[0].mxu0
        %v2911 = vadd.f32 %v2871, %v2910
        %v2912 = vpop.f32.mrb[0].mxu0
        %v2913 = vpop.f32.mrb[0].mxu0
        %v2914 = vpop.f32.mrb[0].mxu0
        %2915 = vdwg.mxu0
        %2916 = vmatprep.subr.bf16.mxu0 0
        %2917 = vmatpush1.bf16.msra.mxu0 %v2540
        %2918 = vmatprep.subr.bf16.mxu0 0
        %2919 = vmatpush1.bf16.msra.mxu0 %v2541
        %2920 = vmatprep.subr.bf16.mxu0 0
        %2921 = vmatpush1.bf16.msra.mxu0 %v2542
        %2922 = vmatprep.subr.bf16.mxu0 0
        %2923 = vmatpush1.bf16.msra.mxu0 %v2543
        %2924 = vmatprep.subr.bf16.mxu0 0
        %2925 = vmatpush1.bf16.msra.mxu0 %v2544
        %2926 = vmatprep.subr.bf16.mxu0 0
        %2927 = vmatpush1.bf16.msra.mxu0 %v2545
        %2928 = vmatprep.subr.bf16.mxu0 0
        %2929 = vmatpush1.bf16.msra.mxu0 %v2546
        %2930 = vmatprep.subr.bf16.mxu0 0
        %2931 = vmatpush1.bf16.msra.mxu0 %v2547
        %2932 = vmatprep.subr.bf16.mxu0 0
        %2933 = vmatpush1.bf16.msra.mxu0 %v2548
        %2934 = vmatprep.subr.bf16.mxu0 0
        %2935 = vmatpush1.bf16.msra.mxu0 %v2549
        %2936 = vmatprep.subr.bf16.mxu0 0
        %2937 = vmatpush1.bf16.msra.mxu0 %v2550
        %2938 = vmatprep.subr.bf16.mxu0 0
        %2939 = vmatpush1.bf16.msra.mxu0 %v2551
        %2940 = vmatprep.subr.bf16.mxu0 0
        %2941 = vmatpush1.bf16.msra.mxu0 %v2552
        %2942 = vmatprep.subr.bf16.mxu0 0
        %2943 = vmatpush1.bf16.msra.mxu0 %v2553
        %2944 = vmatprep.subr.bf16.mxu0 0
        %2945 = vmatpush1.bf16.msra.mxu0 %v2554
        %2946 = vmatprep.subr.bf16.mxu0 0
        %2947 = vmatpush1.bf16.msra.mxu0 %v2555
        %2948 = vmatprep.mubr.bf16.mxu0 %v1683
        %2949 = vmatmul.mubr.bf16.gmra.mrb[0].mxu0 %v1682
        %v2950 = vpop.f32.mrb[0].mxu0
        %v2951 = vadd.f32 %v2911, %v2950
        %v2952 = vpop.f32.mrb[0].mxu0
        %v2953 = vpop.f32.mrb[0].mxu0
        %v2954 = vpop.f32.mrb[0].mxu0
        %2955 = vdwg.mxu0
        %2956 = vmatprep.subr.bf16.mxu0 0
        %2957 = vmatpush1.bf16.msra.mxu0 %v2556
        %2958 = vmatprep.subr.bf16.mxu0 0
        %2959 = vmatpush1.bf16.msra.mxu0 %v2557
        %2960 = vmatprep.subr.bf16.mxu0 0
        %2961 = vmatpush1.bf16.msra.mxu0 %v2558
        %2962 = vmatprep.subr.bf16.mxu0 0
        %2963 = vmatpush1.bf16.msra.mxu0 %v2559
        %2964 = vmatprep.subr.bf16.mxu0 0
        %2965 = vmatpush1.bf16.msra.mxu0 %v2560
        %2966 = vmatprep.subr.bf16.mxu0 0
        %2967 = vmatpush1.bf16.msra.mxu0 %v2561
        %2968 = vmatprep.subr.bf16.mxu0 0
        %2969 = vmatpush1.bf16.msra.mxu0 %v2562
        %2970 = vmatprep.subr.bf16.mxu0 0
        %2971 = vmatpush1.bf16.msra.mxu0 %v2563
        %2972 = vmatprep.subr.bf16.mxu0 0
        %2973 = vmatpush1.bf16.msra.mxu0 %v2564
        %2974 = vmatprep.subr.bf16.mxu0 0
        %2975 = vmatpush1.bf16.msra.mxu0 %v2565
        %2976 = vmatprep.subr.bf16.mxu0 0
        %2977 = vmatpush1.bf16.msra.mxu0 %v2566
        %2978 = vmatprep.subr.bf16.mxu0 0
        %2979 = vmatpush1.bf16.msra.mxu0 %v2567
        %2980 = vmatprep.subr.bf16.mxu0 0
        %2981 = vmatpush1.bf16.msra.mxu0 %v2568
        %2982 = vmatprep.subr.bf16.mxu0 0
        %2983 = vmatpush1.bf16.msra.mxu0 %v2569
        %2984 = vmatprep.subr.bf16.mxu0 0
        %2985 = vmatpush1.bf16.msra.mxu0 %v2570
        %2986 = vmatprep.subr.bf16.mxu0 0
        %2987 = vmatpush1.bf16.msra.mxu0 %v2571
        %2988 = vmatprep.mubr.bf16.mxu0 %v1685
        %2989 = vmatmul.mubr.bf16.gmra.mrb[0].mxu0 %v1684
        %v2990 = vpop.f32.mrb[0].mxu0
        %v2991 = vadd.f32 %v2951, %v2990
        %v2992 = vpop.f32.mrb[0].mxu0
        %v2993 = vpop.f32.mrb[0].mxu0
        %v2994 = vpop.f32.mrb[0].mxu0
        %2995 = vdwg.mxu0
        %2996 = vmatprep.subr.bf16.mxu0 0
        %2997 = vmatpush1.bf16.msra.mxu0 %v2572
        %2998 = vmatprep.subr.bf16.mxu0 0
        %2999 = vmatpush1.bf16.msra.mxu0 %v2573
        %3000 = vmatprep.subr.bf16.mxu0 0
        %3001 = vmatpush1.bf16.msra.mxu0 %v2574
        %3002 = vmatprep.subr.bf16.mxu0 0
        %3003 = vmatpush1.bf16.msra.mxu0 %v2575
        %3004 = vmatprep.subr.bf16.mxu0 0
        %3005 = vmatpush1.bf16.msra.mxu0 %v2576
        %3006 = vmatprep.subr.bf16.mxu0 0
        %3007 = vmatpush1.bf16.msra.mxu0 %v2577
        %3008 = vmatprep.subr.bf16.mxu0 0
        %3009 = vmatpush1.bf16.msra.mxu0 %v2578
        %3010 = vmatprep.subr.bf16.mxu0 0
        %3011 = vmatpush1.bf16.msra.mxu0 %v2579
        %3012 = vmatprep.subr.bf16.mxu0 0
        %3013 = vmatpush1.bf16.msra.mxu0 %v2580
        %3014 = vmatprep.subr.bf16.mxu0 0
        %3015 = vmatpush1.bf16.msra.mxu0 %v2581
        %3016 = vmatprep.subr.bf16.mxu0 0
        %3017 = vmatpush1.bf16.msra.mxu0 %v2582
        %3018 = vmatprep.subr.bf16.mxu0 0
        %3019 = vmatpush1.bf16.msra.mxu0 %v2583
        %3020 = vmatprep.subr.bf16.mxu0 0
        %3021 = vmatpush1.bf16.msra.mxu0 %v2584
        %3022 = vmatprep.subr.bf16.mxu0 0
        %3023 = vmatpush1.bf16.msra.mxu0 %v2585
        %3024 = vmatprep.subr.bf16.mxu0 0
        %3025 = vmatpush1.bf16.msra.mxu0 %v2586
        %3026 = vmatprep.subr.bf16.mxu0 0
        %3027 = vmatpush1.bf16.msra.mxu0 %v2587
        %3028 = vmatprep.mubr.bf16.mxu0 %v1687
        %3029 = vmatmul.mubr.bf16.gmra.mrb[0].mxu0 %v1686
        %v3030 = vpop.f32.mrb[0].mxu0
        %v3031 = vadd.f32 %v2991, %v3030
        %v3032 = vpop.f32.mrb[0].mxu0
        %v3033 = vpop.f32.mrb[0].mxu0
        %v3034 = vpop.f32.mrb[0].mxu0
        %3035 = vdwg.mxu0
        %v3036 = vadd.f32 %v3031, %v1047
        %v3037 = vsel %vm388, %v3036, 0.0
        %3038 = vadd.xlane.f32.xlu0 %v3037
        %v3039 = vpop.xlane.xlu0 %3038
        %v3040 = vmul.f32 %v3039, %v1027
        %v3041 = vsub.f32 %v3036, %v3040
        %v3042 = vmul.f32 %v3041, %v3041
        %v3043 = vsel %vm388, %v3042, 0.0
        %3044 = vadd.xlane.f32.xlu0 %v3043
        %v3045 = vpop.xlane.xlu0 %3044
        %v3046 = vmul.f32 %v3045, %v1027
        %v3047 = vadd.f32 %v3046, 1e-05
        %v3048 = vrsqrt.pop %v3047
        %v3049 = vmul.f32 %v3041, %v3048
        %v3050 = vmul.f32 %v3049, %v1041
        %v3051 = vadd.f32 %v3050, %v1046
        %3052 = vst.msk [vmem:[%s348] sm:$0xff] %vm388, %v3051
        %s3053 = sand.u32 %s244, 1
        %s3054 = scalar_lea.sflag [#allocation4], %s3053
        %s3055 = sand.u32 %s244, 1
        %s3056 = smul.addr %s3055, 8
        %s3057 = scalar_lea.vmem [#allocation3], %s3056
        // Predicated region
        $region57: #{tpu_custom_call.1} parent=55 // pred_check
          %p3058 = pneg %p254
        $region58: #{tpu_custom_call.1} parent=55 // pred_check_branch
          %3060 = sbr.rel (%p3058) target = $region60
        $region59: #{tpu_custom_call.1} parent=55 // pred_region
          %s3062 = ssub.s32 128, 128
          %3063 = vsyncadd %s3054, %s3062
          %s3064 = sadd.s32 %s28, %s27
          %s3065 = smul.addr %s3064, 128
          %s3066 = scalar_lea.hbm %s9, %s3065
          %s3068 = sshll.u32 %s3057, 4
          %s3069 = int_to_ptr.vmem [resolvable:$true] %s3068
          %3071 = dma.vmem_to_hbm [thread:$0]  %s3069, 128, %s3066, %s3054
        $region60: #{tpu_custom_call.1} parent=55 // pred_fallthru
          _
      $region56: #{tpu_custom_call.1} parent=5 // pred_fallthru
        _
      %p3072 = scmp.le.s32.totalorder 2, %s18
      // Predicated region
      $region61: #{tpu_custom_call.1} parent=5 // pred_check
        %p3073 = pneg %p3072
      $region62: #{tpu_custom_call.1} parent=5 // pred_check_branch
        %3075 = sbr.rel (%p3073) target = $region64
      $region63: #{tpu_custom_call.1} parent=5 // pred_region
        %s3076 = ssub.s32 %s18, 2
        // Predicated region
        $region65: #{tpu_custom_call.1} parent=63 // pred_check
          %p3077 = pneg %p260
        $region66: #{tpu_custom_call.1} parent=63 // pred_check_branch
          %3079 = sbr.rel (%p3077) target = $region68
        $region67: #{tpu_custom_call.1} parent=63 // pred_region
          %s3080 = sand.u32 %s245, 1
          %s3081 = scalar_lea.sflag [#allocation4], %s3080
          %s3082 = sand.u32 %s245, 1
          %s3083 = smul.addr %s3082, 8
          %s3084 = scalar_lea.vmem [#allocation3], %s3083
          %3085 = dma.done %s3081, 128
        $region68: #{tpu_custom_call.1} parent=63 // pred_fallthru
          _
      $region64: #{tpu_custom_call.1} parent=5 // pred_fallthru
        _
    $region6: #{tpu_custom_call.1} parent=1 // loop_footer
      %s22 = sadd.s32 1, %s18
    $region7: #{tpu_custom_call.1} parent=1 // loop_footer_branch
      %17 = sbr.rel target = $region3
    $region8: #{tpu_custom_call.1} parent=1 // loop_exit
      _
    %3086 = vsyncpa [#allocation4], 1
    %s3087 = scalar_lea.sflag [#allocation4], 1
    %3088 = vsyncpa %s3087, 1

// kernel: tpu_custom_call.1
$region0: #{tpu_custom_call.1}
  #allocation0 [shape = 'u32[]', space=smem, size = 0x4, offset = 0x4, fixed_abs, tag = 'smem constant byte address 0x4 - core index']
  #allocation1 [shape = 'u32[144,128]{1,0:T(1,128)}', space=vmem, size = 0x12000, scoped, tag = 'internal scratch']
  #allocation2 [shape = 'f32[8,32]{1,0:T(8,128)}', space=vmem, size = 0x1000, scoped, tag = 'scratch operand']
  %s0 = inlined_call_operand.vmem [shape: f32[2,8,32], index: 0, kind: input, shape index: {}]
  %s1 = inlined_call_operand.vmem [shape: bf16[2,1,8], index: 1, kind: input, shape index: {}]
  %s2 = inlined_call_operand.vmem [shape: bf16[32,96], index: 2, kind: input, shape index: {}]
  %s3 = inlined_call_operand.vmem [shape: f32[1,96], index: 3, kind: input, shape index: {}]
  %s4 = inlined_call_operand.vmem [shape: bf16[32,32], index: 4, kind: input, shape index: {}]
  %s5 = inlined_call_operand.vmem [shape: bf16[32,2048], index: 5, kind: input, shape index: {}]
  %s6 = inlined_call_operand.vmem [shape: f32[1,2048], index: 6, kind: input, shape index: {}]
  %s7 = inlined_call_operand.vmem [shape: bf16[2048,32], index: 7, kind: input, shape index: {}]
  %s8 = inlined_call_operand.vmem [shape: f32[4,32], index: 8, kind: input, shape index: {}]
  %s9 = inlined_call_operand.hbm [shape: f32[2,8,32], index: 9, kind: output, shape index: {}]
  %s10 = sld [smem:[#allocation0]]
  $region69: #{tpu_custom_call.1} parent=0
    _
  %s12 = ssub.s32 1, %s10
  %s13 = scalar_select 0, %s12, %s10
  $region1: #{tpu_custom_call.1} parent=0
    #allocation3 [shape = 'u8[8192]{0}', space=vmem, size = 0x2000, scoped, tag = 'output window, operand 0']
    #allocation4 [shape = 's32[2]{0}', space=sflag, size = 0x8, scoped, tag = 'scoped memory for tpu_custom_call.1']
    %14 = vsyncpa [#allocation4], 0
    %s15 = scalar_lea.sflag [#allocation4], 1
    %16 = vsyncpa %s15, 0
    loop: start=0, step=1, limit=4
    $region2: #{tpu_custom_call.1} parent=1 // loop_pre_header
      _
    $region3: #{tpu_custom_call.1} parent=1 // loop_header
      %s18 = sphi 0, %s22
      %p19 = scmp.ge.s32.totalorder %s18, 4
      %s25 = sphi 0, %s37
      %s26 = sphi 0, %s33
      %s27 = sphi 0, %s25
      %s28 = sphi 0, %s26
      %s29 = sphi 0, %s27
      %s30 = sphi 0, %s28
      %s40 = sphi 0, %s42
      %s43 = sphi 0, %s40
      %s44 = sphi 0, %s43
      %s60 = sphi 0, %s44
      %s66 = sphi 0, %s68
      %s69 = sphi 0, %s66
      %s70 = sphi 0, %s69
      %s86 = sphi 0, %s70
      %s90 = sphi 0, %s90
      %s92 = sphi 0, %s90
      %s93 = sphi 0, %s92
      %s107 = sphi 0, %s93
      %s111 = sphi 0, %s111
      %s113 = sphi 0, %s111
      %s114 = sphi 0, %s113
      %s128 = sphi 0, %s114
      %s132 = sphi 0, %s132
      %s134 = sphi 0, %s132
      %s135 = sphi 0, %s134
      %s149 = sphi 0, %s135
      %s153 = sphi 0, %s153
      %s155 = sphi 0, %s153
      %s156 = sphi 0, %s155
      %s170 = sphi 0, %s156
      %s174 = sphi 0, %s174
      %s176 = sphi 0, %s174
      %s177 = sphi 0, %s176
      %s191 = sphi 0, %s177
      %s195 = sphi 0, %s195
      %s197 = sphi 0, %s195
      %s198 = sphi 0, %s197
      %s212 = sphi 0, %s198
      %s216 = sphi 0, %s216
      %s218 = sphi 0, %s216
      %s219 = sphi 0, %s218
      %s233 = sphi 0, %s219
      %s241 = sphi 0, %s243
      %s244 = sphi 0, %s241
      %s245 = sphi 0, %s244
      %s261 = sphi 0, %s245
    $region4: #{tpu_custom_call.1} parent=1 // loop_header_branch
      %21 = sbr.rel (%p19) target = $region8
    $region5: #{tpu_custom_call.1} parent=1 // loop_body
      %s23 = ssub.s32 %s18, 1
      %s24 = ssub.s32 %s18, 2
      %s31 = sadd.s32 1, %s26
      %p32 = scmp.ge.s32.totalorder %s31, 1
      %s33 = scalar_select %p32, 0, %s31
      %s34 = sadd.s32 1, %s25
      %s35 = scalar_select %p32, %s34, %s25
      %p36 = scmp.ge.s32.totalorder %s35, 2
      %s37 = scalar_select %p36, 0, %s35
      %s38 = ssub.s32 %s25, %s37
      %p39 = scmp.eq.s32.totalorder %s38, 0
      %s41 = sadd.s32 %s40, 1
      %s42 = scalar_select %p39, %s40, %s41
      %p45 = pneg %p39
      %p46 = scmp.eq.s32.totalorder %s18, 1
      %p47 = por %p45, %p46
      %p48 = scmp.ne.s32.totalorder %s40, %s43
      %p49 = scmp.eq.s32.totalorder %s18, 0
      %p50 = por %p48, %p49
      %p51 = scmp.ne.s32.totalorder %s40, %s43
      %p52 = scmp.eq.s32.totalorder %s23, 1
      %p53 = por %p51, %p52
      %p54 = scmp.ne.s32.totalorder %s43, %s44
      %p55 = scmp.eq.s32.totalorder %s23, 0
      %p56 = por %p54, %p55
      %p57 = scmp.ne.s32.totalorder %s43, %s44
      %p58 = scmp.eq.s32.totalorder %s24, 1
      %p59 = por %p57, %p58
      %p61 = scmp.ne.s32.totalorder %s44, %s60
      %p62 = scmp.eq.s32.totalorder %s24, 0
      %p63 = por %p61, %p62
      %s64 = ssub.s32 %s25, %s37
      %p65 = scmp.eq.s32.totalorder %s64, 0
      %s67 = sadd.s32 %s66, 1
      %s68 = scalar_select %p65, %s66, %s67
      %p71 = pneg %p65
      %p72 = scmp.eq.s32.totalorder %s18, 1
      %p73 = por %p71, %p72
      %p74 = scmp.ne.s32.totalorder %s66, %s69
      %p75 = scmp.eq.s32.totalorder %s18, 0
      %p76 = por %p74, %p75
      %p77 = scmp.ne.s32.totalorder %s66, %s69
      %p78 = scmp.eq.s32.totalorder %s23, 1
      %p79 = por %p77, %p78
      %p80 = scmp.ne.s32.totalorder %s69, %s70
      %p81 = scmp.eq.s32.totalorder %s23, 0
      %p82 = por %p80, %p81
      %p83 = scmp.ne.s32.totalorder %s69, %s70
      %p84 = scmp.eq.s32.totalorder %s24, 1
      %p85 = por %p83, %p84
      %p87 = scmp.ne.s32.totalorder %s70, %s86
      %p88 = scmp.eq.s32.totalorder %s24, 0
      %p89 = por %p87, %p88
      %s91 = sadd.s32 %s90, 1
      %p94 = scmp.eq.s32.totalorder %s18, 1
      %p95 = scmp.ne.s32.totalorder %s90, %s92
      %p96 = scmp.eq.s32.totalorder %s18, 0
      %p97 = por %p95, %p96
      %p98 = scmp.ne.s32.totalorder %s90, %s92
      %p99 = scmp.eq.s32.totalorder %s23, 1
      %p100 = por %p98, %p99
      %p101 = scmp.ne.s32.totalorder %s92, %s93
      %p102 = scmp.eq.s32.totalorder %s23, 0
      %p103 = por %p101, %p102
      %p104 = scmp.ne.s32.totalorder %s92, %s93
      %p105 = scmp.eq.s32.totalorder %s24, 1
      %p106 = por %p104, %p105
      %p108 = scmp.ne.s32.totalorder %s93, %s107
      %p109 = scmp.eq.s32.totalorder %s24, 0
      %p110 = por %p108, %p109
      %s112 = sadd.s32 %s111, 1
      %p115 = scmp.eq.s32.totalorder %s18, 1
      %p116 = scmp.ne.s32.totalorder %s111, %s113
      %p117 = scmp.eq.s32.totalorder %s18, 0
      %p118 = por %p116, %p117
      %p119 = scmp.ne.s32.totalorder %s111, %s113
      %p120 = scmp.eq.s32.totalorder %s23, 1
      %p121 = por %p119, %p120
      %p122 = scmp.ne.s32.totalorder %s113, %s114
      %p123 = scmp.eq.s32.totalorder %s23, 0
      %p124 = por %p122, %p123
      %p125 = scmp.ne.s32.totalorder %s113, %s114
      %p126 = scmp.eq.s32.totalorder %s24, 1
      %p127 = por %p125, %p126
      %p129 = scmp.ne.s32.totalorder %s114, %s128
      %p130 = scmp.eq.s32.totalorder %s24, 0
      %p131 = por %p129, %p130
      %s133 = sadd.s32 %s132, 1
      %p136 = scmp.eq.s32.totalorder %s18, 1
      %p137 = scmp.ne.s32.totalorder %s132, %s134
      %p138 = scmp.eq.s32.totalorder %s18, 0
      %p139 = por %p137, %p138
      %p140 = scmp.ne.s32.totalorder %s132, %s134
      %p141 = scmp.eq.s32.totalorder %s23, 1
      %p142 = por %p140, %p141
      %p143 = scmp.ne.s32.totalorder %s134, %s135
      %p144 = scmp.eq.s32.totalorder %s23, 0
      %p145 = por %p143, %p144
      %p146 = scmp.ne.s32.totalorder %s134, %s135
      %p147 = scmp.eq.s32.totalorder %s24, 1
      %p148 = por %p146, %p147
      %p150 = scmp.ne.s32.totalorder %s135, %s149
      %p151 = scmp.eq.s32.totalorder %s24, 0
      %p152 = por %p150, %p151
      %s154 = sadd.s32 %s153, 1
      %p157 = scmp.eq.s32.totalorder %s18, 1
      %p158 = scmp.ne.s32.totalorder %s153, %s155
      %p159 = scmp.eq.s32.totalorder %s18, 0
      %p160 = por %p158, %p159
      %p161 = scmp.ne.s32.totalorder %s153, %s155
      %p162 = scmp.eq.s32.totalorder %s23, 1
      %p163 = por %p161, %p162
      %p164 = scmp.ne.s32.totalorder %s155, %s156
      %p165 = scmp.eq.s32.totalorder %s23, 0
      %p166 = por %p164, %p165
      %p167 = scmp.ne.s32.totalorder %s155, %s156
      %p168 = scmp.eq.s32.totalorder %s24, 1
      %p169 = por %p167, %p168
      %p171 = scmp.ne.s32.totalorder %s156, %s170
      %p172 = scmp.eq.s32.totalorder %s24, 0
      %p173 = por %p171, %p172
      %s175 = sadd.s32 %s174, 1
      %p178 = scmp.eq.s32.totalorder %s18, 1
      %p179 = scmp.ne.s32.totalorder %s174, %s176
      %p180 = scmp.eq.s32.totalorder %s18, 0
      %p181 = por %p179, %p180
      %p182 = scmp.ne.s32.totalorder %s174, %s176
      %p183 = scmp.eq.s32.totalorder %s23, 1
      %p184 = por %p182, %p183
      %p185 = scmp.ne.s32.totalorder %s176, %s177
      %p186 = scmp.eq.s32.totalorder %s23, 0
      %p187 = por %p185, %p186
      %p188 = scmp.ne.s32.totalorder %s176, %s177
      %p189 = scmp.eq.s32.totalorder %s24, 1
      %p190 = por %p188, %p189
      %p192 = scmp.ne.s32.totalorder %s177, %s191
      %p193 = scmp.eq.s32.totalorder %s24, 0
      %p194 = por %p192, %p193
      %s196 = sadd.s32 %s195, 1
      %p199 = scmp.eq.s32.totalorder %s18, 1
      %p200 = scmp.ne.s32.totalorder %s195, %s197
      %p201 = scmp.eq.s32.totalorder %s18, 0
      %p202 = por %p200, %p201
      %p203 = scmp.ne.s32.totalorder %s195, %s197
      %p204 = scmp.eq.s32.totalorder %s23, 1
      %p205 = por %p203, %p204
      %p206 = scmp.ne.s32.totalorder %s197, %s198
      %p207 = scmp.eq.s32.totalorder %s23, 0
      %p208 = por %p206, %p207
      %p209 = scmp.ne.s32.totalorder %s197, %s198
      %p210 = scmp.eq.s32.totalorder %s24, 1
      %p211 = por %p209, %p210
      %p213 = scmp.ne.s32.totalorder %s198, %s212
      %p214 = scmp.eq.s32.totalorder %s24, 0
      %p215 = por %p213, %p214
      %s217 = sadd.s32 %s216, 1
      %p220 = scmp.eq.s32.totalorder %s18, 1
      %p221 = scmp.ne.s32.totalorder %s216, %s218
      %p222 = scmp.eq.s32.totalorder %s18, 0
      %p223 = por %p221, %p222
      %p224 = scmp.ne.s32.totalorder %s216, %s218
      %p225 = scmp.eq.s32.totalorder %s23, 1
      %p226 = por %p224, %p225
      %p227 = scmp.ne.s32.totalorder %s218, %s219
      %p228 = scmp.eq.s32.totalorder %s23, 0
      %p229 = por %p227, %p228
      %p230 = scmp.ne.s32.totalorder %s218, %s219
      %p231 = scmp.eq.s32.totalorder %s24, 1
      %p232 = por %p230, %p231
      %p234 = scmp.ne.s32.totalorder %s219, %s233
      %p235 = scmp.eq.s32.totalorder %s24, 0
      %p236 = por %p234, %p235
      %s237 = ssub.s32 %s25, %s37
      %s238 = ssub.s32 %s26, %s33
      %s239 = sor.u32 %s237, %s238
      %p240 = scmp.eq.s32.totalorder %s239, 0
      %s242 = sadd.s32 %s241, 1
      %s243 = scalar_select %p240, %s241, %s242
      %p246 = pneg %p240
      %p247 = scmp.eq.s32.totalorder %s18, 1
      %p248 = por %p246, %p247
      %p249 = scmp.ne.s32.totalorder %s241, %s244
      %p250 = scmp.eq.s32.totalorder %s18, 0
      %p251 = por %p249, %p250
      %p252 = scmp.ne.s32.totalorder %s241, %s244
      %p253 = scmp.eq.s32.totalorder %s23, 1
      %p254 = por %p252, %p253
      %p255 = scmp.ne.s32.totalorder %s244, %s245
      %p256 = scmp.eq.s32.totalorder %s23, 0
      %p257 = por %p255, %p256
      %p258 = scmp.ne.s32.totalorder %s244, %s245
      %p259 = scmp.eq.s32.totalorder %s24, 1
      %p260 = por %p258, %p259
      %p262 = scmp.ne.s32.totalorder %s245, %s261
      %p263 = scmp.eq.s32.totalorder %s24, 0
      %p264 = por %p262, %p263
      %p265 = scmp.le.s32.totalorder 1, %s18
      %p266 = scmp.lt.s32.totalorder %s18, 3
      %p267 = pnand %p265, %p266
      %p268 = pneg %p267
      // Predicated region
      $region9: #{tpu_custom_call.1} parent=5 // pred_check
        _
      $region10: #{tpu_custom_call.1} parent=5 // pred_check_branch
        %270 = sbr.rel (%p267) target = $region12
      $region11: #{tpu_custom_call.1} parent=5 // pred_region
        %s271 = ssub.s32 %s18, 1
        // Predicated region
        $region13: #{tpu_custom_call.1} parent=11 // pred_check
          %p272 = pneg %p103
        $region14: #{tpu_custom_call.1} parent=11 // pred_check_branch
          %274 = sbr.rel (%p272) target = $region16
        $region15: #{tpu_custom_call.1} parent=11 // pred_region
          _
        $region16: #{tpu_custom_call.1} parent=11 // pred_fallthru
          _
        // Predicated region
        $region17: #{tpu_custom_call.1} parent=11 // pred_check
          %p275 = pneg %p124
        $region18: #{tpu_custom_call.1} parent=11 // pred_check_branch
          %277 = sbr.rel (%p275) target = $region20
        $region19: #{tpu_custom_call.1} parent=11 // pred_region
          _
        $region20: #{tpu_custom_call.1} parent=11 // pred_fallthru
          _
        // Predicated region
        $region21: #{tpu_custom_call.1} parent=11 // pred_check
          %p278 = pneg %p145
        $region22: #{tpu_custom_call.1} parent=11 // pred_check_branch
          %280 = sbr.rel (%p278) target = $region24
        $region23: #{tpu_custom_call.1} parent=11 // pred_region
          _
        $region24: #{tpu_custom_call.1} parent=11 // pred_fallthru
          _
        // Predicated region
        $region25: #{tpu_custom_call.1} parent=11 // pred_check
          %p281 = pneg %p166
        $region26: #{tpu_custom_call.1} parent=11 // pred_check_branch
          %283 = sbr.rel (%p281) target = $region28
        $region27: #{tpu_custom_call.1} parent=11 // pred_region
          _
        $region28: #{tpu_custom_call.1} parent=11 // pred_fallthru
          _
        // Predicated region
        $region29: #{tpu_custom_call.1} parent=11 // pred_check
          %p284 = pneg %p187
        $region30: #{tpu_custom_call.1} parent=11 // pred_check_branch
          %286 = sbr.rel (%p284) target = $region32
        $region31: #{tpu_custom_call.1} parent=11 // pred_region
          _
        $region32: #{tpu_custom_call.1} parent=11 // pred_fallthru
          _
        // Predicated region
        $region33: #{tpu_custom_call.1} parent=11 // pred_check
          %p287 = pneg %p208
        $region34: #{tpu_custom_call.1} parent=11 // pred_check_branch
          %289 = sbr.rel (%p287) target = $region36
        $region35: #{tpu_custom_call.1} parent=11 // pred_region
          _
        $region36: #{tpu_custom_call.1} parent=11 // pred_fallthru
          _
        // Predicated region
        $region37: #{tpu_custom_call.1} parent=11 // pred_check
          %p290 = pneg %p229
        $region38: #{tpu_custom_call.1} parent=11 // pred_check_branch
          %292 = sbr.rel (%p290) target = $region40
        $region39: #{tpu_custom_call.1} parent=11 // pred_region
          _
        $region40: #{tpu_custom_call.1} parent=11 // pred_fallthru
          _
      $region12: #{tpu_custom_call.1} parent=5 // pred_fallthru
        _
      %p293 = scmp.lt.s32.totalorder %s18, 2
      // Predicated region
      $region41: #{tpu_custom_call.1} parent=5 // pred_check
        %p294 = pneg %p293
      $region42: #{tpu_custom_call.1} parent=5 // pred_check_branch
        %296 = sbr.rel (%p294) target = $region44
      $region43: #{tpu_custom_call.1} parent=5 // pred_region
        // Predicated region
        $region45: #{tpu_custom_call.1} parent=43 // pred_check
          %p297 = pneg %p50
        $region46: #{tpu_custom_call.1} parent=43 // pred_check_branch
          %299 = sbr.rel (%p297) target = $region48
        $region47: #{tpu_custom_call.1} parent=43 // pred_region
          %p300 = scmp.lt.s32.totalorder %s25, 1
          %s301 = scalar_select %p300, %s25, 1
          %s302 = smul.addr %s301, 8
          %s303 = scalar_lea.vmem %s0, %s302
        $region48: #{tpu_custom_call.1} parent=43 // pred_fallthru
          _
        // Predicated region
        $region49: #{tpu_custom_call.1} parent=43 // pred_check
          %p304 = pneg %p76
        $region50: #{tpu_custom_call.1} parent=43 // pred_check_branch
          %306 = sbr.rel (%p304) target = $region52
        $region51: #{tpu_custom_call.1} parent=43 // pred_region
          %p307 = scmp.lt.s32.totalorder %s25, 1
          %s308 = scalar_select %p307, %s25, 1
          %s309 = scalar_lea.vmem %s1, %s308
        $region52: #{tpu_custom_call.1} parent=43 // pred_fallthru
          _
      $region44: #{tpu_custom_call.1} parent=5 // pred_fallthru
        _
      %p310 = scmp.le.s32.totalorder 1, %s18
      %p311 = scmp.lt.s32.totalorder %s18, 3
      %p312 = pnand %p310, %p311
      %p313 = pneg %p312
      // Predicated region
      $region53: #{tpu_custom_call.1} parent=5 // pred_check
        _
      $region54: #{tpu_custom_call.1} parent=5 // pred_check_branch
        %315 = sbr.rel (%p312) target = $region56
      $region55: #{tpu_custom_call.1} parent=5 // pred_region
        %s316 = ssub.s32 %s18, 1
        %p317 = scmp.lt.s32.totalorder %s27, 1
        %s318 = scalar_select %p317, %s27, 1
        %s319 = smul.addr %s318, 8
        %s320 = scalar_lea.vmem %s0, %s319
        %p321 = pneg %p56
        %p322 = pneg %p53
        %p323 = scmp.lt.s32.totalorder %s27, 1
        %s324 = scalar_select %p323, %s27, 1
        %s325 = scalar_lea.vmem %s1, %s324
        %p326 = pneg %p82
        %p327 = pneg %p79
        %p328 = pneg %p103
        %p329 = pneg %p100
        %p330 = pneg %p124
        %p331 = pneg %p121
        %p332 = pneg %p145
        %p333 = pneg %p142
        %p334 = pneg %p166
        %p335 = pneg %p163
        %p336 = pneg %p187
        %p337 = pneg %p184
        %p338 = pneg %p208
        %p339 = pneg %p205
        %p340 = pneg %p229
        %p341 = pneg %p226
        %p342 = pneg %p257
        %p343 = pneg %p254
        %s344 = sand.u32 %s244, 1
        %s345 = scalar_lea.sflag [#allocation4], %s344
        %s346 = sand.u32 %s244, 1
        %s347 = smul.addr %s346, 8
        %s348 = scalar_lea.vmem [#allocation3], %s347
        %p349 = scmp.lt.s32.totalorder %s27, 1
        %s350 = scalar_select %p349, %s27, 1
        %s351 = smul.addr %s350, 8
        %s352 = scalar_lea.vmem %s0, %s351
        %p353 = scmp.lt.s32.totalorder %s27, 1
        %s354 = scalar_select %p353, %s27, 1
        %s355 = scalar_lea.vmem %s1, %s354
        %s357 = smul.u32 %s28, 8
        %v358 = vld [vmem:[%s352] sm:$0xff]
        %s359 = scalar_lea.vmem %s352, %s357
        %v360 = vld [vmem:[%s359] sm:$0xff]
        %v361 = vld [vmem:[%s355] sm:$0x1]
        %v362 = vunpack.c.l.bf16 %v361
        %v363 = vld [vmem:[%s8] sm:$0xf]
        %v364 = vld [vmem:[%s2] sm:$0xf]
        %v365 = vld [vmem:[%s2 + $0x4] sm:$0xf]
        %v366 = vld [vmem:[%s2 + $0x8] sm:$0xf]
        %v367 = vld [vmem:[%s2 + $0xc] sm:$0xf]
        %v368 = vld [vmem:[%s3] sm:$0x1]
        %v369 = vpack.c.bf16 %v360, %v360
        %v371 = vlaneseq
        %v372 = vshrl.u32 %v371, 7
        %v373 = vsub.s32 0, %v372
        %v374 = vrot.slane %v368, %v373
        %v380 = vunpack.c.l.b16 %v364
        %v381 = vunpack.c.l.b16 %v365
        %v382 = vunpack.c.l.b16 %v366
        %v383 = vunpack.c.l.b16 %v367
        %v384 = vpack.c.b16 %v381, %v380
        %v385 = vpack.c.b16 %v383, %v382
        %vm388 = vcmask 261120
        %v390 = vsel %vm388, %v369, 0
        %392 = vmatprep.subr.bf16.mxu0 0
        %393 = vmatpush1.bf16.msra.mxu0 %v384
        %394 = vmatprep.subr.bf16.mxu0 0
        %395 = vmatpush1.bf16.msra.mxu0 %v385
        %396 = vmatprep.subr.bf16.mxu0 0
        %397 = vmatpush1.bf16.msra.mxu0 0
        %398 = vmatprep.subr.bf16.mxu0 0
        %399 = vmatpush1.bf16.msra.mxu0 0
        %400 = vmatprep.subr.bf16.mxu0 0
        %401 = vmatpush1.bf16.msra.mxu0 0
        %402 = vmatprep.subr.bf16.mxu0 0
        %403 = vmatpush1.bf16.msra.mxu0 0
        %404 = vmatprep.subr.bf16.mxu0 0
        %405 = vmatpush1.bf16.msra.mxu0 0
        %406 = vmatprep.subr.bf16.mxu0 0
        %407 = vmatpush1.bf16.msra.mxu0 0
        %408 = vmatprep.subr.bf16.mxu0 0
        %409 = vmatpush1.bf16.msra.mxu0 0
        %410 = vmatprep.subr.bf16.mxu0 0
        %411 = vmatpush1.bf16.msra.mxu0 0
        %412 = vmatprep.subr.bf16.mxu0 0
        %413 = vmatpush1.bf16.msra.mxu0 0
        %414 = vmatprep.subr.bf16.mxu0 0
        %415 = vmatpush1.bf16.msra.mxu0 0
        %416 = vmatprep.subr.bf16.mxu0 0
        %417 = vmatpush1.bf16.msra.mxu0 0
        %418 = vmatprep.subr.bf16.mxu0 0
        %419 = vmatpush1.bf16.msra.mxu0 0
        %420 = vmatprep.subr.bf16.mxu0 0
        %421 = vmatpush1.bf16.msra.mxu0 0
        %422 = vmatprep.subr.bf16.mxu0 0
        %423 = vmatpush1.bf16.msra.mxu0 0
        %424 = vmatprep.mubr.bf16.mxu0 0
        %425 = vmatmul.mubr.bf16.gmra.mrb[0].mxu0 %v390
        %v426 = vpop.f32.mrb[0].mxu0
        %v427 = vadd.f32 %v374, %v426
        %v428 = vpop.f32.mrb[0].mxu0
        %v429 = vpop.f32.mrb[0].mxu0
        %v430 = vpop.f32.mrb[0].mxu0
        %431 = vdwg.mxu0
        %v432 = vpack.c.bf16 %v358, %v358
        %433 = vrot.lane.b32.xlu0 %v384, 96
        %v434 = vpop.permute.xlu0 %433
        %435 = vrot.lane.b32.xlu0 %v385, 96
        %v436 = vpop.permute.xlu0 %435
        %439 = vrot.lane.b32.xlu0 %v374, 96
        %v440 = vpop.permute.xlu0 %439
        %v443 = vsel %vm388, %v432, 0
        %445 = vmatprep.subr.bf16.mxu0 0
        %446 = vmatpush1.bf16.msra.mxu0 %v434
        %447 = vmatprep.subr.bf16.mxu0 0
        %448 = vmatpush1.bf16.msra.mxu0 %v436
        %449 = vmatprep.subr.bf16.mxu0 0
        %450 = vmatpush1.bf16.msra.mxu0 0
        %451 = vmatprep.subr.bf16.mxu0 0
        %452 = vmatpush1.bf16.msra.mxu0 0
        %453 = vmatprep.subr.bf16.mxu0 0
        %454 = vmatpush1.bf16.msra.mxu0 0
        %455 = vmatprep.subr.bf16.mxu0 0
        %456 = vmatpush1.bf16.msra.mxu0 0
        %457 = vmatprep.subr.bf16.mxu0 0
        %458 = vmatpush1.bf16.msra.mxu0 0
        %459 = vmatprep.subr.bf16.mxu0 0
        %460 = vmatpush1.bf16.msra.mxu0 0
        %461 = vmatprep.subr.bf16.mxu0 0
        %462 = vmatpush1.bf16.msra.mxu0 0
        %463 = vmatprep.subr.bf16.mxu0 0
        %464 = vmatpush1.bf16.msra.mxu0 0
        %465 = vmatprep.subr.bf16.mxu0 0
        %466 = vmatpush1.bf16.msra.mxu0 0
        %467 = vmatprep.subr.bf16.mxu0 0
        %468 = vmatpush1.bf16.msra.mxu0 0
        %469 = vmatprep.subr.bf16.mxu0 0
        %470 = vmatpush1.bf16.msra.mxu0 0
        %471 = vmatprep.subr.bf16.mxu0 0
        %472 = vmatpush1.bf16.msra.mxu0 0
        %473 = vmatprep.subr.bf16.mxu0 0
        %474 = vmatpush1.bf16.msra.mxu0 0
        %475 = vmatprep.subr.bf16.mxu0 0
        %476 = vmatpush1.bf16.msra.mxu0 0
        %477 = vmatprep.mubr.bf16.mxu0 0
        %478 = vmatmul.mubr.bf16.gmra.mrb[0].mxu0 %v443
        %v479 = vpop.f32.mrb[0].mxu0
        %v480 = vadd.f32 %v440, %v479
        %v481 = vpop.f32.mrb[0].mxu0
        %v482 = vpop.f32.mrb[0].mxu0
        %v483 = vpop.f32.mrb[0].mxu0
        %484 = vdwg.mxu0
        %v485 = vpack.c.bf16 %v427, %v427
        %487 = vrot.lane.b32.xlu0 %v485, 120
        %v488 = vpop.permute.xlu0 %487
        %489 = vrot.lane.b32.xlu0 %v485, 112
        %v490 = vpop.permute.xlu0 %489
        %491 = vrot.lane.b32.xlu0 %v485, 104
        %v492 = vpop.permute.xlu0 %491
        %v493 = vpack.c.bf16 %v480, %v480
        %495 = vrot.lane.b32.xlu0 %v493, 120
        %v496 = vpop.permute.xlu0 %495
        %497 = vrot.lane.b32.xlu0 %v493, 112
        %v498 = vpop.permute.xlu0 %497
        %499 = vrot.lane.b32.xlu0 %v493, 104
        %v500 = vpop.permute.xlu0 %499
        %vm501 = vcmask 64512
        %v503 = vsel %vm501, %v485, 0
        %v506 = vsel %vm501, %v493, 0
        %508 = vmatprep.subr.bf16.mxu0 0
        %509 = vmatpush1.bf16.xpose.msra.mxu0 %v506
        %510 = vmatprep.subr.bf16.mxu0 0
        %511 = vmatpush1.bf16.xpose.msra.mxu0 0
        %512 = vmatprep.subr.bf16.mxu0 0
        %513 = vmatpush1.bf16.xpose.msra.mxu0 0
        %514 = vmatprep.subr.bf16.mxu0 0
        %515 = vmatpush1.bf16.xpose.msra.mxu0 0
        %516 = vmatprep.subr.bf16.mxu0 0
        %517 = vmatpush1.bf16.xpose.msra.mxu0 0
        %518 = vmatprep.subr.bf16.mxu0 0
        %519 = vmatpush1.bf16.xpose.msra.mxu0 0
        %520 = vmatprep.subr.bf16.mxu0 0
        %521 = vmatpush1.bf16.xpose.msra.mxu0 0
        %522 = vmatprep.subr.bf16.mxu0 0
        %523 = vmatpush1.bf16.xpose.msra.mxu0 0
        %524 = vmatprep.subr.bf16.mxu0 0
        %525 = vmatpush1.bf16.xpose.msra.mxu0 0
        %526 = vmatprep.subr.bf16.mxu0 0
        %527 = vmatpush1.bf16.xpose.msra.mxu0 0
        %528 = vmatprep.subr.bf16.mxu0 0
        %529 = vmatpush1.bf16.xpose.msra.mxu0 0
        %530 = vmatprep.subr.bf16.mxu0 0
        %531 = vmatpush1.bf16.xpose.msra.mxu0 0
        %532 = vmatprep.subr.bf16.mxu0 0
        %533 = vmatpush1.bf16.xpose.msra.mxu0 0
        %534 = vmatprep.subr.bf16.mxu0 0
        %535 = vmatpush1.bf16.xpose.msra.mxu0 0
        %536 = vmatprep.subr.bf16.mxu0 0
        %537 = vmatpush1.bf16.xpose.msra.mxu0 0
        %538 = vmatprep.subr.bf16.mxu0 0
        %539 = vmatpush1.bf16.xpose.msra.mxu0 0
        %540 = vmatprep.mubr.bf16.mxu0 0
        %541 = vmatmul.mubr.bf16.gmra.mrb[0].mxu0 %v503
        %v542 = vpop.f32.mrb[0].mxu0
        %v543 = vadd.f32 0.0, %v542
        %v544 = vpop.f32.mrb[0].mxu0
        %v545 = vpop.f32.mrb[0].mxu0
        %v546 = vpop.f32.mrb[0].mxu0
        %547 = vdwg.mxu0
        %v549 = vsel %vm501, %v488, 0
        %v552 = vsel %vm501, %v496, 0
        %554 = vmatprep.subr.bf16.mxu0 0
        %555 = vmatpush1.bf16.xpose.msra.mxu0 %v552
        %556 = vmatprep.subr.bf16.mxu0 0
        %557 = vmatpush1.bf16.xpose.msra.mxu0 0
        %558 = vmatprep.subr.bf16.mxu0 0
        %559 = vmatpush1.bf16.xpose.msra.mxu0 0
        %560 = vmatprep.subr.bf16.mxu0 0
        %561 = vmatpush1.bf16.xpose.msra.mxu0 0
        %562 = vmatprep.subr.bf16.mxu0 0
        %563 = vmatpush1.bf16.xpose.msra.mxu0 0
        %564 = vmatprep.subr.bf16.mxu0 0
        %565 = vmatpush1.bf16.xpose.msra.mxu0 0
        %566 = vmatprep.subr.bf16.mxu0 0
        %567 = vmatpush1.bf16.xpose.msra.mxu0 0
        %568 = vmatprep.subr.bf16.mxu0 0
        %569 = vmatpush1.bf16.xpose.msra.mxu0 0
        %570 = vmatprep.subr.bf16.mxu0 0
        %571 = vmatpush1.bf16.xpose.msra.mxu0 0
        %572 = vmatprep.subr.bf16.mxu0 0
        %573 = vmatpush1.bf16.xpose.msra.mxu0 0
        %574 = vmatprep.subr.bf16.mxu0 0
        %575 = vmatpush1.bf16.xpose.msra.mxu0 0
        %576 = vmatprep.subr.bf16.mxu0 0
        %577 = vmatpush1.bf16.xpose.msra.mxu0 0
        %578 = vmatprep.subr.bf16.mxu0 0
        %579 = vmatpush1.bf16.xpose.msra.mxu0 0
        %580 = vmatprep.subr.bf16.mxu0 0
        %581 = vmatpush1.bf16.xpose.msra.mxu0 0
        %582 = vmatprep.subr.bf16.mxu0 0
        %583 = vmatpush1.bf16.xpose.msra.mxu0 0
        %584 = vmatprep.subr.bf16.mxu0 0
        %585 = vmatpush1.bf16.xpose.msra.mxu0 0
        %586 = vmatprep.mubr.bf16.mxu0 0
        %587 = vmatmul.mubr.bf16.gmra.mrb[0].mxu0 %v549
        %v588 = vpop.f32.mrb[0].mxu0
        %v589 = vadd.f32 0.0, %v588
        %v590 = vpop.f32.mrb[0].mxu0
        %v591 = vpop.f32.mrb[0].mxu0
        %v592 = vpop.f32.mrb[0].mxu0
        %593 = vdwg.mxu0
        %v595 = vsel %vm501, %v490, 0
        %v598 = vsel %vm501, %v498, 0
        %600 = vmatprep.subr.bf16.mxu0 0
        %601 = vmatpush1.bf16.xpose.msra.mxu0 %v598
        %602 = vmatprep.subr.bf16.mxu0 0
        %603 = vmatpush1.bf16.xpose.msra.mxu0 0
        %604 = vmatprep.subr.bf16.mxu0 0
        %605 = vmatpush1.bf16.xpose.msra.mxu0 0
        %606 = vmatprep.subr.bf16.mxu0 0
        %607 = vmatpush1.bf16.xpose.msra.mxu0 0
        %608 = vmatprep.subr.bf16.mxu0 0
        %609 = vmatpush1.bf16.xpose.msra.mxu0 0
        %610 = vmatprep.subr.bf16.mxu0 0
        %611 = vmatpush1.bf16.xpose.msra.mxu0 0
        %612 = vmatprep.subr.bf16.mxu0 0
        %613 = vmatpush1.bf16.xpose.msra.mxu0 0
        %614 = vmatprep.subr.bf16.mxu0 0
        %615 = vmatpush1.bf16.xpose.msra.mxu0 0
        %616 = vmatprep.subr.bf16.mxu0 0
        %617 = vmatpush1.bf16.xpose.msra.mxu0 0
        %618 = vmatprep.subr.bf16.mxu0 0
        %619 = vmatpush1.bf16.xpose.msra.mxu0 0
        %620 = vmatprep.subr.bf16.mxu0 0
        %621 = vmatpush1.bf16.xpose.msra.mxu0 0
        %622 = vmatprep.subr.bf16.mxu0 0
        %623 = vmatpush1.bf16.xpose.msra.mxu0 0
        %624 = vmatprep.subr.bf16.mxu0 0
        %625 = vmatpush1.bf16.xpose.msra.mxu0 0
        %626 = vmatprep.subr.bf16.mxu0 0
        %627 = vmatpush1.bf16.xpose.msra.mxu0 0
        %628 = vmatprep.subr.bf16.mxu0 0
        %629 = vmatpush1.bf16.xpose.msra.mxu0 0
        %630 = vmatprep.subr.bf16.mxu0 0
        %631 = vmatpush1.bf16.xpose.msra.mxu0 0
        %632 = vmatprep.mubr.bf16.mxu0 0
        %633 = vmatmul.mubr.bf16.gmra.mrb[0].mxu0 %v595
        %v634 = vpop.f32.mrb[0].mxu0
        %v635 = vadd.f32 0.0, %v634
        %v636 = vpop.f32.mrb[0].mxu0
        %v637 = vpop.f32.mrb[0].mxu0
        %v638 = vpop.f32.mrb[0].mxu0
        %639 = vdwg.mxu0
        %v641 = vsel %vm501, %v492, 0
        %v644 = vsel %vm501, %v500, 0
        %646 = vmatprep.subr.bf16.mxu0 0
        %647 = vmatpush1.bf16.xpose.msra.mxu0 %v644
        %648 = vmatprep.subr.bf16.mxu0 0
        %649 = vmatpush1.bf16.xpose.msra.mxu0 0
        %650 = vmatprep.subr.bf16.mxu0 0
        %651 = vmatpush1.bf16.xpose.msra.mxu0 0
        %652 = vmatprep.subr.bf16.mxu0 0
        %653 = vmatpush1.bf16.xpose.msra.mxu0 0
        %654 = vmatprep.subr.bf16.mxu0 0
        %655 = vmatpush1.bf16.xpose.msra.mxu0 0
        %656 = vmatprep.subr.bf16.mxu0 0
        %657 = vmatpush1.bf16.xpose.msra.mxu0 0
        %658 = vmatprep.subr.bf16.mxu0 0
        %659 = vmatpush1.bf16.xpose.msra.mxu0 0
        %660 = vmatprep.subr.bf16.mxu0 0
        %661 = vmatpush1.bf16.xpose.msra.mxu0 0
        %662 = vmatprep.subr.bf16.mxu0 0
        %663 = vmatpush1.bf16.xpose.msra.mxu0 0
        %664 = vmatprep.subr.bf16.mxu0 0
        %665 = vmatpush1.bf16.xpose.msra.mxu0 0
        %666 = vmatprep.subr.bf16.mxu0 0
        %667 = vmatpush1.bf16.xpose.msra.mxu0 0
        %668 = vmatprep.subr.bf16.mxu0 0
        %669 = vmatpush1.bf16.xpose.msra.mxu0 0
        %670 = vmatprep.subr.bf16.mxu0 0
        %671 = vmatpush1.bf16.xpose.msra.mxu0 0
        %672 = vmatprep.subr.bf16.mxu0 0
        %673 = vmatpush1.bf16.xpose.msra.mxu0 0
        %674 = vmatprep.subr.bf16.mxu0 0
        %675 = vmatpush1.bf16.xpose.msra.mxu0 0
        %676 = vmatprep.subr.bf16.mxu0 0
        %677 = vmatpush1.bf16.xpose.msra.mxu0 0
        %678 = vmatprep.mubr.bf16.mxu0 0
        %679 = vmatmul.mubr.bf16.gmra.mrb[0].mxu0 %v641
        %v680 = vpop.f32.mrb[0].mxu0
        %v681 = vadd.f32 0.0, %v680
        %v682 = vpop.f32.mrb[0].mxu0
        %v683 = vpop.f32.mrb[0].mxu0
        %v684 = vpop.f32.mrb[0].mxu0
        %685 = vdwg.mxu0
        %v686 = vmul.f32 %v543, 0.35355338
        %v687 = vmul.f32 %v589, 0.35355338
        %v688 = vmul.f32 %v635, 0.35355338
        %v689 = vmul.f32 %v681, 0.35355338
        %v690 = vlaneseq
        %v691 = vshrl.u32 %v690, 7
        %v692 = vsub.s32 0, %v691
        %v693 = vrot.slane %v362, %v692
        %v694 = vadd.f32 %v686, %v693
        %v695 = vadd.f32 %v687, %v693
        %v696 = vadd.f32 %v688, %v693
        %v697 = vadd.f32 %v689, %v693
        %v698 = vsel %vm501, %v694, -inf
        %699 = vmax.xlane.f32.xlu0 %v698
        %v700 = vpop.xlane.xlu0 %699
        %v701 = vsel %vm501, %v695, -inf
        %702 = vmax.xlane.f32.xlu0 %v701
        %v703 = vpop.xlane.xlu0 %702
        %v704 = vsel %vm501, %v696, -inf
        %705 = vmax.xlane.f32.xlu0 %v704
        %v706 = vpop.xlane.xlu0 %705
        %v707 = vsel %vm501, %v697, -inf
        %708 = vmax.xlane.f32.xlu0 %v707
        %v709 = vpop.xlane.xlu0 %708
        %v710 = vsub.f32 %v694, %v700
        %v711 = vsub.f32 %v695, %v703
        %v712 = vsub.f32 %v696, %v706
        %v713 = vsub.f32 %v697, %v709
        %v714 = vmul.f32 %v710, 1.442695
        %v715 = vpow.pop %v714
        %v716 = vmul.f32 %v711, 1.442695
        %v717 = vpow.pop %v716
        %v718 = vmul.f32 %v712, 1.442695
        %v719 = vpow.pop %v718
        %v720 = vmul.f32 %v713, 1.442695
        %v721 = vpow.pop %v720
        %v722 = vsel %vm501, %v715, 0.0
        %723 = vadd.xlane.f32.xlu0 %v722
        %v724 = vpop.xlane.xlu0 %723
        %v725 = vsel %vm501, %v717, 0.0
        %726 = vadd.xlane.f32.xlu0 %v725
        %v727 = vpop.xlane.xlu0 %726
        %v728 = vsel %vm501, %v719, 0.0
        %729 = vadd.xlane.f32.xlu0 %v728
        %v730 = vpop.xlane.xlu0 %729
        %v731 = vsel %vm501, %v721, 0.0
        %732 = vadd.xlane.f32.xlu0 %v731
        %v733 = vpop.xlane.xlu0 %732
        %v734 = vrcp.pop %v724
        %v735 = vrcp.pop %v727
        %v736 = vrcp.pop %v730
        %v737 = vrcp.pop %v733
        %v738 = vmul.f32 %v715, %v734
        %v739 = vmul.f32 %v717, %v735
        %v740 = vmul.f32 %v719, %v736
        %v741 = vmul.f32 %v721, %v737
        %v742 = vpack.c.bf16 %v738, %v738
        %v743 = vpack.c.bf16 %v739, %v739
        %v744 = vpack.c.bf16 %v740, %v740
        %v745 = vpack.c.bf16 %v741, %v741
        %746 = vrot.lane.b32.xlu0 %v493, 96
        %v747 = vpop.permute.xlu0 %746
        %v749 = vsel %vm501, %v742, 0
        %vm751 = vcmask 1043456
        %v753 = vsel %vm751, %v747, 0
        %755 = vmatprep.subr.bf16.mxu0 0
        %756 = vmatpush1.bf16.msra.mxu0 %v753
        %757 = vmatprep.subr.bf16.mxu0 0
        %758 = vmatpush1.bf16.msra.mxu0 0
        %759 = vmatprep.subr.bf16.mxu0 0
        %760 = vmatpush1.bf16.msra.mxu0 0
        %761 = vmatprep.subr.bf16.mxu0 0
        %762 = vmatpush1.bf16.msra.mxu0 0
        %763 = vmatprep.subr.bf16.mxu0 0
        %764 = vmatpush1.bf16.msra.mxu0 0
        %765 = vmatprep.subr.bf16.mxu0 0
        %766 = vmatpush1.bf16.msra.mxu0 0
        %767 = vmatprep.subr.bf16.mxu0 0
        %768 = vmatpush1.bf16.msra.mxu0 0
        %769 = vmatprep.subr.bf16.mxu0 0
        %770 = vmatpush1.bf16.msra.mxu0 0
        %771 = vmatprep.subr.bf16.mxu0 0
        %772 = vmatpush1.bf16.msra.mxu0 0
        %773 = vmatprep.subr.bf16.mxu0 0
        %774 = vmatpush1.bf16.msra.mxu0 0
        %775 = vmatprep.subr.bf16.mxu0 0
        %776 = vmatpush1.bf16.msra.mxu0 0
        %777 = vmatprep.subr.bf16.mxu0 0
        %778 = vmatpush1.bf16.msra.mxu0 0
        %779 = vmatprep.subr.bf16.mxu0 0
        %780 = vmatpush1.bf16.msra.mxu0 0
        %781 = vmatprep.subr.bf16.mxu0 0
        %782 = vmatpush1.bf16.msra.mxu0 0
        %783 = vmatprep.subr.bf16.mxu0 0
        %784 = vmatpush1.bf16.msra.mxu0 0
        %785 = vmatprep.subr.bf16.mxu0 0
        %786 = vmatpush1.bf16.msra.mxu0 0
        %787 = vmatprep.mubr.bf16.mxu0 0
        %788 = vmatmul.mubr.bf16.gmra.mrb[0].mxu0 %v749
        %v789 = vpop.f32.mrb[0].mxu0
        %v790 = vadd.f32 0.0, %v789
        %v791 = vpop.f32.mrb[0].mxu0
        %v792 = vpop.f32.mrb[0].mxu0
        %v793 = vpop.f32.mrb[0].mxu0
        %794 = vdwg.mxu0
        %795 = vrot.lane.b32.xlu0 %v496, 96
        %v796 = vpop.permute.xlu0 %795
        %v798 = vsel %vm501, %v743, 0
        %v801 = vsel %vm751, %v796, 0
        %803 = vmatprep.subr.bf16.mxu0 0
        %804 = vmatpush1.bf16.msra.mxu0 %v801
        %805 = vmatprep.subr.bf16.mxu0 0
        %806 = vmatpush1.bf16.msra.mxu0 0
        %807 = vmatprep.subr.bf16.mxu0 0
        %808 = vmatpush1.bf16.msra.mxu0 0
        %809 = vmatprep.subr.bf16.mxu0 0
        %810 = vmatpush1.bf16.msra.mxu0 0
        %811 = vmatprep.subr.bf16.mxu0 0
        %812 = vmatpush1.bf16.msra.mxu0 0
        %813 = vmatprep.subr.bf16.mxu0 0
        %814 = vmatpush1.bf16.msra.mxu0 0
        %815 = vmatprep.subr.bf16.mxu0 0
        %816 = vmatpush1.bf16.msra.mxu0 0
        %817 = vmatprep.subr.bf16.mxu0 0
        %818 = vmatpush1.bf16.msra.mxu0 0
        %819 = vmatprep.subr.bf16.mxu0 0
        %820 = vmatpush1.bf16.msra.mxu0 0
        %821 = vmatprep.subr.bf16.mxu0 0
        %822 = vmatpush1.bf16.msra.mxu0 0
        %823 = vmatprep.subr.bf16.mxu0 0
        %824 = vmatpush1.bf16.msra.mxu0 0
        %825 = vmatprep.subr.bf16.mxu0 0
        %826 = vmatpush1.bf16.msra.mxu0 0
        %827 = vmatprep.subr.bf16.mxu0 0
        %828 = vmatpush1.bf16.msra.mxu0 0
        %829 = vmatprep.subr.bf16.mxu0 0
        %830 = vmatpush1.bf16.msra.mxu0 0
        %831 = vmatprep.subr.bf16.mxu0 0
        %832 = vmatpush1.bf16.msra.mxu0 0
        %833 = vmatprep.subr.bf16.mxu0 0
        %834 = vmatpush1.bf16.msra.mxu0 0
        %835 = vmatprep.mubr.bf16.mxu0 0
        %836 = vmatmul.mubr.bf16.gmra.mrb[0].mxu0 %v798
        %v837 = vpop.f32.mrb[0].mxu0
        %v838 = vadd.f32 0.0, %v837
        %v839 = vpop.f32.mrb[0].mxu0
        %v840 = vpop.f32.mrb[0].mxu0
        %v841 = vpop.f32.mrb[0].mxu0
        %842 = vdwg.mxu0
        %843 = vrot.lane.b32.xlu0 %v498, 96
        %v844 = vpop.permute.xlu0 %843
        %v846 = vsel %vm501, %v744, 0
        %v849 = vsel %vm751, %v844, 0
        %851 = vmatprep.subr.bf16.mxu0 0
        %852 = vmatpush1.bf16.msra.mxu0 %v849
        %853 = vmatprep.subr.bf16.mxu0 0
        %854 = vmatpush1.bf16.msra.mxu0 0
        %855 = vmatprep.subr.bf16.mxu0 0
        %856 = vmatpush1.bf16.msra.mxu0 0
        %857 = vmatprep.subr.bf16.mxu0 0
        %858 = vmatpush1.bf16.msra.mxu0 0
        %859 = vmatprep.subr.bf16.mxu0 0
        %860 = vmatpush1.bf16.msra.mxu0 0
        %861 = vmatprep.subr.bf16.mxu0 0
        %862 = vmatpush1.bf16.msra.mxu0 0
        %863 = vmatprep.subr.bf16.mxu0 0
        %864 = vmatpush1.bf16.msra.mxu0 0
        %865 = vmatprep.subr.bf16.mxu0 0
        %866 = vmatpush1.bf16.msra.mxu0 0
        %867 = vmatprep.subr.bf16.mxu0 0
        %868 = vmatpush1.bf16.msra.mxu0 0
        %869 = vmatprep.subr.bf16.mxu0 0
        %870 = vmatpush1.bf16.msra.mxu0 0
        %871 = vmatprep.subr.bf16.mxu0 0
        %872 = vmatpush1.bf16.msra.mxu0 0
        %873 = vmatprep.subr.bf16.mxu0 0
        %874 = vmatpush1.bf16.msra.mxu0 0
        %875 = vmatprep.subr.bf16.mxu0 0
        %876 = vmatpush1.bf16.msra.mxu0 0
        %877 = vmatprep.subr.bf16.mxu0 0
        %878 = vmatpush1.bf16.msra.mxu0 0
        %879 = vmatprep.subr.bf16.mxu0 0
        %880 = vmatpush1.bf16.msra.mxu0 0
        %881 = vmatprep.subr.bf16.mxu0 0
        %882 = vmatpush1.bf16.msra.mxu0 0
        %883 = vmatprep.mubr.bf16.mxu0 0
        %884 = vmatmul.mubr.bf16.gmra.mrb[0].mxu0 %v846
        %v885 = vpop.f32.mrb[0].mxu0
        %v886 = vadd.f32 0.0, %v885
        %v887 = vpop.f32.mrb[0].mxu0
        %v888 = vpop.f32.mrb[0].mxu0
        %v889 = vpop.f32.mrb[0].mxu0
        %890 = vdwg.mxu0
        %891 = vrot.lane.b32.xlu0 %v500, 96
        %v892 = vpop.permute.xlu0 %891
        %v894 = vsel %vm501, %v745, 0
        %v897 = vsel %vm751, %v892, 0
        %899 = vmatprep.subr.bf16.mxu0 0
        %900 = vmatpush1.bf16.msra.mxu0 %v897
        %901 = vmatprep.subr.bf16.mxu0 0
        %902 = vmatpush1.bf16.msra.mxu0 0
        %903 = vmatprep.subr.bf16.mxu0 0
        %904 = vmatpush1.bf16.msra.mxu0 0
        %905 = vmatprep.subr.bf16.mxu0 0
        %906 = vmatpush1.bf16.msra.mxu0 0
        %907 = vmatprep.subr.bf16.mxu0 0
        %908 = vmatpush1.bf16.msra.mxu0 0
        %909 = vmatprep.subr.bf16.mxu0 0
        %910 = vmatpush1.bf16.msra.mxu0 0
        %911 = vmatprep.subr.bf16.mxu0 0
        %912 = vmatpush1.bf16.msra.mxu0 0
        %913 = vmatprep.subr.bf16.mxu0 0
        %914 = vmatpush1.bf16.msra.mxu0 0
        %915 = vmatprep.subr.bf16.mxu0 0
        %916 = vmatpush1.bf16.msra.mxu0 0
        %917 = vmatprep.subr.bf16.mxu0 0
        %918 = vmatpush1.bf16.msra.mxu0 0
        %919 = vmatprep.subr.bf16.mxu0 0
        %920 = vmatpush1.bf16.msra.mxu0 0
        %921 = vmatprep.subr.bf16.mxu0 0
        %922 = vmatpush1.bf16.msra.mxu0 0
        %923 = vmatprep.subr.bf16.mxu0 0
        %924 = vmatpush1.bf16.msra.mxu0 0
        %925 = vmatprep.subr.bf16.mxu0 0
        %926 = vmatpush1.bf16.msra.mxu0 0
        %927 = vmatprep.subr.bf16.mxu0 0
        %928 = vmatpush1.bf16.msra.mxu0 0
        %929 = vmatprep.subr.bf16.mxu0 0
        %930 = vmatpush1.bf16.msra.mxu0 0
        %931 = vmatprep.mubr.bf16.mxu0 0
        %932 = vmatmul.mubr.bf16.gmra.mrb[0].mxu0 %v894
        %v933 = vpop.f32.mrb[0].mxu0
        %v934 = vadd.f32 0.0, %v933
        %v935 = vpop.f32.mrb[0].mxu0
        %v936 = vpop.f32.mrb[0].mxu0
        %v937 = vpop.f32.mrb[0].mxu0
        %938 = vdwg.mxu0
        %939 = vst.msk [vmem:[#allocation2] sm:$0xff] %vm501, %v790
        %941 = vrot.lane.b32.xlu0 %v838, 8
        %v942 = vpop.permute.xlu0 %941
        %vm944 = vcmask 130112
        %945 = vst.msk [vmem:[#allocation2] sm:$0xff] %vm944, %v942
        %947 = vrot.lane.b32.xlu0 %v886, 16
        %v948 = vpop.permute.xlu0 %947
        %vm950 = vcmask 195712
        %951 = vst.msk [vmem:[#allocation2] sm:$0xff] %vm950, %v948
        %953 = vrot.lane.b32.xlu0 %v934, 24
        %v954 = vpop.permute.xlu0 %953
        %vm956 = vcmask 261312
        %957 = vst.msk [vmem:[#allocation2] sm:$0xff] %vm956, %v954
        %v958 = vld [vmem:[#allocation2] sm:$0xff]
        %v959 = vpack.c.bf16 %v958, %v958
        %v960 = vld [vmem:[%s4] sm:$0xf]
        %v961 = vld [vmem:[%s4 + $0x4] sm:$0xf]
        %v962 = vld [vmem:[%s4 + $0x8] sm:$0xf]
        %v963 = vld [vmem:[%s4 + $0xc] sm:$0xf]
        %v964 = vlaneseq
        %v965 = vshrl.u32 %v964, 7
        %v966 = vsub.s32 2, %v965
        %v967 = vrot.slane %v363, %v966
        %v972 = vunpack.c.l.b16 %v960
        %v973 = vunpack.c.l.b16 %v961
        %v974 = vunpack.c.l.b16 %v962
        %v975 = vunpack.c.l.b16 %v963
        %v976 = vpack.c.b16 %v973, %v972
        %v977 = vpack.c.b16 %v975, %v974
        %v981 = vsel %vm388, %v959, 0
        %983 = vmatprep.subr.bf16.mxu0 0
        %984 = vmatpush1.bf16.msra.mxu0 %v976
        %985 = vmatprep.subr.bf16.mxu0 0
        %986 = vmatpush1.bf16.msra.mxu0 %v977
        %987 = vmatprep.subr.bf16.mxu0 0
        %988 = vmatpush1.bf16.msra.mxu0 0
        %989 = vmatprep.subr.bf16.mxu0 0
        %990 = vmatpush1.bf16.msra.mxu0 0
        %991 = vmatprep.subr.bf16.mxu0 0
        %992 = vmatpush1.bf16.msra.mxu0 0
        %993 = vmatprep.subr.bf16.mxu0 0
        %994 = vmatpush1.bf16.msra.mxu0 0
        %995 = vmatprep.subr.bf16.mxu0 0
        %996 = vmatpush1.bf16.msra.mxu0 0
        %997 = vmatprep.subr.bf16.mxu0 0
        %998 = vmatpush1.bf16.msra.mxu0 0
        %999 = vmatprep.subr.bf16.mxu0 0
        %1000 = vmatpush1.bf16.msra.mxu0 0
        %1001 = vmatprep.subr.bf16.mxu0 0
        %1002 = vmatpush1.bf16.msra.mxu0 0
        %1003 = vmatprep.subr.bf16.mxu0 0
        %1004 = vmatpush1.bf16.msra.mxu0 0
        %1005 = vmatprep.subr.bf16.mxu0 0
        %1006 = vmatpush1.bf16.msra.mxu0 0
        %1007 = vmatprep.subr.bf16.mxu0 0
        %1008 = vmatpush1.bf16.msra.mxu0 0
        %1009 = vmatprep.subr.bf16.mxu0 0
        %1010 = vmatpush1.bf16.msra.mxu0 0
        %1011 = vmatprep.subr.bf16.mxu0 0
        %1012 = vmatpush1.bf16.msra.mxu0 0
        %1013 = vmatprep.subr.bf16.mxu0 0
        %1014 = vmatpush1.bf16.msra.mxu0 0
        %1015 = vmatprep.mubr.bf16.mxu0 0
        %1016 = vmatmul.mubr.bf16.gmra.mrb[0].mxu0 %v981
        %v1017 = vpop.f32.mrb[0].mxu0
        %v1018 = vadd.f32 %v967, %v1017
        %v1019 = vpop.f32.mrb[0].mxu0
        %v1020 = vpop.f32.mrb[0].mxu0
        %v1021 = vpop.f32.mrb[0].mxu0
        %1022 = vdwg.mxu0
        %v1023 = vadd.f32 %v1018, %v360
        %v1024 = vsel %vm388, %v1023, 0.0
        %1025 = vadd.xlane.f32.xlu0 %v1024
        %v1026 = vpop.xlane.xlu0 %1025
        %v1027 = vrcp.pop 32.0
        %v1028 = vmul.f32 %v1026, %v1027
        %v1029 = vsub.f32 %v1023, %v1028
        %v1030 = vmul.f32 %v1029, %v1029
        %v1031 = vsel %vm388, %v1030, 0.0
        %1032 = vadd.xlane.f32.xlu0 %v1031
        %v1033 = vpop.xlane.xlu0 %1032
        %v1034 = vmul.f32 %v1033, %v1027
        %v1035 = vadd.f32 %v1034, 1e-05
        %v1036 = vrsqrt.pop %v1035
        %v1037 = vmul.f32 %v1029, %v1036
        %v1038 = vlaneseq
        %v1039 = vshrl.u32 %v1038, 7
        %v1040 = vsub.s32 0, %v1039
        %v1041 = vrot.slane %v363, %v1040
        %v1042 = vmul.f32 %v1037, %v1041
        %v1043 = vlaneseq
        %v1044 = vshrl.u32 %v1043, 7
        %v1045 = vsub.s32 1, %v1044
        %v1046 = vrot.slane %v363, %v1045
        %v1047 = vadd.f32 %v1042, %v1046
        %v1048 = vpack.c.bf16 %v1047, %v1047
        %v1049 = vld [vmem:[%s5] sm:$0xff]
        %v1050 = vld [vmem:[%s5 + $0x8] sm:$0xff]
        %v1051 = vld [vmem:[%s5 + $0x10] sm:$0xff]
        %v1052 = vld [vmem:[%s5 + $0x18] sm:$0xff]
        %v1053 = vld [vmem:[%s5 + $0x20] sm:$0xff]
        %v1054 = vld [vmem:[%s5 + $0x28] sm:$0xff]
        %v1055 = vld [vmem:[%s5 + $0x30] sm:$0xff]
        %v1056 = vld [vmem:[%s5 + $0x38] sm:$0xff]
        %v1057 = vld [vmem:[%s5 + $0x40] sm:$0xff]
        %v1058 = vld [vmem:[%s5 + $0x48] sm:$0xff]
        %v1059 = vld [vmem:[%s5 + $0x50] sm:$0xff]
        %v1060 = vld [vmem:[%s5 + $0x58] sm:$0xff]
        %v1061 = vld [vmem:[%s5 + $0x60] sm:$0xff]
        %v1062 = vld [vmem:[%s5 + $0x68] sm:$0xff]
        %v1063 = vld [vmem:[%s5 + $0x70] sm:$0xff]
        %v1064 = vld [vmem:[%s5 + $0x78] sm:$0xff]
        %v1065 = vld [vmem:[%s5 + $0x80] sm:$0xff]
        %v1066 = vld [vmem:[%s5 + $0x88] sm:$0xff]
        %v1067 = vld [vmem:[%s5 + $0x90] sm:$0xff]
        %v1068 = vld [vmem:[%s5 + $0x98] sm:$0xff]
        %v1069 = vld [vmem:[%s5 + $0xa0] sm:$0xff]
        %v1070 = vld [vmem:[%s5 + $0xa8] sm:$0xff]
        %v1071 = vld [vmem:[%s5 + $0xb0] sm:$0xff]
        %v1072 = vld [vmem:[%s5 + $0xb8] sm:$0xff]
        %v1073 = vld [vmem:[%s5 + $0xc0] sm:$0xff]
        %v1074 = vld [vmem:[%s5 + $0xc8] sm:$0xff]
        %v1075 = vld [vmem:[%s5 + $0xd0] sm:$0xff]
        %v1076 = vld [vmem:[%s5 + $0xd8] sm:$0xff]
        %v1077 = vld [vmem:[%s5 + $0xe0] sm:$0xff]
        %v1078 = vld [vmem:[%s5 + $0xe8] sm:$0xff]
        %v1079 = vld [vmem:[%s5 + $0xf0] sm:$0xff]
        %v1080 = vld [vmem:[%s5 + $0xf8] sm:$0xff]
        %v1081 = vld [vmem:[%s6] sm:$0xff]
        %v1082 = vld [vmem:[%s6 + $0x8] sm:$0xff]
        %v1085 = vlaneseq
        %v1086 = vshrl.u32 %v1085, 7
        %v1087 = vsub.s32 0, %v1086
        %v1088 = vrot.slane %v1081, %v1087
        %v1089 = vlaneseq
        %v1090 = vshrl.u32 %v1089, 7
        %v1091 = vsub.s32 1, %v1090
        %v1092 = vrot.slane %v1081, %v1091
        %v1093 = vlaneseq
        %v1094 = vshrl.u32 %v1093, 7
        %v1095 = vsub.s32 2, %v1094
        %v1096 = vrot.slane %v1081, %v1095
        %v1097 = vlaneseq
        %v1098 = vshrl.u32 %v1097, 7
        %v1099 = vsub.s32 3, %v1098
        %v1100 = vrot.slane %v1081, %v1099
        %v1101 = vlaneseq
        %v1102 = vshrl.u32 %v1101, 7
        %v1103 = vsub.s32 4, %v1102
        %v1104 = vrot.slane %v1081, %v1103
        %v1105 = vlaneseq
        %v1106 = vshrl.u32 %v1105, 7
        %v1107 = vsub.s32 5, %v1106
        %v1108 = vrot.slane %v1081, %v1107
        %v1109 = vlaneseq
        %v1110 = vshrl.u32 %v1109, 7
        %v1111 = vsub.s32 6, %v1110
        %v1112 = vrot.slane %v1081, %v1111
        %v1113 = vlaneseq
        %v1114 = vshrl.u32 %v1113, 7
        %v1115 = vsub.s32 7, %v1114
        %v1116 = vrot.slane %v1081, %v1115
        %v1117 = vlaneseq
        %v1118 = vshrl.u32 %v1117, 7
        %v1119 = vsub.s32 0, %v1118
        %v1120 = vrot.slane %v1082, %v1119
        %v1121 = vlaneseq
        %v1122 = vshrl.u32 %v1121, 7
        %v1123 = vsub.s32 1, %v1122
        %v1124 = vrot.slane %v1082, %v1123
        %v1125 = vlaneseq
        %v1126 = vshrl.u32 %v1125, 7
        %v1127 = vsub.s32 2, %v1126
        %v1128 = vrot.slane %v1082, %v1127
        %v1129 = vlaneseq
        %v1130 = vshrl.u32 %v1129, 7
        %v1131 = vsub.s32 3, %v1130
        %v1132 = vrot.slane %v1082, %v1131
        %v1133 = vlaneseq
        %v1134 = vshrl.u32 %v1133, 7
        %v1135 = vsub.s32 4, %v1134
        %v1136 = vrot.slane %v1082, %v1135
        %v1137 = vlaneseq
        %v1138 = vshrl.u32 %v1137, 7
        %v1139 = vsub.s32 5, %v1138
        %v1140 = vrot.slane %v1082, %v1139
        %v1141 = vlaneseq
        %v1142 = vshrl.u32 %v1141, 7
        %v1143 = vsub.s32 6, %v1142
        %v1144 = vrot.slane %v1082, %v1143
        %v1145 = vlaneseq
        %v1146 = vshrl.u32 %v1145, 7
        %v1147 = vsub.s32 7, %v1146
        %v1148 = vrot.slane %v1082, %v1147
        %v1197 = vunpack.c.l.b16 %v1049
        %v1198 = vunpack.c.h.b16 %v1049
        %v1199 = vunpack.c.l.b16 %v1050
        %v1200 = vunpack.c.h.b16 %v1050
        %v1201 = vunpack.c.l.b16 %v1051
        %v1202 = vunpack.c.h.b16 %v1051
        %v1203 = vunpack.c.l.b16 %v1052
        %v1204 = vunpack.c.h.b16 %v1052
        %v1205 = vunpack.c.l.b16 %v1053
        %v1206 = vunpack.c.h.b16 %v1053
        %v1207 = vunpack.c.l.b16 %v1054
        %v1208 = vunpack.c.h.b16 %v1054
        %v1209 = vunpack.c.l.b16 %v1055
        %v1210 = vunpack.c.h.b16 %v1055
        %v1211 = vunpack.c.l.b16 %v1056
        %v1212 = vunpack.c.h.b16 %v1056
        %v1213 = vunpack.c.l.b16 %v1057
        %v1214 = vunpack.c.h.b16 %v1057
        %v1215 = vunpack.c.l.b16 %v1058
        %v1216 = vunpack.c.h.b16 %v1058
        %v1217 = vunpack.c.l.b16 %v1059
        %v1218 = vunpack.c.h.b16 %v1059
        %v1219 = vunpack.c.l.b16 %v1060
        %v1220 = vunpack.c.h.b16 %v1060
        %v1221 = vunpack.c.l.b16 %v1061
        %v1222 = vunpack.c.h.b16 %v1061
        %v1223 = vunpack.c.l.b16 %v1062
        %v1224 = vunpack.c.h.b16 %v1062
        %v1225 = vunpack.c.l.b16 %v1063
        %v1226 = vunpack.c.h.b16 %v1063
        %v1227 = vunpack.c.l.b16 %v1064
        %v1228 = vunpack.c.h.b16 %v1064
        %v1229 = vunpack.c.l.b16 %v1065
        %v1230 = vunpack.c.h.b16 %v1065
        %v1231 = vunpack.c.l.b16 %v1066
        %v1232 = vunpack.c.h.b16 %v1066
        %v1233 = vunpack.c.l.b16 %v1067
        %v1234 = vunpack.c.h.b16 %v1067
        %v1235 = vunpack.c.l.b16 %v1068
        %v1236 = vunpack.c.h.b16 %v1068
        %v1237 = vunpack.c.l.b16 %v1069
        %v1238 = vunpack.c.h.b16 %v1069
        %v1239 = vunpack.c.l.b16 %v1070
        %v1240 = vunpack.c.h.b16 %v1070
        %v1241 = vunpack.c.l.b16 %v1071
        %v1242 = vunpack.c.h.b16 %v1071
        %v1243 = vunpack.c.l.b16 %v1072
        %v1244 = vunpack.c.h.b16 %v1072
        %v1245 = vunpack.c.l.b16 %v1073
        %v1246 = vunpack.c.h.b16 %v1073
        %v1247 = vunpack.c.l.b16 %v1074
        %v1248 = vunpack.c.h.b16 %v1074
        %v1249 = vunpack.c.l.b16 %v1075
        %v1250 = vunpack.c.h.b16 %v1075
        %v1251 = vunpack.c.l.b16 %v1076
        %v1252 = vunpack.c.h.b16 %v1076
        %v1253 = vunpack.c.l.b16 %v1077
        %v1254 = vunpack.c.h.b16 %v1077
        %v1255 = vunpack.c.l.b16 %v1078
        %v1256 = vunpack.c.h.b16 %v1078
        %v1257 = vunpack.c.l.b16 %v1079
        %v1258 = vunpack.c.h.b16 %v1079
        %v1259 = vunpack.c.l.b16 %v1080
        %v1260 = vunpack.c.h.b16 %v1080
        %v1261 = vpack.c.b16 %v1213, %v1197
        %v1262 = vpack.c.b16 %v1214, %v1198
        %v1263 = vpack.c.b16 %v1215, %v1199
        %v1264 = vpack.c.b16 %v1216, %v1200
        %v1265 = vpack.c.b16 %v1217, %v1201
        %v1266 = vpack.c.b16 %v1218, %v1202
        %v1267 = vpack.c.b16 %v1219, %v1203
        %v1268 = vpack.c.b16 %v1220, %v1204
        %v1269 = vpack.c.b16 %v1221, %v1205
        %v1270 = vpack.c.b16 %v1222, %v1206
        %v1271 = vpack.c.b16 %v1223, %v1207
        %v1272 = vpack.c.b16 %v1224, %v1208
        %v1273 = vpack.c.b16 %v1225, %v1209
        %v1274 = vpack.c.b16 %v1226, %v1210
        %v1275 = vpack.c.b16 %v1227, %v1211
        %v1276 = vpack.c.b16 %v1228, %v1212
        %v1277 = vpack.c.b16 %v1245, %v1229
        %v1278 = vpack.c.b16 %v1246, %v1230
        %v1279 = vpack.c.b16 %v1247, %v1231
        %v1280 = vpack.c.b16 %v1248, %v1232
        %v1281 = vpack.c.b16 %v1249, %v1233
        %v1282 = vpack.c.b16 %v1250, %v1234
        %v1283 = vpack.c.b16 %v1251, %v1235
        %v1284 = vpack.c.b16 %v1252, %v1236
        %v1285 = vpack.c.b16 %v1253, %v1237
        %v1286 = vpack.c.b16 %v1254, %v1238
        %v1287 = vpack.c.b16 %v1255, %v1239
        %v1288 = vpack.c.b16 %v1256, %v1240
        %v1289 = vpack.c.b16 %v1257, %v1241
        %v1290 = vpack.c.b16 %v1258, %v1242
        %v1291 = vpack.c.b16 %v1259, %v1243
        %v1292 = vpack.c.b16 %v1260, %v1244
        %v1326 = vsel %vm388, %v1048, 0
        %1328 = vmatprep.subr.bf16.mxu0 %v1262
        %1329 = vmatpush1.bf16.msra.mxu0 %v1261
        %1330 = vmatprep.subr.bf16.mxu0 %v1278
        %1331 = vmatpush1.bf16.msra.mxu0 %v1277
        %1332 = vmatprep.subr.bf16.mxu0 0
        %1333 = vmatpush1.bf16.msra.mxu0 0
        %1334 = vmatprep.subr.bf16.mxu0 0
        %1335 = vmatpush1.bf16.msra.mxu0 0
        %1336 = vmatprep.subr.bf16.mxu0 0
        %1337 = vmatpush1.bf16.msra.mxu0 0
        %1338 = vmatprep.subr.bf16.mxu0 0
        %1339 = vmatpush1.bf16.msra.mxu0 0
        %1340 = vmatprep.subr.bf16.mxu0 0
        %1341 = vmatpush1.bf16.msra.mxu0 0
        %1342 = vmatprep.subr.bf16.mxu0 0
        %1343 = vmatpush1.bf16.msra.mxu0 0
        %1344 = vmatprep.subr.bf16.mxu0 0
        %1345 = vmatpush1.bf16.msra.mxu0 0
        %1346 = vmatprep.subr.bf16.mxu0 0
        %1347 = vmatpush1.bf16.msra.mxu0 0
        %1348 = vmatprep.subr.bf16.mxu0 0
        %1349 = vmatpush1.bf16.msra.mxu0 0
        %1350 = vmatprep.subr.bf16.mxu0 0
        %1351 = vmatpush1.bf16.msra.mxu0 0
        %1352 = vmatprep.subr.bf16.mxu0 0
        %1353 = vmatpush1.bf16.msra.mxu0 0
        %1354 = vmatprep.subr.bf16.mxu0 0
        %1355 = vmatpush1.bf16.msra.mxu0 0
        %1356 = vmatprep.subr.bf16.mxu0 0
        %1357 = vmatpush1.bf16.msra.mxu0 0
        %1358 = vmatprep.subr.bf16.mxu0 0
        %1359 = vmatpush1.bf16.msra.mxu0 0
        %1360 = vmatprep.mubr.bf16.mxu0 0
        %1361 = vmatmul.mubr.bf16.gmra.mrb[0].mxu0 %v1326
        %v1362 = vpop.f32.mrb[0].mxu0
        %v1363 = vadd.f32 %v1088, %v1362
        %v1364 = vpop.f32.mrb[0].mxu0
        %v1365 = vadd.f32 %v1092, %v1364
        %v1366 = vpop.f32.mrb[0].mxu0
        %v1367 = vpop.f32.mrb[0].mxu0
        %1368 = vdwg.mxu0
        %1369 = vmatprep.subr.bf16.mxu0 %v1264
        %1370 = vmatpush1.bf16.msra.mxu0 %v1263
        %1371 = vmatprep.subr.bf16.mxu0 %v1280
        %1372 = vmatpush1.bf16.msra.mxu0 %v1279
        %1373 = vmatprep.subr.bf16.mxu0 0
        %1374 = vmatpush1.bf16.msra.mxu0 0
        %1375 = vmatprep.subr.bf16.mxu0 0
        %1376 = vmatpush1.bf16.msra.mxu0 0
        %1377 = vmatprep.subr.bf16.mxu0 0
        %1378 = vmatpush1.bf16.msra.mxu0 0
        %1379 = vmatprep.subr.bf16.mxu0 0
        %1380 = vmatpush1.bf16.msra.mxu0 0
        %1381 = vmatprep.subr.bf16.mxu0 0
        %1382 = vmatpush1.bf16.msra.mxu0 0
        %1383 = vmatprep.subr.bf16.mxu0 0
        %1384 = vmatpush1.bf16.msra.mxu0 0
        %1385 = vmatprep.subr.bf16.mxu0 0
        %1386 = vmatpush1.bf16.msra.mxu0 0
        %1387 = vmatprep.subr.bf16.mxu0 0
        %1388 = vmatpush1.bf16.msra.mxu0 0
        %1389 = vmatprep.subr.bf16.mxu0 0
        %1390 = vmatpush1.bf16.msra.mxu0 0
        %1391 = vmatprep.subr.bf16.mxu0 0
        %1392 = vmatpush1.bf16.msra.mxu0 0
        %1393 = vmatprep.subr.bf16.mxu0 0
        %1394 = vmatpush1.bf16.msra.mxu0 0
        %1395 = vmatprep.subr.bf16.mxu0 0
        %1396 = vmatpush1.bf16.msra.mxu0 0
        %1397 = vmatprep.subr.bf16.mxu0 0
        %1398 = vmatpush1.bf16.msra.mxu0 0
        %1399 = vmatprep.subr.bf16.mxu0 0
        %1400 = vmatpush1.bf16.msra.mxu0 0
        %1401 = vmatprep.mubr.bf16.mxu0 0
        %1402 = vmatmul.mubr.bf16.gmra.mrb[0].mxu0 %v1326
        %v1403 = vpop.f32.mrb[0].mxu0
        %v1404 = vadd.f32 %v1096, %v1403
        %v1405 = vpop.f32.mrb[0].mxu0
        %v1406 = vadd.f32 %v1100, %v1405
        %v1407 = vpop.f32.mrb[0].mxu0
        %v1408 = vpop.f32.mrb[0].mxu0
        %1409 = vdwg.mxu0
        %1410 = vmatprep.subr.bf16.mxu0 %v1266
        %1411 = vmatpush1.bf16.msra.mxu0 %v1265
        %1412 = vmatprep.subr.bf16.mxu0 %v1282
        %1413 = vmatpush1.bf16.msra.mxu0 %v1281
        %1414 = vmatprep.subr.bf16.mxu0 0
        %1415 = vmatpush1.bf16.msra.mxu0 0
        %1416 = vmatprep.subr.bf16.mxu0 0
        %1417 = vmatpush1.bf16.msra.mxu0 0
        %1418 = vmatprep.subr.bf16.mxu0 0
        %1419 = vmatpush1.bf16.msra.mxu0 0
        %1420 = vmatprep.subr.bf16.mxu0 0
        %1421 = vmatpush1.bf16.msra.mxu0 0
        %1422 = vmatprep.subr.bf16.mxu0 0
        %1423 = vmatpush1.bf16.msra.mxu0 0
        %1424 = vmatprep.subr.bf16.mxu0 0
        %1425 = vmatpush1.bf16.msra.mxu0 0
        %1426 = vmatprep.subr.bf16.mxu0 0
        %1427 = vmatpush1.bf16.msra.mxu0 0
        %1428 = vmatprep.subr.bf16.mxu0 0
        %1429 = vmatpush1.bf16.msra.mxu0 0
        %1430 = vmatprep.subr.bf16.mxu0 0
        %1431 = vmatpush1.bf16.msra.mxu0 0
        %1432 = vmatprep.subr.bf16.mxu0 0
        %1433 = vmatpush1.bf16.msra.mxu0 0
        %1434 = vmatprep.subr.bf16.mxu0 0
        %1435 = vmatpush1.bf16.msra.mxu0 0
        %1436 = vmatprep.subr.bf16.mxu0 0
        %1437 = vmatpush1.bf16.msra.mxu0 0
        %1438 = vmatprep.subr.bf16.mxu0 0
        %1439 = vmatpush1.bf16.msra.mxu0 0
        %1440 = vmatprep.subr.bf16.mxu0 0
        %1441 = vmatpush1.bf16.msra.mxu0 0
        %1442 = vmatprep.mubr.bf16.mxu0 0
        %1443 = vmatmul.mubr.bf16.gmra.mrb[0].mxu0 %v1326
        %v1444 = vpop.f32.mrb[0].mxu0
        %v1445 = vadd.f32 %v1104, %v1444
        %v1446 = vpop.f32.mrb[0].mxu0
        %v1447 = vadd.f32 %v1108, %v1446
        %v1448 = vpop.f32.mrb[0].mxu0
        %v1449 = vpop.f32.mrb[0].mxu0
        %1450 = vdwg.mxu0
        %1451 = vmatprep.subr.bf16.mxu0 %v1268
        %1452 = vmatpush1.bf16.msra.mxu0 %v1267
        %1453 = vmatprep.subr.bf16.mxu0 %v1284
        %1454 = vmatpush1.bf16.msra.mxu0 %v1283
        %1455 = vmatprep.subr.bf16.mxu0 0
        %1456 = vmatpush1.bf16.msra.mxu0 0
        %1457 = vmatprep.subr.bf16.mxu0 0
        %1458 = vmatpush1.bf16.msra.mxu0 0
        %1459 = vmatprep.subr.bf16.mxu0 0
        %1460 = vmatpush1.bf16.msra.mxu0 0
        %1461 = vmatprep.subr.bf16.mxu0 0
        %1462 = vmatpush1.bf16.msra.mxu0 0
        %1463 = vmatprep.subr.bf16.mxu0 0
        %1464 = vmatpush1.bf16.msra.mxu0 0
        %1465 = vmatprep.subr.bf16.mxu0 0
        %1466 = vmatpush1.bf16.msra.mxu0 0
        %1467 = vmatprep.subr.bf16.mxu0 0
        %1468 = vmatpush1.bf16.msra.mxu0 0
        %1469 = vmatprep.subr.bf16.mxu0 0
        %1470 = vmatpush1.bf16.msra.mxu0 0
        %1471 = vmatprep.subr.bf16.mxu0 0
        %1472 = vmatpush1.bf16.msra.mxu0 0
        %1473 = vmatprep.subr.bf16.mxu0 0
        %1474 = vmatpush1.bf16.msra.mxu0 0
        %1475 = vmatprep.subr.bf16.mxu0 0
        %1476 = vmatpush1.bf16.msra.mxu0 0
        %1477 = vmatprep.subr.bf16.mxu0 0
        %1478 = vmatpush1.bf16.msra.mxu0 0
        %1479 = vmatprep.subr.bf16.mxu0 0
        %1480 = vmatpush1.bf16.msra.mxu0 0
        %1481 = vmatprep.subr.bf16.mxu0 0
        %1482 = vmatpush1.bf16.msra.mxu0 0
        %1483 = vmatprep.mubr.bf16.mxu0 0
        %1484 = vmatmul.mubr.bf16.gmra.mrb[0].mxu0 %v1326
        %v1485 = vpop.f32.mrb[0].mxu0
        %v1486 = vadd.f32 %v1112, %v1485
        %v1487 = vpop.f32.mrb[0].mxu0
        %v1488 = vadd.f32 %v1116, %v1487
        %v1489 = vpop.f32.mrb[0].mxu0
        %v1490 = vpop.f32.mrb[0].mxu0
        %1491 = vdwg.mxu0
        %1492 = vmatprep.subr.bf16.mxu0 %v1270
        %1493 = vmatpush1.bf16.msra.mxu0 %v1269
        %1494 = vmatprep.subr.bf16.mxu0 %v1286
        %1495 = vmatpush1.bf16.msra.mxu0 %v1285
        %1496 = vmatprep.subr.bf16.mxu0 0
        %1497 = vmatpush1.bf16.msra.mxu0 0
        %1498 = vmatprep.subr.bf16.mxu0 0
        %1499 = vmatpush1.bf16.msra.mxu0 0
        %1500 = vmatprep.subr.bf16.mxu0 0
        %1501 = vmatpush1.bf16.msra.mxu0 0
        %1502 = vmatprep.subr.bf16.mxu0 0
        %1503 = vmatpush1.bf16.msra.mxu0 0
        %1504 = vmatprep.subr.bf16.mxu0 0
        %1505 = vmatpush1.bf16.msra.mxu0 0
        %1506 = vmatprep.subr.bf16.mxu0 0
        %1507 = vmatpush1.bf16.msra.mxu0 0
        %1508 = vmatprep.subr.bf16.mxu0 0
        %1509 = vmatpush1.bf16.msra.mxu0 0
        %1510 = vmatprep.subr.bf16.mxu0 0
        %1511 = vmatpush1.bf16.msra.mxu0 0
        %1512 = vmatprep.subr.bf16.mxu0 0
        %1513 = vmatpush1.bf16.msra.mxu0 0
        %1514 = vmatprep.subr.bf16.mxu0 0
        %1515 = vmatpush1.bf16.msra.mxu0 0
        %1516 = vmatprep.subr.bf16.mxu0 0
        %1517 = vmatpush1.bf16.msra.mxu0 0
        %1518 = vmatprep.subr.bf16.mxu0 0
        %1519 = vmatpush1.bf16.msra.mxu0 0
        %1520 = vmatprep.subr.bf16.mxu0 0
        %1521 = vmatpush1.bf16.msra.mxu0 0
        %1522 = vmatprep.subr.bf16.mxu0 0
        %1523 = vmatpush1.bf16.msra.mxu0 0
        %1524 = vmatprep.mubr.bf16.mxu0 0
        %1525 = vmatmul.mubr.bf16.gmra.mrb[0].mxu0 %v1326
        %v1526 = vpop.f32.mrb[0].mxu0
        %v1527 = vadd.f32 %v1120, %v1526
        %v1528 = vpop.f32.mrb[0].mxu0
        %v1529 = vadd.f32 %v1124, %v1528
        %v1530 = vpop.f32.mrb[0].mxu0
        %v1531 = vpop.f32.mrb[0].mxu0
        %1532 = vdwg.mxu0
        %1533 = vmatprep.subr.bf16.mxu0 %v1272
        %1534 = vmatpush1.bf16.msra.mxu0 %v1271
        %1535 = vmatprep.subr.bf16.mxu0 %v1288
        %1536 = vmatpush1.bf16.msra.mxu0 %v1287
        %1537 = vmatprep.subr.bf16.mxu0 0
        %1538 = vmatpush1.bf16.msra.mxu0 0
        %1539 = vmatprep.subr.bf16.mxu0 0
        %1540 = vmatpush1.bf16.msra.mxu0 0
        %1541 = vmatprep.subr.bf16.mxu0 0
        %1542 = vmatpush1.bf16.msra.mxu0 0
        %1543 = vmatprep.subr.bf16.mxu0 0
        %1544 = vmatpush1.bf16.msra.mxu0 0
        %1545 = vmatprep.subr.bf16.mxu0 0
        %1546 = vmatpush1.bf16.msra.mxu0 0
        %1547 = vmatprep.subr.bf16.mxu0 0
        %1548 = vmatpush1.bf16.msra.mxu0 0
        %1549 = vmatprep.subr.bf16.mxu0 0
        %1550 = vmatpush1.bf16.msra.mxu0 0
        %1551 = vmatprep.subr.bf16.mxu0 0
        %1552 = vmatpush1.bf16.msra.mxu0 0
        %1553 = vmatprep.subr.bf16.mxu0 0
        %1554 = vmatpush1.bf16.msra.mxu0 0
        %1555 = vmatprep.subr.bf16.mxu0 0
        %1556 = vmatpush1.bf16.msra.mxu0 0
        %1557 = vmatprep.subr.bf16.mxu0 0
        %1558 = vmatpush1.bf16.msra.mxu0 0
        %1559 = vmatprep.subr.bf16.mxu0 0
        %1560 = vmatpush1.bf16.msra.mxu0 0
        %1561 = vmatprep.subr.bf16.mxu0 0
        %1562 = vmatpush1.bf16.msra.mxu0 0
        %1563 = vmatprep.subr.bf16.mxu0 0
        %1564 = vmatpush1.bf16.msra.mxu0 0
        %1565 = vmatprep.mubr.bf16.mxu0 0
        %1566 = vmatmul.mubr.bf16.gmra.mrb[0].mxu0 %v1326
        %v1567 = vpop.f32.mrb[0].mxu0
        %v1568 = vadd.f32 %v1128, %v1567
        %v1569 = vpop.f32.mrb[0].mxu0
        %v1570 = vadd.f32 %v1132, %v1569
        %v1571 = vpop.f32.mrb[0].mxu0
        %v1572 = vpop.f32.mrb[0].mxu0
        %1573 = vdwg.mxu0
        %1574 = vmatprep.subr.bf16.mxu0 %v1274
        %1575 = vmatpush1.bf16.msra.mxu0 %v1273
        %1576 = vmatprep.subr.bf16.mxu0 %v1290
        %1577 = vmatpush1.bf16.msra.mxu0 %v1289
        %1578 = vmatprep.subr.bf16.mxu0 0
        %1579 = vmatpush1.bf16.msra.mxu0 0
        %1580 = vmatprep.subr.bf16.mxu0 0
        %1581 = vmatpush1.bf16.msra.mxu0 0
        %1582 = vmatprep.subr.bf16.mxu0 0
        %1583 = vmatpush1.bf16.msra.mxu0 0
        %1584 = vmatprep.subr.bf16.mxu0 0
        %1585 = vmatpush1.bf16.msra.mxu0 0
        %1586 = vmatprep.subr.bf16.mxu0 0
        %1587 = vmatpush1.bf16.msra.mxu0 0
        %1588 = vmatprep.subr.bf16.mxu0 0
        %1589 = vmatpush1.bf16.msra.mxu0 0
        %1590 = vmatprep.subr.bf16.mxu0 0
        %1591 = vmatpush1.bf16.msra.mxu0 0
        %1592 = vmatprep.subr.bf16.mxu0 0
        %1593 = vmatpush1.bf16.msra.mxu0 0
        %1594 = vmatprep.subr.bf16.mxu0 0
        %1595 = vmatpush1.bf16.msra.mxu0 0
        %1596 = vmatprep.subr.bf16.mxu0 0
        %1597 = vmatpush1.bf16.msra.mxu0 0
        %1598 = vmatprep.subr.bf16.mxu0 0
        %1599 = vmatpush1.bf16.msra.mxu0 0
        %1600 = vmatprep.subr.bf16.mxu0 0
        %1601 = vmatpush1.bf16.msra.mxu0 0
        %1602 = vmatprep.subr.bf16.mxu0 0
        %1603 = vmatpush1.bf16.msra.mxu0 0
        %1604 = vmatprep.subr.bf16.mxu0 0
        %1605 = vmatpush1.bf16.msra.mxu0 0
        %1606 = vmatprep.mubr.bf16.mxu0 0
        %1607 = vmatmul.mubr.bf16.gmra.mrb[0].mxu0 %v1326
        %v1608 = vpop.f32.mrb[0].mxu0
        %v1609 = vadd.f32 %v1136, %v1608
        %v1610 = vpop.f32.mrb[0].mxu0
        %v1611 = vadd.f32 %v1140, %v1610
        %v1612 = vpop.f32.mrb[0].mxu0
        %v1613 = vpop.f32.mrb[0].mxu0
        %1614 = vdwg.mxu0
        %1615 = vmatprep.subr.bf16.mxu0 %v1276
        %1616 = vmatpush1.bf16.msra.mxu0 %v1275
        %1617 = vmatprep.subr.bf16.mxu0 %v1292
        %1618 = vmatpush1.bf16.msra.mxu0 %v1291
        %1619 = vmatprep.subr.bf16.mxu0 0
        %1620 = vmatpush1.bf16.msra.mxu0 0
        %1621 = vmatprep.subr.bf16.mxu0 0
        %1622 = vmatpush1.bf16.msra.mxu0 0
        %1623 = vmatprep.subr.bf16.mxu0 0
        %1624 = vmatpush1.bf16.msra.mxu0 0
        %1625 = vmatprep.subr.bf16.mxu0 0
        %1626 = vmatpush1.bf16.msra.mxu0 0
        %1627 = vmatprep.subr.bf16.mxu0 0
        %1628 = vmatpush1.bf16.msra.mxu0 0
        %1629 = vmatprep.subr.bf16.mxu0 0
        %1630 = vmatpush1.bf16.msra.mxu0 0
        %1631 = vmatprep.subr.bf16.mxu0 0
        %1632 = vmatpush1.bf16.msra.mxu0 0
        %1633 = vmatprep.subr.bf16.mxu0 0
        %1634 = vmatpush1.bf16.msra.mxu0 0
        %1635 = vmatprep.subr.bf16.mxu0 0
        %1636 = vmatpush1.bf16.msra.mxu0 0
        %1637 = vmatprep.subr.bf16.mxu0 0
        %1638 = vmatpush1.bf16.msra.mxu0 0
        %1639 = vmatprep.subr.bf16.mxu0 0
        %1640 = vmatpush1.bf16.msra.mxu0 0
        %1641 = vmatprep.subr.bf16.mxu0 0
        %1642 = vmatpush1.bf16.msra.mxu0 0
        %1643 = vmatprep.subr.bf16.mxu0 0
        %1644 = vmatpush1.bf16.msra.mxu0 0
        %1645 = vmatprep.subr.bf16.mxu0 0
        %1646 = vmatpush1.bf16.msra.mxu0 0
        %1647 = vmatprep.mubr.bf16.mxu0 0
        %1648 = vmatmul.mubr.bf16.gmra.mrb[0].mxu0 %v1326
        %v1649 = vpop.f32.mrb[0].mxu0
        %v1650 = vadd.f32 %v1144, %v1649
        %v1651 = vpop.f32.mrb[0].mxu0
        %v1652 = vadd.f32 %v1148, %v1651
        %v1653 = vpop.f32.mrb[0].mxu0
        %v1654 = vpop.f32.mrb[0].mxu0
        %1655 = vdwg.mxu0
        %v1656 = vmax.f32 %v1363, 0.0
        %v1657 = vmax.f32 %v1365, 0.0
        %v1658 = vmax.f32 %v1404, 0.0
        %v1659 = vmax.f32 %v1406, 0.0
        %v1660 = vmax.f32 %v1445, 0.0
        %v1661 = vmax.f32 %v1447, 0.0
        %v1662 = vmax.f32 %v1486, 0.0
        %v1663 = vmax.f32 %v1488, 0.0
        %v1664 = vmax.f32 %v1527, 0.0
        %v1665 = vmax.f32 %v1529, 0.0
        %v1666 = vmax.f32 %v1568, 0.0
        %v1667 = vmax.f32 %v1570, 0.0
        %v1668 = vmax.f32 %v1609, 0.0
        %v1669 = vmax.f32 %v1611, 0.0
        %v1670 = vmax.f32 %v1650, 0.0
        %v1671 = vmax.f32 %v1652, 0.0
        %v1672 = vpack.c.bf16 %v1656, %v1656
        %v1673 = vpack.c.bf16 %v1657, %v1657
        %v1674 = vpack.c.bf16 %v1658, %v1658
        %v1675 = vpack.c.bf16 %v1659, %v1659
        %v1676 = vpack.c.bf16 %v1660, %v1660
        %v1677 = vpack.c.bf16 %v1661, %v1661
        %v1678 = vpack.c.bf16 %v1662, %v1662
        %v1679 = vpack.c.bf16 %v1663, %v1663
        %v1680 = vpack.c.bf16 %v1664, %v1664
        %v1681 = vpack.c.bf16 %v1665, %v1665
        %v1682 = vpack.c.bf16 %v1666, %v1666
        %v1683 = vpack.c.bf16 %v1667, %v1667
        %v1684 = vpack.c.bf16 %v1668, %v1668
        %v1685 = vpack.c.bf16 %v1669, %v1669
        %v1686 = vpack.c.bf16 %v1670, %v1670
        %v1687 = vpack.c.bf16 %v1671, %v1671
        %v1688 = vld [vmem:[%s7] sm:$0xf]
        %v1689 = vld [vmem:[%s7 + $0x4] sm:$0xf]
        %v1690 = vld [vmem:[%s7 + $0x8] sm:$0xf]
        %v1691 = vld [vmem:[%s7 + $0xc] sm:$0xf]
        %v1692 = vld [vmem:[%s7 + $0x10] sm:$0xf]
        %v1693 = vld [vmem:[%s7 + $0x14] sm:$0xf]
        %v1694 = vld [vmem:[%s7 + $0x18] sm:$0xf]
        %v1695 = vld [vmem:[%s7 + $0x1c] sm:$0xf]
        %v1696 = vld [vmem:[%s7 + $0x20] sm:$0xf]
        %v1697 = vld [vmem:[%s7 + $0x24] sm:$0xf]
        %v1698 = vld [vmem:[%s7 + $0x28] sm:$0xf]
        %v1699 = vld [vmem:[%s7 + $0x2c] sm:$0xf]
        %v1700 = vld [vmem:[%s7 + $0x30] sm:$0xf]
        %v1701 = vld [vmem:[%s7 + $0x34] sm:$0xf]
        %v1702 = vld [vmem:[%s7 + $0x38] sm:$0xf]
        %v1703 = vld [vmem:[%s7 + $0x3c] sm:$0xf]
        %v1704 = vld [vmem:[%s7 + $0x40] sm:$0xf]
        %v1705 = vld [vmem:[%s7 + $0x44] sm:$0xf]
        %v1706 = vld [vmem:[%s7 + $0x48] sm:$0xf]
        %v1707 = vld [vmem:[%s7 + $0x4c] sm:$0xf]
        %v1708 = vld [vmem:[%s7 + $0x50] sm:$0xf]
        %v1709 = vld [vmem:[%s7 + $0x54] sm:$0xf]
        %v1710 = vld [vmem:[%s7 + $0x58] sm:$0xf]
        %v1711 = vld [vmem:[%s7 + $0x5c] sm:$0xf]
        %v1712 = vld [vmem:[%s7 + $0x60] sm:$0xf]
        %v1713 = vld [vmem:[%s7 + $0x64] sm:$0xf]
        %v1714 = vld [vmem:[%s7 + $0x68] sm:$0xf]
        %v1715 = vld [vmem:[%s7 + $0x6c] sm:$0xf]
        %v1716 = vld [vmem:[%s7 + $0x70] sm:$0xf]
        %v1717 = vld [vmem:[%s7 + $0x74] sm:$0xf]
        %v1718 = vld [vmem:[%s7 + $0x78] sm:$0xf]
        %v1719 = vld [vmem:[%s7 + $0x7c] sm:$0xf]
        %v1720 = vld [vmem:[%s7 + $0x80] sm:$0xf]
        %v1721 = vld [vmem:[%s7 + $0x84] sm:$0xf]
        %v1722 = vld [vmem:[%s7 + $0x88] sm:$0xf]
        %v1723 = vld [vmem:[%s7 + $0x8c] sm:$0xf]
        %v1724 = vld [vmem:[%s7 + $0x90] sm:$0xf]
        %v1725 = vld [vmem:[%s7 + $0x94] sm:$0xf]
        %v1726 = vld [vmem:[%s7 + $0x98] sm:$0xf]
        %v1727 = vld [vmem:[%s7 + $0x9c] sm:$0xf]
        %v1728 = vld [vmem:[%s7 + $0xa0] sm:$0xf]
        %v1729 = vld [vmem:[%s7 + $0xa4] sm:$0xf]
        %v1730 = vld [vmem:[%s7 + $0xa8] sm:$0xf]
        %v1731 = vld [vmem:[%s7 + $0xac] sm:$0xf]
        %v1732 = vld [vmem:[%s7 + $0xb0] sm:$0xf]
        %v1733 = vld [vmem:[%s7 + $0xb4] sm:$0xf]
        %v1734 = vld [vmem:[%s7 + $0xb8] sm:$0xf]
        %v1735 = vld [vmem:[%s7 + $0xbc] sm:$0xf]
        %v1736 = vld [vmem:[%s7 + $0xc0] sm:$0xf]
        %v1737 = vld [vmem:[%s7 + $0xc4] sm:$0xf]
        %v1738 = vld [vmem:[%s7 + $0xc8] sm:$0xf]
        %v1739 = vld [vmem:[%s7 + $0xcc] sm:$0xf]
        %v1740 = vld [vmem:[%s7 + $0xd0] sm:$0xf]
        %v1741 = vld [vmem:[%s7 + $0xd4] sm:$0xf]
        %v1742 = vld [vmem:[%s7 + $0xd8] sm:$0xf]
        %v1743 = vld [vmem:[%s7 + $0xdc] sm:$0xf]
        %v1744 = vld [vmem:[%s7 + $0xe0] sm:$0xf]
        %v1745 = vld [vmem:[%s7 + $0xe4] sm:$0xf]
        %v1746 = vld [vmem:[%s7 + $0xe8] sm:$0xf]
        %v1747 = vld [vmem:[%s7 + $0xec] sm:$0xf]
        %v1748 = vld [vmem:[%s7 + $0xf0] sm:$0xf]
        %v1749 = vld [vmem:[%s7 + $0xf4] sm:$0xf]
        %v1750 = vld [vmem:[%s7 + $0xf8] sm:$0xf]
        %v1751 = vld [vmem:[%s7 + $0xfc] sm:$0xf]
        %v1752 = vld [vmem:[%s7 + $0x100] sm:$0xf]
        %v1753 = vld [vmem:[%s7 + $0x104] sm:$0xf]
        %v1754 = vld [vmem:[%s7 + $0x108] sm:$0xf]
        %v1755 = vld [vmem:[%s7 + $0x10c] sm:$0xf]
        %v1756 = vld [vmem:[%s7 + $0x110] sm:$0xf]
        %v1757 = vld [vmem:[%s7 + $0x114] sm:$0xf]
        %v1758 = vld [vmem:[%s7 + $0x118] sm:$0xf]
        %v1759 = vld [vmem:[%s7 + $0x11c] sm:$0xf]
        %v1760 = vld [vmem:[%s7 + $0x120] sm:$0xf]
        %v1761 = vld [vmem:[%s7 + $0x124] sm:$0xf]
        %v1762 = vld [vmem:[%s7 + $0x128] sm:$0xf]
        %v1763 = vld [vmem:[%s7 + $0x12c] sm:$0xf]
        %v1764 = vld [vmem:[%s7 + $0x130] sm:$0xf]
        %v1765 = vld [vmem:[%s7 + $0x134] sm:$0xf]
        %v1766 = vld [vmem:[%s7 + $0x138] sm:$0xf]
        %v1767 = vld [vmem:[%s7 + $0x13c] sm:$0xf]
        %v1768 = vld [vmem:[%s7 + $0x140] sm:$0xf]
        %v1769 = vld [vmem:[%s7 + $0x144] sm:$0xf]
        %v1770 = vld [vmem:[%s7 + $0x148] sm:$0xf]
        %v1771 = vld [vmem:[%s7 + $0x14c] sm:$0xf]
        %v1772 = vld [vmem:[%s7 + $0x150] sm:$0xf]
        %v1773 = vld [vmem:[%s7 + $0x154] sm:$0xf]
        %v1774 = vld [vmem:[%s7 + $0x158] sm:$0xf]
        %v1775 = vld [vmem:[%s7 + $0x15c] sm:$0xf]
        %v1776 = vld [vmem:[%s7 + $0x160] sm:$0xf]
        %v1777 = vld [vmem:[%s7 + $0x164] sm:$0xf]
        %v1778 = vld [vmem:[%s7 + $0x168] sm:$0xf]
        %v1779 = vld [vmem:[%s7 + $0x16c] sm:$0xf]
        %v1780 = vld [vmem:[%s7 + $0x170] sm:$0xf]
        %v1781 = vld [vmem:[%s7 + $0x174] sm:$0xf]
        %v1782 = vld [vmem:[%s7 + $0x178] sm:$0xf]
        %v1783 = vld [vmem:[%s7 + $0x17c] sm:$0xf]
        %v1784 = vld [vmem:[%s7 + $0x180] sm:$0xf]
        %v1785 = vld [vmem:[%s7 + $0x184] sm:$0xf]
        %v1786 = vld [vmem:[%s7 + $0x188] sm:$0xf]
        %v1787 = vld [vmem:[%s7 + $0x18c] sm:$0xf]
        %v1788 = vld [vmem:[%s7 + $0x190] sm:$0xf]
        %v1789 = vld [vmem:[%s7 + $0x194] sm:$0xf]
        %v1790 = vld [vmem:[%s7 + $0x198] sm:$0xf]
        %v1791 = vld [vmem:[%s7 + $0x19c] sm:$0xf]
        %v1792 = vld [vmem:[%s7 + $0x1a0] sm:$0xf]
        %v1793 = vld [vmem:[%s7 + $0x1a4] sm:$0xf]
        %v1794 = vld [vmem:[%s7 + $0x1a8] sm:$0xf]
        %v1795 = vld [vmem:[%s7 + $0x1ac] sm:$0xf]
        %v1796 = vld [vmem:[%s7 + $0x1b0] sm:$0xf]
        %v1797 = vld [vmem:[%s7 + $0x1b4] sm:$0xf]
        %v1798 = vld [vmem:[%s7 + $0x1b8] sm:$0xf]
        %v1799 = vld [vmem:[%s7 + $0x1bc] sm:$0xf]
        %v1800 = vld [vmem:[%s7 + $0x1c0] sm:$0xf]
        %v1801 = vld [vmem:[%s7 + $0x1c4] sm:$0xf]
        %v1802 = vld [vmem:[%s7 + $0x1c8] sm:$0xf]
        %v1803 = vld [vmem:[%s7 + $0x1cc] sm:$0xf]
        %v1804 = vld [vmem:[%s7 + $0x1d0] sm:$0xf]
        %v1805 = vld [vmem:[%s7 + $0x1d4] sm:$0xf]
        %v1806 = vld [vmem:[%s7 + $0x1d8] sm:$0xf]
        %v1807 = vld [vmem:[%s7 + $0x1dc] sm:$0xf]
        %v1808 = vld [vmem:[%s7 + $0x1e0] sm:$0xf]
        %v1809 = vld [vmem:[%s7 + $0x1e4] sm:$0xf]
        %v1810 = vld [vmem:[%s7 + $0x1e8] sm:$0xf]
        %v1811 = vld [vmem:[%s7 + $0x1ec] sm:$0xf]
        %v1812 = vld [vmem:[%s7 + $0x1f0] sm:$0xf]
        %v1813 = vld [vmem:[%s7 + $0x1f4] sm:$0xf]
        %v1814 = vld [vmem:[%s7 + $0x1f8] sm:$0xf]
        %v1815 = vld [vmem:[%s7 + $0x1fc] sm:$0xf]
        %v1816 = vld [vmem:[%s7 + $0x200] sm:$0xf]
        %v1817 = vld [vmem:[%s7 + $0x204] sm:$0xf]
        %v1818 = vld [vmem:[%s7 + $0x208] sm:$0xf]
        %v1819 = vld [vmem:[%s7 + $0x20c] sm:$0xf]
        %v1820 = vld [vmem:[%s7 + $0x210] sm:$0xf]
        %v1821 = vld [vmem:[%s7 + $0x214] sm:$0xf]
        %v1822 = vld [vmem:[%s7 + $0x218] sm:$0xf]
        %v1823 = vld [vmem:[%s7 + $0x21c] sm:$0xf]
        %v1824 = vld [vmem:[%s7 + $0x220] sm:$0xf]
        %v1825 = vld [vmem:[%s7 + $0x224] sm:$0xf]
        %v1826 = vld [vmem:[%s7 + $0x228] sm:$0xf]
        %v1827 = vld [vmem:[%s7 + $0x22c] sm:$0xf]
        %v1828 = vld [vmem:[%s7 + $0x230] sm:$0xf]
        %v1829 = vld [vmem:[%s7 + $0x234] sm:$0xf]
        %v1830 = vld [vmem:[%s7 + $0x238] sm:$0xf]
        %v1831 = vld [vmem:[%s7 + $0x23c] sm:$0xf]
        %v1832 = vld [vmem:[%s7 + $0x240] sm:$0xf]
        %v1833 = vld [vmem:[%s7 + $0x244] sm:$0xf]
        %v1834 = vld [vmem:[%s7 + $0x248] sm:$0xf]
        %v1835 = vld [vmem:[%s7 + $0x24c] sm:$0xf]
        %v1836 = vld [vmem:[%s7 + $0x250] sm:$0xf]
        %v1837 = vld [vmem:[%s7 + $0x254] sm:$0xf]
        %v1838 = vld [vmem:[%s7 + $0x258] sm:$0xf]
        %v1839 = vld [vmem:[%s7 + $0x25c] sm:$0xf]
        %v1840 = vld [vmem:[%s7 + $0x260] sm:$0xf]
        %v1841 = vld [vmem:[%s7 + $0x264] sm:$0xf]
        %v1842 = vld [vmem:[%s7 + $0x268] sm:$0xf]
        %v1843 = vld [vmem:[%s7 + $0x26c] sm:$0xf]
        %v1844 = vld [vmem:[%s7 + $0x270] sm:$0xf]
        %v1845 = vld [vmem:[%s7 + $0x274] sm:$0xf]
        %v1846 = vld [vmem:[%s7 + $0x278] sm:$0xf]
        %v1847 = vld [vmem:[%s7 + $0x27c] sm:$0xf]
        %v1848 = vld [vmem:[%s7 + $0x280] sm:$0xf]
        %v1849 = vld [vmem:[%s7 + $0x284] sm:$0xf]
        %v1850 = vld [vmem:[%s7 + $0x288] sm:$0xf]
        %v1851 = vld [vmem:[%s7 + $0x28c] sm:$0xf]
        %v1852 = vld [vmem:[%s7 + $0x290] sm:$0xf]
        %v1853 = vld [vmem:[%s7 + $0x294] sm:$0xf]
        %v1854 = vld [vmem:[%s7 + $0x298] sm:$0xf]
        %v1855 = vld [vmem:[%s7 + $0x29c] sm:$0xf]
        %v1856 = vld [vmem:[%s7 + $0x2a0] sm:$0xf]
        %v1857 = vld [vmem:[%s7 + $0x2a4] sm:$0xf]
        %v1858 = vld [vmem:[%s7 + $0x2a8] sm:$0xf]
        %v1859 = vld [vmem:[%s7 + $0x2ac] sm:$0xf]
        %v1860 = vld [vmem:[%s7 + $0x2b0] sm:$0xf]
        %v1861 = vld [vmem:[%s7 + $0x2b4] sm:$0xf]
        %v1862 = vld [vmem:[%s7 + $0x2b8] sm:$0xf]
        %v1863 = vld [vmem:[%s7 + $0x2bc] sm:$0xf]
        %v1864 = vld [vmem:[%s7 + $0x2c0] sm:$0xf]
        %v1865 = vld [vmem:[%s7 + $0x2c4] sm:$0xf]
        %v1866 = vld [vmem:[%s7 + $0x2c8] sm:$0xf]
        %v1867 = vld [vmem:[%s7 + $0x2cc] sm:$0xf]
        %v1868 = vld [vmem:[%s7 + $0x2d0] sm:$0xf]
        %v1869 = vld [vmem:[%s7 + $0x2d4] sm:$0xf]
        %v1870 = vld [vmem:[%s7 + $0x2d8] sm:$0xf]
        %v1871 = vld [vmem:[%s7 + $0x2dc] sm:$0xf]
        %v1872 = vld [vmem:[%s7 + $0x2e0] sm:$0xf]
        %v1873 = vld [vmem:[%s7 + $0x2e4] sm:$0xf]
        %v1874 = vld [vmem:[%s7 + $0x2e8] sm:$0xf]
        %v1875 = vld [vmem:[%s7 + $0x2ec] sm:$0xf]
        %v1876 = vld [vmem:[%s7 + $0x2f0] sm:$0xf]
        %v1877 = vld [vmem:[%s7 + $0x2f4] sm:$0xf]
        %v1878 = vld [vmem:[%s7 + $0x2f8] sm:$0xf]
        %v1879 = vld [vmem:[%s7 + $0x2fc] sm:$0xf]
        %v1880 = vld [vmem:[%s7 + $0x300] sm:$0xf]
        %v1881 = vld [vmem:[%s7 + $0x304] sm:$0xf]
        %v1882 = vld [vmem:[%s7 + $0x308] sm:$0xf]
        %v1883 = vld [vmem:[%s7 + $0x30c] sm:$0xf]
        %v1884 = vld [vmem:[%s7 + $0x310] sm:$0xf]
        %v1885 = vld [vmem:[%s7 + $0x314] sm:$0xf]
        %v1886 = vld [vmem:[%s7 + $0x318] sm:$0xf]
        %v1887 = vld [vmem:[%s7 + $0x31c] sm:$0xf]
        %v1888 = vld [vmem:[%s7 + $0x320] sm:$0xf]
        %v1889 = vld [vmem:[%s7 + $0x324] sm:$0xf]
        %v1890 = vld [vmem:[%s7 + $0x328] sm:$0xf]
        %v1891 = vld [vmem:[%s7 + $0x32c] sm:$0xf]
        %v1892 = vld [vmem:[%s7 + $0x330] sm:$0xf]
        %v1893 = vld [vmem:[%s7 + $0x334] sm:$0xf]
        %v1894 = vld [vmem:[%s7 + $0x338] sm:$0xf]
        %v1895 = vld [vmem:[%s7 + $0x33c] sm:$0xf]
        %v1896 = vld [vmem:[%s7 + $0x340] sm:$0xf]
        %v1897 = vld [vmem:[%s7 + $0x344] sm:$0xf]
        %v1898 = vld [vmem:[%s7 + $0x348] sm:$0xf]
        %v1899 = vld [vmem:[%s7 + $0x34c] sm:$0xf]
        %v1900 = vld [vmem:[%s7 + $0x350] sm:$0xf]
        %v1901 = vld [vmem:[%s7 + $0x354] sm:$0xf]
        %v1902 = vld [vmem:[%s7 + $0x358] sm:$0xf]
        %v1903 = vld [vmem:[%s7 + $0x35c] sm:$0xf]
        %v1904 = vld [vmem:[%s7 + $0x360] sm:$0xf]
        %v1905 = vld [vmem:[%s7 + $0x364] sm:$0xf]
        %v1906 = vld [vmem:[%s7 + $0x368] sm:$0xf]
        %v1907 = vld [vmem:[%s7 + $0x36c] sm:$0xf]
        %v1908 = vld [vmem:[%s7 + $0x370] sm:$0xf]
        %v1909 = vld [vmem:[%s7 + $0x374] sm:$0xf]
        %v1910 = vld [vmem:[%s7 + $0x378] sm:$0xf]
        %v1911 = vld [vmem:[%s7 + $0x37c] sm:$0xf]
        %v1912 = vld [vmem:[%s7 + $0x380] sm:$0xf]
        %v1913 = vld [vmem:[%s7 + $0x384] sm:$0xf]
        %v1914 = vld [vmem:[%s7 + $0x388] sm:$0xf]
        %v1915 = vld [vmem:[%s7 + $0x38c] sm:$0xf]
        %v1916 = vld [vmem:[%s7 + $0x390] sm:$0xf]
        %v1917 = vld [vmem:[%s7 + $0x394] sm:$0xf]
        %v1918 = vld [vmem:[%s7 + $0x398] sm:$0xf]
        %v1919 = vld [vmem:[%s7 + $0x39c] sm:$0xf]
        %v1920 = vld [vmem:[%s7 + $0x3a0] sm:$0xf]
        %v1921 = vld [vmem:[%s7 + $0x3a4] sm:$0xf]
        %v1922 = vld [vmem:[%s7 + $0x3a8] sm:$0xf]
        %v1923 = vld [vmem:[%s7 + $0x3ac] sm:$0xf]
        %v1924 = vld [vmem:[%s7 + $0x3b0] sm:$0xf]
        %v1925 = vld [vmem:[%s7 + $0x3b4] sm:$0xf]
        %v1926 = vld [vmem:[%s7 + $0x3b8] sm:$0xf]
        %v1927 = vld [vmem:[%s7 + $0x3bc] sm:$0xf]
        %v1928 = vld [vmem:[%s7 + $0x3c0] sm:$0xf]
        %v1929 = vld [vmem:[%s7 + $0x3c4] sm:$0xf]
        %v1930 = vld [vmem:[%s7 + $0x3c8] sm:$0xf]
        %v1931 = vld [vmem:[%s7 + $0x3cc] sm:$0xf]
        %v1932 = vld [vmem:[%s7 + $0x3d0] sm:$0xf]
        %v1933 = vld [vmem:[%s7 + $0x3d4] sm:$0xf]
        %v1934 = vld [vmem:[%s7 + $0x3d8] sm:$0xf]
        %v1935 = vld [vmem:[%s7 + $0x3dc] sm:$0xf]
        %v1936 = vld [vmem:[%s7 + $0x3e0] sm:$0xf]
        %v1937 = vld [vmem:[%s7 + $0x3e4] sm:$0xf]
        %v1938 = vld [vmem:[%s7 + $0x3e8] sm:$0xf]
        %v1939 = vld [vmem:[%s7 + $0x3ec] sm:$0xf]
        %v1940 = vld [vmem:[%s7 + $0x3f0] sm:$0xf]
        %v1941 = vld [vmem:[%s7 + $0x3f4] sm:$0xf]
        %v1942 = vld [vmem:[%s7 + $0x3f8] sm:$0xf]
        %v1943 = vld [vmem:[%s7 + $0x3fc] sm:$0xf]
        %v1944 = vlaneseq
        %v1945 = vshrl.u32 %v1944, 7
        %v1946 = vsub.s32 3, %v1945
        %v1947 = vrot.slane %v363, %v1946
        %v2204 = vunpack.c.l.b16 %v1688
        %v2205 = vunpack.c.l.b16 %v1689
        %v2206 = vunpack.c.l.b16 %v1690
        %v2207 = vunpack.c.l.b16 %v1691
        %v2208 = vunpack.c.l.b16 %v1692
        %v2209 = vunpack.c.l.b16 %v1693
        %v2210 = vunpack.c.l.b16 %v1694
        %v2211 = vunpack.c.l.b16 %v1695
        %v2212 = vunpack.c.l.b16 %v1696
        %v2213 = vunpack.c.l.b16 %v1697
        %v2214 = vunpack.c.l.b16 %v1698
        %v2215 = vunpack.c.l.b16 %v1699
        %v2216 = vunpack.c.l.b16 %v1700
        %v2217 = vunpack.c.l.b16 %v1701
        %v2218 = vunpack.c.l.b16 %v1702
        %v2219 = vunpack.c.l.b16 %v1703
        %v2220 = vunpack.c.l.b16 %v1704
        %v2221 = vunpack.c.l.b16 %v1705
        %v2222 = vunpack.c.l.b16 %v1706
        %v2223 = vunpack.c.l.b16 %v1707
        %v2224 = vunpack.c.l.b16 %v1708
        %v2225 = vunpack.c.l.b16 %v1709
        %v2226 = vunpack.c.l.b16 %v1710
        %v2227 = vunpack.c.l.b16 %v1711
        %v2228 = vunpack.c.l.b16 %v1712
        %v2229 = vunpack.c.l.b16 %v1713
        %v2230 = vunpack.c.l.b16 %v1714
        %v2231 = vunpack.c.l.b16 %v1715
        %v2232 = vunpack.c.l.b16 %v1716
        %v2233 = vunpack.c.l.b16 %v1717
        %v2234 = vunpack.c.l.b16 %v1718
        %v2235 = vunpack.c.l.b16 %v1719
        %v2236 = vunpack.c.l.b16 %v1720
        %v2237 = vunpack.c.l.b16 %v1721
        %v2238 = vunpack.c.l.b16 %v1722
        %v2239 = vunpack.c.l.b16 %v1723
        %v2240 = vunpack.c.l.b16 %v1724
        %v2241 = vunpack.c.l.b16 %v1725
        %v2242 = vunpack.c.l.b16 %v1726
        %v2243 = vunpack.c.l.b16 %v1727
        %v2244 = vunpack.c.l.b16 %v1728
        %v2245 = vunpack.c.l.b16 %v1729
        %v2246 = vunpack.c.l.b16 %v1730
        %v2247 = vunpack.c.l.b16 %v1731
        %v2248 = vunpack.c.l.b16 %v1732
        %v2249 = vunpack.c.l.b16 %v1733
        %v2250 = vunpack.c.l.b16 %v1734
        %v2251 = vunpack.c.l.b16 %v1735
        %v2252 = vunpack.c.l.b16 %v1736
        %v2253 = vunpack.c.l.b16 %v1737
        %v2254 = vunpack.c.l.b16 %v1738
        %v2255 = vunpack.c.l.b16 %v1739
        %v2256 = vunpack.c.l.b16 %v1740
        %v2257 = vunpack.c.l.b16 %v1741
        %v2258 = vunpack.c.l.b16 %v1742
        %v2259 = vunpack.c.l.b16 %v1743
        %v2260 = vunpack.c.l.b16 %v1744
        %v2261 = vunpack.c.l.b16 %v1745
        %v2262 = vunpack.c.l.b16 %v1746
        %v2263 = vunpack.c.l.b16 %v1747
        %v2264 = vunpack.c.l.b16 %v1748
        %v2265 = vunpack.c.l.b16 %v1749
        %v2266 = vunpack.c.l.b16 %v1750
        %v2267 = vunpack.c.l.b16 %v1751
        %v2268 = vunpack.c.l.b16 %v1752
        %v2269 = vunpack.c.l.b16 %v1753
        %v2270 = vunpack.c.l.b16 %v1754
        %v2271 = vunpack.c.l.b16 %v1755
        %v2272 = vunpack.c.l.b16 %v1756
        %v2273 = vunpack.c.l.b16 %v1757
        %v2274 = vunpack.c.l.b16 %v1758
        %v2275 = vunpack.c.l.b16 %v1759
        %v2276 = vunpack.c.l.b16 %v1760
        %v2277 = vunpack.c.l.b16 %v1761
        %v2278 = vunpack.c.l.b16 %v1762
        %v2279 = vunpack.c.l.b16 %v1763
        %v2280 = vunpack.c.l.b16 %v1764
        %v2281 = vunpack.c.l.b16 %v1765
        %v2282 = vunpack.c.l.b16 %v1766
        %v2283 = vunpack.c.l.b16 %v1767
        %v2284 = vunpack.c.l.b16 %v1768
        %v2285 = vunpack.c.l.b16 %v1769
        %v2286 = vunpack.c.l.b16 %v1770
        %v2287 = vunpack.c.l.b16 %v1771
        %v2288 = vunpack.c.l.b16 %v1772
        %v2289 = vunpack.c.l.b16 %v1773
        %v2290 = vunpack.c.l.b16 %v1774
        %v2291 = vunpack.c.l.b16 %v1775
        %v2292 = vunpack.c.l.b16 %v1776
        %v2293 = vunpack.c.l.b16 %v1777
        %v2294 = vunpack.c.l.b16 %v1778
        %v2295 = vunpack.c.l.b16 %v1779
        %v2296 = vunpack.c.l.b16 %v1780
        %v2297 = vunpack.c.l.b16 %v1781
        %v2298 = vunpack.c.l.b16 %v1782
        %v2299 = vunpack.c.l.b16 %v1783
        %v2300 = vunpack.c.l.b16 %v1784
        %v2301 = vunpack.c.l.b16 %v1785
        %v2302 = vunpack.c.l.b16 %v1786
        %v2303 = vunpack.c.l.b16 %v1787
        %v2304 = vunpack.c.l.b16 %v1788
        %v2305 = vunpack.c.l.b16 %v1789
        %v2306 = vunpack.c.l.b16 %v1790
        %v2307 = vunpack.c.l.b16 %v1791
        %v2308 = vunpack.c.l.b16 %v1792
        %v2309 = vunpack.c.l.b16 %v1793
        %v2310 = vunpack.c.l.b16 %v1794
        %v2311 = vunpack.c.l.b16 %v1795
        %v2312 = vunpack.c.l.b16 %v1796
        %v2313 = vunpack.c.l.b16 %v1797
        %v2314 = vunpack.c.l.b16 %v1798
        %v2315 = vunpack.c.l.b16 %v1799
        %v2316 = vunpack.c.l.b16 %v1800
        %v2317 = vunpack.c.l.b16 %v1801
        %v2318 = vunpack.c.l.b16 %v1802
        %v2319 = vunpack.c.l.b16 %v1803
        %v2320 = vunpack.c.l.b16 %v1804
        %v2321 = vunpack.c.l.b16 %v1805
        %v2322 = vunpack.c.l.b16 %v1806
        %v2323 = vunpack.c.l.b16 %v1807
        %v2324 = vunpack.c.l.b16 %v1808
        %v2325 = vunpack.c.l.b16 %v1809
        %v2326 = vunpack.c.l.b16 %v1810
        %v2327 = vunpack.c.l.b16 %v1811
        %v2328 = vunpack.c.l.b16 %v1812
        %v2329 = vunpack.c.l.b16 %v1813
        %v2330 = vunpack.c.l.b16 %v1814
        %v2331 = vunpack.c.l.b16 %v1815
        %v2332 = vunpack.c.l.b16 %v1816
        %v2333 = vunpack.c.l.b16 %v1817
        %v2334 = vunpack.c.l.b16 %v1818
        %v2335 = vunpack.c.l.b16 %v1819
        %v2336 = vunpack.c.l.b16 %v1820
        %v2337 = vunpack.c.l.b16 %v1821
        %v2338 = vunpack.c.l.b16 %v1822
        %v2339 = vunpack.c.l.b16 %v1823
        %v2340 = vunpack.c.l.b16 %v1824
        %v2341 = vunpack.c.l.b16 %v1825
        %v2342 = vunpack.c.l.b16 %v1826
        %v2343 = vunpack.c.l.b16 %v1827
        %v2344 = vunpack.c.l.b16 %v1828
        %v2345 = vunpack.c.l.b16 %v1829
        %v2346 = vunpack.c.l.b16 %v1830
        %v2347 = vunpack.c.l.b16 %v1831
        %v2348 = vunpack.c.l.b16 %v1832
        %v2349 = vunpack.c.l.b16 %v1833
        %v2350 = vunpack.c.l.b16 %v1834
        %v2351 = vunpack.c.l.b16 %v1835
        %v2352 = vunpack.c.l.b16 %v1836
        %v2353 = vunpack.c.l.b16 %v1837
        %v2354 = vunpack.c.l.b16 %v1838
        %v2355 = vunpack.c.l.b16 %v1839
        %v2356 = vunpack.c.l.b16 %v1840
        %v2357 = vunpack.c.l.b16 %v1841
        %v2358 = vunpack.c.l.b16 %v1842
        %v2359 = vunpack.c.l.b16 %v1843
        %v2360 = vunpack.c.l.b16 %v1844
        %v2361 = vunpack.c.l.b16 %v1845
        %v2362 = vunpack.c.l.b16 %v1846
        %v2363 = vunpack.c.l.b16 %v1847
        %v2364 = vunpack.c.l.b16 %v1848
        %v2365 = vunpack.c.l.b16 %v1849
        %v2366 = vunpack.c.l.b16 %v1850
        %v2367 = vunpack.c.l.b16 %v1851
        %v2368 = vunpack.c.l.b16 %v1852
        %v2369 = vunpack.c.l.b16 %v1853
        %v2370 = vunpack.c.l.b16 %v1854
        %v2371 = vunpack.c.l.b16 %v1855
        %v2372 = vunpack.c.l.b16 %v1856
        %v2373 = vunpack.c.l.b16 %v1857
        %v2374 = vunpack.c.l.b16 %v1858
        %v2375 = vunpack.c.l.b16 %v1859
        %v2376 = vunpack.c.l.b16 %v1860
        %v2377 = vunpack.c.l.b16 %v1861
        %v2378 = vunpack.c.l.b16 %v1862
        %v2379 = vunpack.c.l.b16 %v1863
        %v2380 = vunpack.c.l.b16 %v1864
        %v2381 = vunpack.c.l.b16 %v1865
        %v2382 = vunpack.c.l.b16 %v1866
        %v2383 = vunpack.c.l.b16 %v1867
        %v2384 = vunpack.c.l.b16 %v1868
        %v2385 = vunpack.c.l.b16 %v1869
        %v2386 = vunpack.c.l.b16 %v1870
        %v2387 = vunpack.c.l.b16 %v1871
        %v2388 = vunpack.c.l.b16 %v1872
        %v2389 = vunpack.c.l.b16 %v1873
        %v2390 = vunpack.c.l.b16 %v1874
        %v2391 = vunpack.c.l.b16 %v1875
        %v2392 = vunpack.c.l.b16 %v1876
        %v2393 = vunpack.c.l.b16 %v1877
        %v2394 = vunpack.c.l.b16 %v1878
        %v2395 = vunpack.c.l.b16 %v1879
        %v2396 = vunpack.c.l.b16 %v1880
        %v2397 = vunpack.c.l.b16 %v1881
        %v2398 = vunpack.c.l.b16 %v1882
        %v2399 = vunpack.c.l.b16 %v1883
        %v2400 = vunpack.c.l.b16 %v1884
        %v2401 = vunpack.c.l.b16 %v1885
        %v2402 = vunpack.c.l.b16 %v1886
        %v2403 = vunpack.c.l.b16 %v1887
        %v2404 = vunpack.c.l.b16 %v1888
        %v2405 = vunpack.c.l.b16 %v1889
        %v2406 = vunpack.c.l.b16 %v1890
        %v2407 = vunpack.c.l.b16 %v1891
        %v2408 = vunpack.c.l.b16 %v1892
        %v2409 = vunpack.c.l.b16 %v1893
        %v2410 = vunpack.c.l.b16 %v1894
        %v2411 = vunpack.c.l.b16 %v1895
        %v2412 = vunpack.c.l.b16 %v1896
        %v2413 = vunpack.c.l.b16 %v1897
        %v2414 = vunpack.c.l.b16 %v1898
        %v2415 = vunpack.c.l.b16 %v1899
        %v2416 = vunpack.c.l.b16 %v1900
        %v2417 = vunpack.c.l.b16 %v1901
        %v2418 = vunpack.c.l.b16 %v1902
        %v2419 = vunpack.c.l.b16 %v1903
        %v2420 = vunpack.c.l.b16 %v1904
        %v2421 = vunpack.c.l.b16 %v1905
        %v2422 = vunpack.c.l.b16 %v1906
        %v2423 = vunpack.c.l.b16 %v1907
        %v2424 = vunpack.c.l.b16 %v1908
        %v2425 = vunpack.c.l.b16 %v1909
        %v2426 = vunpack.c.l.b16 %v1910
        %v2427 = vunpack.c.l.b16 %v1911
        %v2428 = vunpack.c.l.b16 %v1912
        %v2429 = vunpack.c.l.b16 %v1913
        %v2430 = vunpack.c.l.b16 %v1914
        %v2431 = vunpack.c.l.b16 %v1915
        %v2432 = vunpack.c.l.b16 %v1916
        %v2433 = vunpack.c.l.b16 %v1917
        %v2434 = vunpack.c.l.b16 %v1918
        %v2435 = vunpack.c.l.b16 %v1919
        %v2436 = vunpack.c.l.b16 %v1920
        %v2437 = vunpack.c.l.b16 %v1921
        %v2438 = vunpack.c.l.b16 %v1922
        %v2439 = vunpack.c.l.b16 %v1923
        %v2440 = vunpack.c.l.b16 %v1924
        %v2441 = vunpack.c.l.b16 %v1925
        %v2442 = vunpack.c.l.b16 %v1926
        %v2443 = vunpack.c.l.b16 %v1927
        %v2444 = vunpack.c.l.b16 %v1928
        %v2445 = vunpack.c.l.b16 %v1929
        %v2446 = vunpack.c.l.b16 %v1930
        %v2447 = vunpack.c.l.b16 %v1931
        %v2448 = vunpack.c.l.b16 %v1932
        %v2449 = vunpack.c.l.b16 %v1933
        %v2450 = vunpack.c.l.b16 %v1934
        %v2451 = vunpack.c.l.b16 %v1935
        %v2452 = vunpack.c.l.b16 %v1936
        %v2453 = vunpack.c.l.b16 %v1937
        %v2454 = vunpack.c.l.b16 %v1938
        %v2455 = vunpack.c.l.b16 %v1939
        %v2456 = vunpack.c.l.b16 %v1940
        %v2457 = vunpack.c.l.b16 %v1941
        %v2458 = vunpack.c.l.b16 %v1942
        %v2459 = vunpack.c.l.b16 %v1943
        %v2460 = vpack.c.b16 %v2205, %v2204
        %v2461 = vpack.c.b16 %v2207, %v2206
        %v2462 = vpack.c.b16 %v2209, %v2208
        %v2463 = vpack.c.b16 %v2211, %v2210
        %v2464 = vpack.c.b16 %v2213, %v2212
        %v2465 = vpack.c.b16 %v2215, %v2214
        %v2466 = vpack.c.b16 %v2217, %v2216
        %v2467 = vpack.c.b16 %v2219, %v2218
        %v2468 = vpack.c.b16 %v2221, %v2220
        %v2469 = vpack.c.b16 %v2223, %v2222
        %v2470 = vpack.c.b16 %v2225, %v2224
        %v2471 = vpack.c.b16 %v2227, %v2226
        %v2472 = vpack.c.b16 %v2229, %v2228
        %v2473 = vpack.c.b16 %v2231, %v2230
        %v2474 = vpack.c.b16 %v2233, %v2232
        %v2475 = vpack.c.b16 %v2235, %v2234
        %v2476 = vpack.c.b16 %v2237, %v2236
        %v2477 = vpack.c.b16 %v2239, %v2238
        %v2478 = vpack.c.b16 %v2241, %v2240
        %v2479 = vpack.c.b16 %v2243, %v2242
        %v2480 = vpack.c.b16 %v2245, %v2244
        %v2481 = vpack.c.b16 %v2247, %v2246
        %v2482 = vpack.c.b16 %v2249, %v2248
        %v2483 = vpack.c.b16 %v2251, %v2250
        %v2484 = vpack.c.b16 %v2253, %v2252
        %v2485 = vpack.c.b16 %v2255, %v2254
        %v2486 = vpack.c.b16 %v2257, %v2256
        %v2487 = vpack.c.b16 %v2259, %v2258
        %v2488 = vpack.c.b16 %v2261, %v2260
        %v2489 = vpack.c.b16 %v2263, %v2262
        %v2490 = vpack.c.b16 %v2265, %v2264
        %v2491 = vpack.c.b16 %v2267, %v2266
        %v2492 = vpack.c.b16 %v2269, %v2268
        %v2493 = vpack.c.b16 %v2271, %v2270
        %v2494 = vpack.c.b16 %v2273, %v2272
        %v2495 = vpack.c.b16 %v2275, %v2274
        %v2496 = vpack.c.b16 %v2277, %v2276
        %v2497 = vpack.c.b16 %v2279, %v2278
        %v2498 = vpack.c.b16 %v2281, %v2280
        %v2499 = vpack.c.b16 %v2283, %v2282
        %v2500 = vpack.c.b16 %v2285, %v2284
        %v2501 = vpack.c.b16 %v2287, %v2286
        %v2502 = vpack.c.b16 %v2289, %v2288
        %v2503 = vpack.c.b16 %v2291, %v2290
        %v2504 = vpack.c.b16 %v2293, %v2292
        %v2505 = vpack.c.b16 %v2295, %v2294
        %v2506 = vpack.c.b16 %v2297, %v2296
        %v2507 = vpack.c.b16 %v2299, %v2298
        %v2508 = vpack.c.b16 %v2301, %v2300
        %v2509 = vpack.c.b16 %v2303, %v2302
        %v2510 = vpack.c.b16 %v2305, %v2304
        %v2511 = vpack.c.b16 %v2307, %v2306
        %v2512 = vpack.c.b16 %v2309, %v2308
        %v2513 = vpack.c.b16 %v2311, %v2310
        %v2514 = vpack.c.b16 %v2313, %v2312
        %v2515 = vpack.c.b16 %v2315, %v2314
        %v2516 = vpack.c.b16 %v2317, %v2316
        %v2517 = vpack.c.b16 %v2319, %v2318
        %v2518 = vpack.c.b16 %v2321, %v2320
        %v2519 = vpack.c.b16 %v2323, %v2322
        %v2520 = vpack.c.b16 %v2325, %v2324
        %v2521 = vpack.c.b16 %v2327, %v2326
        %v2522 = vpack.c.b16 %v2329, %v2328
        %v2523 = vpack.c.b16 %v2331, %v2330
        %v2524 = vpack.c.b16 %v2333, %v2332
        %v2525 = vpack.c.b16 %v2335, %v2334
        %v2526 = vpack.c.b16 %v2337, %v2336
        %v2527 = vpack.c.b16 %v2339, %v2338
        %v2528 = vpack.c.b16 %v2341, %v2340
        %v2529 = vpack.c.b16 %v2343, %v2342
        %v2530 = vpack.c.b16 %v2345, %v2344
        %v2531 = vpack.c.b16 %v2347, %v2346
        %v2532 = vpack.c.b16 %v2349, %v2348
        %v2533 = vpack.c.b16 %v2351, %v2350
        %v2534 = vpack.c.b16 %v2353, %v2352
        %v2535 = vpack.c.b16 %v2355, %v2354
        %v2536 = vpack.c.b16 %v2357, %v2356
        %v2537 = vpack.c.b16 %v2359, %v2358
        %v2538 = vpack.c.b16 %v2361, %v2360
        %v2539 = vpack.c.b16 %v2363, %v2362
        %v2540 = vpack.c.b16 %v2365, %v2364
        %v2541 = vpack.c.b16 %v2367, %v2366
        %v2542 = vpack.c.b16 %v2369, %v2368
        %v2543 = vpack.c.b16 %v2371, %v2370
        %v2544 = vpack.c.b16 %v2373, %v2372
        %v2545 = vpack.c.b16 %v2375, %v2374
        %v2546 = vpack.c.b16 %v2377, %v2376
        %v2547 = vpack.c.b16 %v2379, %v2378
        %v2548 = vpack.c.b16 %v2381, %v2380
        %v2549 = vpack.c.b16 %v2383, %v2382
        %v2550 = vpack.c.b16 %v2385, %v2384
        %v2551 = vpack.c.b16 %v2387, %v2386
        %v2552 = vpack.c.b16 %v2389, %v2388
        %v2553 = vpack.c.b16 %v2391, %v2390
        %v2554 = vpack.c.b16 %v2393, %v2392
        %v2555 = vpack.c.b16 %v2395, %v2394
        %v2556 = vpack.c.b16 %v2397, %v2396
        %v2557 = vpack.c.b16 %v2399, %v2398
        %v2558 = vpack.c.b16 %v2401, %v2400
        %v2559 = vpack.c.b16 %v2403, %v2402
        %v2560 = vpack.c.b16 %v2405, %v2404
        %v2561 = vpack.c.b16 %v2407, %v2406
        %v2562 = vpack.c.b16 %v2409, %v2408
        %v2563 = vpack.c.b16 %v2411, %v2410
        %v2564 = vpack.c.b16 %v2413, %v2412
        %v2565 = vpack.c.b16 %v2415, %v2414
        %v2566 = vpack.c.b16 %v2417, %v2416
        %v2567 = vpack.c.b16 %v2419, %v2418
        %v2568 = vpack.c.b16 %v2421, %v2420
        %v2569 = vpack.c.b16 %v2423, %v2422
        %v2570 = vpack.c.b16 %v2425, %v2424
        %v2571 = vpack.c.b16 %v2427, %v2426
        %v2572 = vpack.c.b16 %v2429, %v2428
        %v2573 = vpack.c.b16 %v2431, %v2430
        %v2574 = vpack.c.b16 %v2433, %v2432
        %v2575 = vpack.c.b16 %v2435, %v2434
        %v2576 = vpack.c.b16 %v2437, %v2436
        %v2577 = vpack.c.b16 %v2439, %v2438
        %v2578 = vpack.c.b16 %v2441, %v2440
        %v2579 = vpack.c.b16 %v2443, %v2442
        %v2580 = vpack.c.b16 %v2445, %v2444
        %v2581 = vpack.c.b16 %v2447, %v2446
        %v2582 = vpack.c.b16 %v2449, %v2448
        %v2583 = vpack.c.b16 %v2451, %v2450
        %v2584 = vpack.c.b16 %v2453, %v2452
        %v2585 = vpack.c.b16 %v2455, %v2454
        %v2586 = vpack.c.b16 %v2457, %v2456
        %v2587 = vpack.c.b16 %v2459, %v2458
        %2716 = vmatprep.subr.bf16.mxu0 0
        %2717 = vmatpush1.bf16.msra.mxu0 %v2460
        %2718 = vmatprep.subr.bf16.mxu0 0
        %2719 = vmatpush1.bf16.msra.mxu0 %v2461
        %2720 = vmatprep.subr.bf16.mxu0 0
        %2721 = vmatpush1.bf16.msra.mxu0 %v2462
        %2722 = vmatprep.subr.bf16.mxu0 0
        %2723 = vmatpush1.bf16.msra.mxu0 %v2463
        %2724 = vmatprep.subr.bf16.mxu0 0
        %2725 = vmatpush1.bf16.msra.mxu0 %v2464
        %2726 = vmatprep.subr.bf16.mxu0 0
        %2727 = vmatpush1.bf16.msra.mxu0 %v2465
        %2728 = vmatprep.subr.bf16.mxu0 0
        %2729 = vmatpush1.bf16.msra.mxu0 %v2466
        %2730 = vmatprep.subr.bf16.mxu0 0
        %2731 = vmatpush1.bf16.msra.mxu0 %v2467
        %2732 = vmatprep.subr.bf16.mxu0 0
        %2733 = vmatpush1.bf16.msra.mxu0 %v2468
        %2734 = vmatprep.subr.bf16.mxu0 0
        %2735 = vmatpush1.bf16.msra.mxu0 %v2469
        %2736 = vmatprep.subr.bf16.mxu0 0
        %2737 = vmatpush1.bf16.msra.mxu0 %v2470
        %2738 = vmatprep.subr.bf16.mxu0 0
        %2739 = vmatpush1.bf16.msra.mxu0 %v2471
        %2740 = vmatprep.subr.bf16.mxu0 0
        %2741 = vmatpush1.bf16.msra.mxu0 %v2472
        %2742 = vmatprep.subr.bf16.mxu0 0
        %2743 = vmatpush1.bf16.msra.mxu0 %v2473
        %2744 = vmatprep.subr.bf16.mxu0 0
        %2745 = vmatpush1.bf16.msra.mxu0 %v2474
        %2746 = vmatprep.subr.bf16.mxu0 0
        %2747 = vmatpush1.bf16.msra.mxu0 %v2475
        %2748 = vmatprep.mubr.bf16.mxu0 %v1673
        %2749 = vmatmul.mubr.bf16.gmra.mrb[0].mxu0 %v1672
        %v2750 = vpop.f32.mrb[0].mxu0
        %v2751 = vadd.f32 %v1947, %v2750
        %v2752 = vpop.f32.mrb[0].mxu0
        %v2753 = vpop.f32.mrb[0].mxu0
        %v2754 = vpop.f32.mrb[0].mxu0
        %2755 = vdwg.mxu0
        %2756 = vmatprep.subr.bf16.mxu0 0
        %2757 = vmatpush1.bf16.msra.mxu0 %v2476
        %2758 = vmatprep.subr.bf16.mxu0 0
        %2759 = vmatpush1.bf16.msra.mxu0 %v2477
        %2760 = vmatprep.subr.bf16.mxu0 0
        %2761 = vmatpush1.bf16.msra.mxu0 %v2478
        %2762 = vmatprep.subr.bf16.mxu0 0
        %2763 = vmatpush1.bf16.msra.mxu0 %v2479
        %2764 = vmatprep.subr.bf16.mxu0 0
        %2765 = vmatpush1.bf16.msra.mxu0 %v2480
        %2766 = vmatprep.subr.bf16.mxu0 0
        %2767 = vmatpush1.bf16.msra.mxu0 %v2481
        %2768 = vmatprep.subr.bf16.mxu0 0
        %2769 = vmatpush1.bf16.msra.mxu0 %v2482
        %2770 = vmatprep.subr.bf16.mxu0 0
        %2771 = vmatpush1.bf16.msra.mxu0 %v2483
        %2772 = vmatprep.subr.bf16.mxu0 0
        %2773 = vmatpush1.bf16.msra.mxu0 %v2484
        %2774 = vmatprep.subr.bf16.mxu0 0
        %2775 = vmatpush1.bf16.msra.mxu0 %v2485
        %2776 = vmatprep.subr.bf16.mxu0 0
        %2777 = vmatpush1.bf16.msra.mxu0 %v2486
        %2778 = vmatprep.subr.bf16.mxu0 0
        %2779 = vmatpush1.bf16.msra.mxu0 %v2487
        %2780 = vmatprep.subr.bf16.mxu0 0
        %2781 = vmatpush1.bf16.msra.mxu0 %v2488
        %2782 = vmatprep.subr.bf16.mxu0 0
        %2783 = vmatpush1.bf16.msra.mxu0 %v2489
        %2784 = vmatprep.subr.bf16.mxu0 0
        %2785 = vmatpush1.bf16.msra.mxu0 %v2490
        %2786 = vmatprep.subr.bf16.mxu0 0
        %2787 = vmatpush1.bf16.msra.mxu0 %v2491
        %2788 = vmatprep.mubr.bf16.mxu0 %v1675
        %2789 = vmatmul.mubr.bf16.gmra.mrb[0].mxu0 %v1674
        %v2790 = vpop.f32.mrb[0].mxu0
        %v2791 = vadd.f32 %v2751, %v2790
        %v2792 = vpop.f32.mrb[0].mxu0
        %v2793 = vpop.f32.mrb[0].mxu0
        %v2794 = vpop.f32.mrb[0].mxu0
        %2795 = vdwg.mxu0
        %2796 = vmatprep.subr.bf16.mxu0 0
        %2797 = vmatpush1.bf16.msra.mxu0 %v2492
        %2798 = vmatprep.subr.bf16.mxu0 0
        %2799 = vmatpush1.bf16.msra.mxu0 %v2493
        %2800 = vmatprep.subr.bf16.mxu0 0
        %2801 = vmatpush1.bf16.msra.mxu0 %v2494
        %2802 = vmatprep.subr.bf16.mxu0 0
        %2803 = vmatpush1.bf16.msra.mxu0 %v2495
        %2804 = vmatprep.subr.bf16.mxu0 0
        %2805 = vmatpush1.bf16.msra.mxu0 %v2496
        %2806 = vmatprep.subr.bf16.mxu0 0
        %2807 = vmatpush1.bf16.msra.mxu0 %v2497
        %2808 = vmatprep.subr.bf16.mxu0 0
        %2809 = vmatpush1.bf16.msra.mxu0 %v2498
        %2810 = vmatprep.subr.bf16.mxu0 0
        %2811 = vmatpush1.bf16.msra.mxu0 %v2499
        %2812 = vmatprep.subr.bf16.mxu0 0
        %2813 = vmatpush1.bf16.msra.mxu0 %v2500
        %2814 = vmatprep.subr.bf16.mxu0 0
        %2815 = vmatpush1.bf16.msra.mxu0 %v2501
        %2816 = vmatprep.subr.bf16.mxu0 0
        %2817 = vmatpush1.bf16.msra.mxu0 %v2502
        %2818 = vmatprep.subr.bf16.mxu0 0
        %2819 = vmatpush1.bf16.msra.mxu0 %v2503
        %2820 = vmatprep.subr.bf16.mxu0 0
        %2821 = vmatpush1.bf16.msra.mxu0 %v2504
        %2822 = vmatprep.subr.bf16.mxu0 0
        %2823 = vmatpush1.bf16.msra.mxu0 %v2505
        %2824 = vmatprep.subr.bf16.mxu0 0
        %2825 = vmatpush1.bf16.msra.mxu0 %v2506
        %2826 = vmatprep.subr.bf16.mxu0 0
        %2827 = vmatpush1.bf16.msra.mxu0 %v2507
        %2828 = vmatprep.mubr.bf16.mxu0 %v1677
        %2829 = vmatmul.mubr.bf16.gmra.mrb[0].mxu0 %v1676
        %v2830 = vpop.f32.mrb[0].mxu0
        %v2831 = vadd.f32 %v2791, %v2830
        %v2832 = vpop.f32.mrb[0].mxu0
        %v2833 = vpop.f32.mrb[0].mxu0
        %v2834 = vpop.f32.mrb[0].mxu0
        %2835 = vdwg.mxu0
        %2836 = vmatprep.subr.bf16.mxu0 0
        %2837 = vmatpush1.bf16.msra.mxu0 %v2508
        %2838 = vmatprep.subr.bf16.mxu0 0
        %2839 = vmatpush1.bf16.msra.mxu0 %v2509
        %2840 = vmatprep.subr.bf16.mxu0 0
        %2841 = vmatpush1.bf16.msra.mxu0 %v2510
        %2842 = vmatprep.subr.bf16.mxu0 0
        %2843 = vmatpush1.bf16.msra.mxu0 %v2511
        %2844 = vmatprep.subr.bf16.mxu0 0
        %2845 = vmatpush1.bf16.msra.mxu0 %v2512
        %2846 = vmatprep.subr.bf16.mxu0 0
        %2847 = vmatpush1.bf16.msra.mxu0 %v2513
        %2848 = vmatprep.subr.bf16.mxu0 0
        %2849 = vmatpush1.bf16.msra.mxu0 %v2514
        %2850 = vmatprep.subr.bf16.mxu0 0
        %2851 = vmatpush1.bf16.msra.mxu0 %v2515
        %2852 = vmatprep.subr.bf16.mxu0 0
        %2853 = vmatpush1.bf16.msra.mxu0 %v2516
        %2854 = vmatprep.subr.bf16.mxu0 0
        %2855 = vmatpush1.bf16.msra.mxu0 %v2517
        %2856 = vmatprep.subr.bf16.mxu0 0
        %2857 = vmatpush1.bf16.msra.mxu0 %v2518
        %2858 = vmatprep.subr.bf16.mxu0 0
        %2859 = vmatpush1.bf16.msra.mxu0 %v2519
        %2860 = vmatprep.subr.bf16.mxu0 0
        %2861 = vmatpush1.bf16.msra.mxu0 %v2520
        %2862 = vmatprep.subr.bf16.mxu0 0
        %2863 = vmatpush1.bf16.msra.mxu0 %v2521
        %2864 = vmatprep.subr.bf16.mxu0 0
        %2865 = vmatpush1.bf16.msra.mxu0 %v2522
        %2866 = vmatprep.subr.bf16.mxu0 0
        %2867 = vmatpush1.bf16.msra.mxu0 %v2523
        %2868 = vmatprep.mubr.bf16.mxu0 %v1679
        %2869 = vmatmul.mubr.bf16.gmra.mrb[0].mxu0 %v1678
        %v2870 = vpop.f32.mrb[0].mxu0
        %v2871 = vadd.f32 %v2831, %v2870
        %v2872 = vpop.f32.mrb[0].mxu0
        %v2873 = vpop.f32.mrb[0].mxu0
        %v2874 = vpop.f32.mrb[0].mxu0
        %2875 = vdwg.mxu0
        %2876 = vmatprep.subr.bf16.mxu0 0
        %2877 = vmatpush1.bf16.msra.mxu0 %v2524
        %2878 = vmatprep.subr.bf16.mxu0 0
        %2879 = vmatpush1.bf16.msra.mxu0 %v2525
        %2880 = vmatprep.subr.bf16.mxu0 0
        %2881 = vmatpush1.bf16.msra.mxu0 %v2526
        %2882 = vmatprep.subr.bf16.mxu0 0
        %2883 = vmatpush1.bf16.msra.mxu0 %v2527
        %2884 = vmatprep.subr.bf16.mxu0 0
        %2885 = vmatpush1.bf16.msra.mxu0 %v2528
        %2886 = vmatprep.subr.bf16.mxu0 0
        %2887 = vmatpush1.bf16.msra.mxu0 %v2529
        %2888 = vmatprep.subr.bf16.mxu0 0
        %2889 = vmatpush1.bf16.msra.mxu0 %v2530
        %2890 = vmatprep.subr.bf16.mxu0 0
        %2891 = vmatpush1.bf16.msra.mxu0 %v2531
        %2892 = vmatprep.subr.bf16.mxu0 0
        %2893 = vmatpush1.bf16.msra.mxu0 %v2532
        %2894 = vmatprep.subr.bf16.mxu0 0
        %2895 = vmatpush1.bf16.msra.mxu0 %v2533
        %2896 = vmatprep.subr.bf16.mxu0 0
        %2897 = vmatpush1.bf16.msra.mxu0 %v2534
        %2898 = vmatprep.subr.bf16.mxu0 0
        %2899 = vmatpush1.bf16.msra.mxu0 %v2535
        %2900 = vmatprep.subr.bf16.mxu0 0
        %2901 = vmatpush1.bf16.msra.mxu0 %v2536
        %2902 = vmatprep.subr.bf16.mxu0 0
        %2903 = vmatpush1.bf16.msra.mxu0 %v2537
        %2904 = vmatprep.subr.bf16.mxu0 0
        %2905 = vmatpush1.bf16.msra.mxu0 %v2538
        %2906 = vmatprep.subr.bf16.mxu0 0
        %2907 = vmatpush1.bf16.msra.mxu0 %v2539
        %2908 = vmatprep.mubr.bf16.mxu0 %v1681
        %2909 = vmatmul.mubr.bf16.gmra.mrb[0].mxu0 %v1680
        %v2910 = vpop.f32.mrb[0].mxu0
        %v2911 = vadd.f32 %v2871, %v2910
        %v2912 = vpop.f32.mrb[0].mxu0
        %v2913 = vpop.f32.mrb[0].mxu0
        %v2914 = vpop.f32.mrb[0].mxu0
        %2915 = vdwg.mxu0
        %2916 = vmatprep.subr.bf16.mxu0 0
        %2917 = vmatpush1.bf16.msra.mxu0 %v2540
        %2918 = vmatprep.subr.bf16.mxu0 0
        %2919 = vmatpush1.bf16.msra.mxu0 %v2541
        %2920 = vmatprep.subr.bf16.mxu0 0
        %2921 = vmatpush1.bf16.msra.mxu0 %v2542
        %2922 = vmatprep.subr.bf16.mxu0 0
        %2923 = vmatpush1.bf16.msra.mxu0 %v2543
        %2924 = vmatprep.subr.bf16.mxu0 0
        %2925 = vmatpush1.bf16.msra.mxu0 %v2544
        %2926 = vmatprep.subr.bf16.mxu0 0
        %2927 = vmatpush1.bf16.msra.mxu0 %v2545
        %2928 = vmatprep.subr.bf16.mxu0 0
        %2929 = vmatpush1.bf16.msra.mxu0 %v2546
        %2930 = vmatprep.subr.bf16.mxu0 0
        %2931 = vmatpush1.bf16.msra.mxu0 %v2547
        %2932 = vmatprep.subr.bf16.mxu0 0
        %2933 = vmatpush1.bf16.msra.mxu0 %v2548
        %2934 = vmatprep.subr.bf16.mxu0 0
        %2935 = vmatpush1.bf16.msra.mxu0 %v2549
        %2936 = vmatprep.subr.bf16.mxu0 0
        %2937 = vmatpush1.bf16.msra.mxu0 %v2550
        %2938 = vmatprep.subr.bf16.mxu0 0
        %2939 = vmatpush1.bf16.msra.mxu0 %v2551
        %2940 = vmatprep.subr.bf16.mxu0 0
        %2941 = vmatpush1.bf16.msra.mxu0 %v2552
        %2942 = vmatprep.subr.bf16.mxu0 0
        %2943 = vmatpush1.bf16.msra.mxu0 %v2553
        %2944 = vmatprep.subr.bf16.mxu0 0
        %2945 = vmatpush1.bf16.msra.mxu0 %v2554
        %2946 = vmatprep.subr.bf16.mxu0 0
        %2947 = vmatpush1.bf16.msra.mxu0 %v2555
        %2948 = vmatprep.mubr.bf16.mxu0 %v1683
        %2949 = vmatmul.mubr.bf16.gmra.mrb[0].mxu0 %v1682
        %v2950 = vpop.f32.mrb[0].mxu0
        %v2951 = vadd.f32 %v2911, %v2950
        %v2952 = vpop.f32.mrb[0].mxu0
        %v2953 = vpop.f32.mrb[0].mxu0
        %v2954 = vpop.f32.mrb[0].mxu0
        %2955 = vdwg.mxu0
        %2956 = vmatprep.subr.bf16.mxu0 0
        %2957 = vmatpush1.bf16.msra.mxu0 %v2556
        %2958 = vmatprep.subr.bf16.mxu0 0
        %2959 = vmatpush1.bf16.msra.mxu0 %v2557
        %2960 = vmatprep.subr.bf16.mxu0 0
        %2961 = vmatpush1.bf16.msra.mxu0 %v2558
        %2962 = vmatprep.subr.bf16.mxu0 0
        %2963 = vmatpush1.bf16.msra.mxu0 %v2559
        %2964 = vmatprep.subr.bf16.mxu0 0
        %2965 = vmatpush1.bf16.msra.mxu0 %v2560
        %2966 = vmatprep.subr.bf16.mxu0 0
        %2967 = vmatpush1.bf16.msra.mxu0 %v2561
        %2968 = vmatprep.subr.bf16.mxu0 0
        %2969 = vmatpush1.bf16.msra.mxu0 %v2562
        %2970 = vmatprep.subr.bf16.mxu0 0
        %2971 = vmatpush1.bf16.msra.mxu0 %v2563
        %2972 = vmatprep.subr.bf16.mxu0 0
        %2973 = vmatpush1.bf16.msra.mxu0 %v2564
        %2974 = vmatprep.subr.bf16.mxu0 0
        %2975 = vmatpush1.bf16.msra.mxu0 %v2565
        %2976 = vmatprep.subr.bf16.mxu0 0
        %2977 = vmatpush1.bf16.msra.mxu0 %v2566
        %2978 = vmatprep.subr.bf16.mxu0 0
        %2979 = vmatpush1.bf16.msra.mxu0 %v2567
        %2980 = vmatprep.subr.bf16.mxu0 0
        %2981 = vmatpush1.bf16.msra.mxu0 %v2568
        %2982 = vmatprep.subr.bf16.mxu0 0
        %2983 = vmatpush1.bf16.msra.mxu0 %v2569
        %2984 = vmatprep.subr.bf16.mxu0 0
        %2985 = vmatpush1.bf16.msra.mxu0 %v2570
        %2986 = vmatprep.subr.bf16.mxu0 0
        %2987 = vmatpush1.bf16.msra.mxu0 %v2571
        %2988 = vmatprep.mubr.bf16.mxu0 %v1685
        %2989 = vmatmul.mubr.bf16.gmra.mrb[0].mxu0 %v1684
        %v2990 = vpop.f32.mrb[0].mxu0
        %v2991 = vadd.f32 %v2951, %v2990
        %v2992 = vpop.f32.mrb[0].mxu0
        %v2993 = vpop.f32.mrb[0].mxu0
        %v2994 = vpop.f32.mrb[0].mxu0
        %2995 = vdwg.mxu0
        %2996 = vmatprep.subr.bf16.mxu0 0
        %2997 = vmatpush1.bf16.msra.mxu0 %v2572
        %2998 = vmatprep.subr.bf16.mxu0 0
        %2999 = vmatpush1.bf16.msra.mxu0 %v2573
        %3000 = vmatprep.subr.bf16.mxu0 0
        %3001 = vmatpush1.bf16.msra.mxu0 %v2574
        %3002 = vmatprep.subr.bf16.mxu0 0
        %3003 = vmatpush1.bf16.msra.mxu0 %v2575
        %3004 = vmatprep.subr.bf16.mxu0 0
        %3005 = vmatpush1.bf16.msra.mxu0 %v2576
        %3006 = vmatprep.subr.bf16.mxu0 0
        %3007 = vmatpush1.bf16.msra.mxu0 %v2577
        %3008 = vmatprep.subr.bf16.mxu0 0
        %3009 = vmatpush1.bf16.msra.mxu0 %v2578
        %3010 = vmatprep.subr.bf16.mxu0 0
        %3011 = vmatpush1.bf16.msra.mxu0 %v2579
        %3012 = vmatprep.subr.bf16.mxu0 0
        %3013 = vmatpush1.bf16.msra.mxu0 %v2580
        %3014 = vmatprep.subr.bf16.mxu0 0
        %3015 = vmatpush1.bf16.msra.mxu0 %v2581
        %3016 = vmatprep.subr.bf16.mxu0 0
        %3017 = vmatpush1.bf16.msra.mxu0 %v2582
        %3018 = vmatprep.subr.bf16.mxu0 0
        %3019 = vmatpush1.bf16.msra.mxu0 %v2583
        %3020 = vmatprep.subr.bf16.mxu0 0
        %3021 = vmatpush1.bf16.msra.mxu0 %v2584
        %3022 = vmatprep.subr.bf16.mxu0 0
        %3023 = vmatpush1.bf16.msra.mxu0 %v2585
        %3024 = vmatprep.subr.bf16.mxu0 0
        %3025 = vmatpush1.bf16.msra.mxu0 %v2586
        %3026 = vmatprep.subr.bf16.mxu0 0
        %3027 = vmatpush1.bf16.msra.mxu0 %v2587
        %3028 = vmatprep.mubr.bf16.mxu0 %v1687
        %3029 = vmatmul.mubr.bf16.gmra.mrb[0].mxu0 %v1686
        %v3030 = vpop.f32.mrb[0].mxu0
        %v3031 = vadd.f32 %v2991, %v3030
        %v3032 = vpop.f32.mrb[0].mxu0
        %v3033 = vpop.f32.mrb[0].mxu0
        %v3034 = vpop.f32.mrb[0].mxu0
        %3035 = vdwg.mxu0
        %v3036 = vadd.f32 %v3031, %v1047
        %v3037 = vsel %vm388, %v3036, 0.0
        %3038 = vadd.xlane.f32.xlu0 %v3037
        %v3039 = vpop.xlane.xlu0 %3038
        %v3040 = vmul.f32 %v3039, %v1027
        %v3041 = vsub.f32 %v3036, %v3040
        %v3042 = vmul.f32 %v3041, %v3041
        %v3043 = vsel %vm388, %v3042, 0.0
        %3044 = vadd.xlane.f32.xlu0 %v3043
        %v3045 = vpop.xlane.xlu0 %3044
        %v3046 = vmul.f32 %v3045, %v1027
        %v3047 = vadd.f32 %v3046, 1e-05
        %v3048 = vrsqrt.pop %v3047
        %v3049 = vmul.f32 %v3041, %v3048
        %v3050 = vmul.f32 %v3049, %v1041
        %v3051 = vadd.f32 %v3050, %v1046
        %3052 = vst.msk [vmem:[%s348] sm:$0xff] %vm388, %v3051
        %s3053 = sand.u32 %s244, 1
        %s3054 = scalar_lea.sflag [#allocation4], %s3053
        %s3055 = sand.u32 %s244, 1
        %s3056 = smul.addr %s3055, 8
        %s3057 = scalar_lea.vmem [#allocation3], %s3056
        // Predicated region
        $region57: #{tpu_custom_call.1} parent=55 // pred_check
          %p3058 = pneg %p254
        $region58: #{tpu_custom_call.1} parent=55 // pred_check_branch
          %3060 = sbr.rel (%p3058) target = $region60
        $region59: #{tpu_custom_call.1} parent=55 // pred_region
          %s3062 = ssub.s32 128, 128
          %3063 = vsyncadd %s3054, %s3062
          %s3064 = sadd.s32 %s28, %s27
          %s3065 = smul.addr %s3064, 128
          %s3066 = scalar_lea.hbm %s9, %s3065
          %s3068 = sshll.u32 %s3057, 4
          %s3069 = int_to_ptr.vmem [resolvable:$true] %s3068
          %3071 = dma.vmem_to_hbm [thread:$0]  %s3069, 128, %s3066, %s3054
        $region60: #{tpu_custom_call.1} parent=55 // pred_fallthru
          _
      $region56: #{tpu_custom_call.1} parent=5 // pred_fallthru
        _
      %p3072 = scmp.le.s32.totalorder 2, %s18
      // Predicated region
      $region61: #{tpu_custom_call.1} parent=5 // pred_check
        %p3073 = pneg %p3072
      $region62: #{tpu_custom_call.1} parent=5 // pred_check_branch
        %3075 = sbr.rel (%p3073) target = $region64
      $region63: #{tpu_custom_call.1} parent=5 // pred_region
        %s3076 = ssub.s32 %s18, 2
        // Predicated region
        $region65: #{tpu_custom_call.1} parent=63 // pred_check
          %p3077 = pneg %p260
        $region66: #{tpu_custom_call.1} parent=63 // pred_check_branch
          %3079 = sbr.rel (%p3077) target = $region68
        $region67: #{tpu_custom_call.1} parent=63 // pred_region
          %s3080 = sand.u32 %s245, 1
          %s3081 = scalar_lea.sflag [#allocation4], %s3080
          %s3082 = sand.u32 %s245, 1
          %s3083 = smul.addr %s3082, 8
          %s3084 = scalar_lea.vmem [#allocation3], %s3083
          %3085 = dma.done %s3081, 128
        $region68: #{tpu_custom_call.1} parent=63 // pred_fallthru
          _
      $region64: #{tpu_custom_call.1} parent=5 // pred_fallthru
        _
    $region6: #{tpu_custom_call.1} parent=1 // loop_footer
      %s22 = sadd.s32 1, %s18
    $region7: #{tpu_custom_call.1} parent=1 // loop_footer_branch
      %17 = sbr.rel target = $region3
    $region8: #{tpu_custom_call.1} parent=1 // loop_exit
      _
    %3086 = vsyncpa [#allocation4], 1
    %s3087 = scalar_lea.sflag [#allocation4], 1
    %3088 = vsyncpa %s3087, 1

</llo_original>
